<compile_context>
chip_gen: v7x
topology: tpu7x:2x2x1
jax: 0.10.0
libtpu: 0.0.40
codegen_flags: <defaults>
</compile_context>

<pallas_src>
import functools

import jax
import jax.numpy as jnp
from jax.experimental import pallas as pl
from jax.experimental.pallas import tpu as pltpu


def _round_up(v, m):
    return ((v + m - 1) // m) * m


# ----------------------------------------------------------------------------
# Fused 3-layer encoder kernel (one batch element per grid step)
# ----------------------------------------------------------------------------
def _encoder_kernel(alpha_ref,
                    p1_ref, w1_ref, b1_ref,
                    sel2_ref, w2_ref, b2_ref,
                    sel3_ref, w3_ref, b3_ref,
                    o_ref,
                    y1_scr, y2_scr):
    # alpha_ref: (3,)            PReLU slopes                       [SMEM]
    # p1_ref:    (1, L1p, Cin*Kw) layer-1 im2col patches            [VMEM]
    # w1_ref:    (Cin*Kw, C1p)    layer-1 weight (channel-padded)   [VMEM]
    # sel{2,3}_ref: (Kw, Lout_p, Lin_p) one-hot row selectors       [VMEM]
    # w{2,3}_ref:   (Kw, Cin_p, Cout_p) per-tap weights             [VMEM]
    # b*_ref:    (1, C*p)         biases                            [VMEM]
    # o_ref:     (1, L3p, C3p)    output                            [VMEM]
    # y1_scr, y2_scr: VMEM scratch holding inter-layer activations.
    a0 = alpha_ref[0]
    a1 = alpha_ref[1]
    a2 = alpha_ref[2]

    # ---- layer 1: (L1p, Cin*Kw) @ (Cin*Kw, C1p) + b, PReLU ------------------
    y = jnp.dot(p1_ref[0], w1_ref[...], preferred_element_type=jnp.float32)
    y = y + b1_ref[...]
    y1_scr[...] = jnp.where(y > 0.0, y, a0 * y)

    # ---- layer 2: tap-sum conv; taps gathered via one-hot matmul ------------
    kw = sel2_ref.shape[0]
    l2p, c2p = sel2_ref.shape[1], w2_ref.shape[2]
    acc = jnp.zeros((l2p, c2p), jnp.float32)
    for k in range(kw):
        tap = jnp.dot(sel2_ref[k], y1_scr[...],
                      preferred_element_type=jnp.float32)      # rows l*stride+k
        acc = acc + jnp.dot(tap, w2_ref[k],
                            preferred_element_type=jnp.float32)
    y = acc + b2_ref[...]
    y2_scr[...] = jnp.where(y > 0.0, y, a1 * y)

    # ---- layer 3 -------------------------------------------------------------
    l3p, c3p = sel3_ref.shape[1], w3_ref.shape[2]
    acc = jnp.zeros((l3p, c3p), jnp.float32)
    for k in range(kw):
        tap = jnp.dot(sel3_ref[k], y2_scr[...],
                      preferred_element_type=jnp.float32)
        acc = acc + jnp.dot(tap, w3_ref[k],
                            preferred_element_type=jnp.float32)
    y = acc + b3_ref[...]
    o_ref[0] = jnp.where(y > 0.0, y, a2 * y)


# ----------------------------------------------------------------------------
# Wrapper-side (plain JAX) preparation helpers
# ----------------------------------------------------------------------------
def _im2col_layer1(x_nlc, kw, stride, l_out):
    # x_nlc: (N, L, Cin) -> patches (N, l_out, Cin*kw); Cin-major / kw-minor,
    # matching weight.reshape(Cout, Cin*kw).  Built from static strided
    # slices (no gather lowering).
    n, _, cin = x_nlc.shape
    taps = []
    for k in range(kw):
        limit = k + (l_out - 1) * stride + 1
        taps.append(jax.lax.slice(x_nlc, (0, k, 0), (n, limit, cin),
                                  (1, stride, 1)))          # (N, l_out, Cin)
    p = jnp.stack(taps, axis=-1)                             # (N, l_out, Cin, kw)
    return p.reshape(n, l_out, cin * kw)


def _make_select(kw, stride, l_out, l_out_pad, l_in_pad):
    # (kw, l_out_pad, l_in_pad): SEL[k, l, :] = one_hot(l*stride + k) for valid l.
    rows = jnp.arange(l_out_pad)
    valid = (rows < l_out).astype(jnp.float32)[:, None]
    sels = []
    for k in range(kw):
        oh = jax.nn.one_hot(rows * stride + k, l_in_pad, dtype=jnp.float32)
        sels.append(oh * valid)
    return jnp.stack(sels, axis=0)


# ----------------------------------------------------------------------------
# Encoder: parameters + forward
# ----------------------------------------------------------------------------
def init_encoder_params(key, in_channels, kernel_size):
    c0, c1, c2, c3 = (in_channels,
                      in_channels * 32,
                      in_channels * 64,
                      in_channels * 128)
    chans = [(c0, c1), (c1, c2), (c2, c3)]
    params = []
    for i, (cin, cout) in enumerate(chans):
        kw, kb = jax.random.split(jax.random.fold_in(key, i))
        scale = 1.0 / jnp.sqrt(jnp.float32(cin * kernel_size))
        w = jax.random.uniform(kw, (cout, cin, kernel_size), jnp.float32,
                               minval=-scale, maxval=scale)
        b = jax.random.uniform(kb, (cout,), jnp.float32,
                               minval=-scale, maxval=scale)
        alpha = jnp.array([0.25], dtype=jnp.float32)     # nn.PReLU() default
        params.append((w, b, alpha))
    return params


@functools.partial(jax.jit, static_argnums=(2,))
def encoder_forward(x, params, stride):
    # x: (N, Cin, L) float32, NCL like the PyTorch Conv1d.
    n, cin, l0 = x.shape
    (w1, b1, al1), (w2, b2, al2), (w3, b3, al3) = params
    c1, _, kw = w1.shape
    c2 = w2.shape[0]
    c3 = w3.shape[0]

    l1 = (l0 - kw) // stride + 1
    l2 = (l1 - kw) // stride + 1
    l3 = (l2 - kw) // stride + 1

    c1p, c2p, c3p = (_round_up(c, 128) for c in (c1, c2, c3))
    l1p, l2p, l3p = (_round_up(v, 8) for v in (l1, l2, l3))
    k1 = cin * kw

    # ---- layer-1 patches (channels-last), padded to sublane grain ----------
    x_nlc = jnp.transpose(x, (0, 2, 1))                          # (N, L, Cin)
    p1 = _im2col_layer1(x_nlc, kw, stride, l1)                   # (N, L1, Cin*Kw)
    p1 = jnp.pad(p1, ((0, 0), (0, l1p - l1), (0, 0)))            # (N, L1p, K1)

    # ---- weights / biases: channels-last layout, zero-padded to 128 lanes --
    w1_2d = jnp.pad(w1.reshape(c1, k1).T, ((0, 0), (0, c1p - c1)))        # (K1, C1p)
    b1_2d = jnp.pad(b1, (0, c1p - c1)).reshape(1, c1p)
    w2_t = jnp.pad(jnp.transpose(w2, (2, 1, 0)),
                   ((0, 0), (0, c1p - c1), (0, c2p - c2)))                # (Kw, C1p, C2p)
    b2_2d = jnp.pad(b2, (0, c2p - c2)).reshape(1, c2p)
    w3_t = jnp.pad(jnp.transpose(w3, (2, 1, 0)),
                   ((0, 0), (0, c2p - c2), (0, c3p - c3)))                # (Kw, C2p, C3p)
    b3_2d = jnp.pad(b3, (0, c3p - c3)).reshape(1, c3p)
    alphas = jnp.concatenate([al1, al2, al3]).astype(jnp.float32)         # (3,)

    sel2 = _make_select(kw, stride, l2, l2p, l1p)                # (Kw, L2p, L1p)
    sel3 = _make_select(kw, stride, l3, l3p, l2p)                # (Kw, L3p, L2p)

    out = pl.pallas_call(
        _encoder_kernel,
        out_shape=jax.ShapeDtypeStruct((n, l3p, c3p), jnp.float32),
        grid=(n,),
        in_specs=[
            pl.BlockSpec(memory_space=pltpu.SMEM),                      # alphas
            pl.BlockSpec((1, l1p, k1), lambda b: (b, 0, 0)),            # patches
            pl.BlockSpec((k1, c1p), lambda b: (0, 0)),                  # w1
            pl.BlockSpec((1, c1p), lambda b: (0, 0)),                   # b1
            pl.BlockSpec((kw, l2p, l1p), lambda b: (0, 0, 0)),          # sel2
            pl.BlockSpec((kw, c1p, c2p), lambda b: (0, 0, 0)),          # w2
            pl.BlockSpec((1, c2p), lambda b: (0, 0)),                   # b2
            pl.BlockSpec((kw, l3p, l2p), lambda b: (0, 0, 0)),          # sel3
            pl.BlockSpec((kw, c2p, c3p), lambda b: (0, 0, 0)),          # w3
            pl.BlockSpec((1, c3p), lambda b: (0, 0)),                   # b3
        ],
        out_specs=pl.BlockSpec((1, l3p, c3p), lambda b: (b, 0, 0)),
        scratch_shapes=[
            pltpu.VMEM((l1p, c1p), jnp.float32),    # layer-1 activation
            pltpu.VMEM((l2p, c2p), jnp.float32),    # layer-2 activation
        ],
        compiler_params=pltpu.CompilerParams(
            dimension_semantics=("parallel",),
            vmem_limit_bytes=32 * 1024 * 1024,
        ),
    )(alphas, p1, w1_2d, b1_2d, sel2, w2_t, b2_2d, sel3, w3_t, b3_2d)

    out = out[:, :l3, :c3]                       # drop row / channel padding
    return jnp.transpose(out, (0, 2, 1))         # back to NCL


# ----------------------------------------------------------------------------
# Plain-XLA reference (same math) for a numerics check
# ----------------------------------------------------------------------------
def encoder_reference(x, params, stride):
    h = x
    for (w, b, alpha) in params:
        y = jax.lax.conv_general_dilated(
            h, w, window_strides=(stride,), padding="VALID",
            dimension_numbers=("NCH", "OIH", "NCH"),
            precision=jax.lax.Precision.HIGHEST)
        y = y + b[None, :, None]
        h = jnp.where(y > 0.0, y, alpha[0] * y)
    return h


if __name__ == "__main__":
    # Encoder(in_channels=2, x_size=128, kernel_size=8, stride=2) on
    # x of shape (N=2, C=2, L=128); L1=61, L2=27, L3=10.
    in_channels = 2
    x_size = 128
    kernel_size = 8
    stride = 2
    batch = 2

    key = jax.random.PRNGKey(0)
    k_x, k_p = jax.random.split(key)
    x = jax.random.normal(k_x, (batch, in_channels, x_size), dtype=jnp.float32)
    params = init_encoder_params(k_p, in_channels, kernel_size)

    out = encoder_forward(x, params, stride)
    out = jax.block_until_ready(out)

    assert out.shape == (batch, in_channels * 128, 10), out.shape
    assert out.dtype == jnp.float32

    ref = encoder_reference(x, params, stride)
    err = float(jnp.max(jnp.abs(out - ref)))
    assert err < 2e-2, f"max abs err vs reference = {err}"

    print("KERNEL_OK")
</pallas_src>

<mosaic_0001>
module attributes {stable_mosaic.version = 11 : i64} {
  func.func @_encoder_kernel(%arg0: i32, %arg1: memref<3xf32, #tpu.memory_space<smem>>, %arg2: memref<1x64x16xf32, #tpu.memory_space<vmem>>, %arg3: memref<16x128xf32, #tpu.memory_space<vmem>>, %arg4: memref<1x128xf32, #tpu.memory_space<vmem>>, %arg5: memref<8x32x64xf32, #tpu.memory_space<vmem>>, %arg6: memref<8x128x128xf32, #tpu.memory_space<vmem>>, %arg7: memref<1x128xf32, #tpu.memory_space<vmem>>, %arg8: memref<8x16x32xf32, #tpu.memory_space<vmem>>, %arg9: memref<8x128x256xf32, #tpu.memory_space<vmem>>, %arg10: memref<1x256xf32, #tpu.memory_space<vmem>>, %arg11: memref<1x16x256xf32, #tpu.memory_space<vmem>>, %arg12: memref<64x128xf32, #tpu.memory_space<vmem>>, %arg13: memref<32x128xf32, #tpu.memory_space<vmem>>) attributes {dimension_semantics = [#tpu.dimension_semantics<parallel>], iteration_bounds = array<i64: 2>, scalar_prefetch = 0 : i64, scratch_operands = 2 : i64, tpu.core_type = #tpu.core_type<tc>, window_params = [{transform_indices = @transform_0, window_bounds = array<i64: 3>}, {transform_indices = @transform_1, window_bounds = array<i64: 1, 64, 16>}, {pipeline_mode = #tpu.pipeline_mode<synchronous>, transform_indices = @transform_2, window_bounds = array<i64: 16, 128>}, {pipeline_mode = #tpu.pipeline_mode<synchronous>, transform_indices = @transform_3, window_bounds = array<i64: 1, 128>}, {pipeline_mode = #tpu.pipeline_mode<synchronous>, transform_indices = @transform_4, window_bounds = array<i64: 8, 32, 64>}, {pipeline_mode = #tpu.pipeline_mode<synchronous>, transform_indices = @transform_5, window_bounds = array<i64: 8, 128, 128>}, {pipeline_mode = #tpu.pipeline_mode<synchronous>, transform_indices = @transform_6, window_bounds = array<i64: 1, 128>}, {pipeline_mode = #tpu.pipeline_mode<synchronous>, transform_indices = @transform_7, window_bounds = array<i64: 8, 16, 32>}, {pipeline_mode = #tpu.pipeline_mode<synchronous>, transform_indices = @transform_8, window_bounds = array<i64: 8, 128, 256>}, {pipeline_mode = #tpu.pipeline_mode<synchronous>, transform_indices = @transform_9, window_bounds = array<i64: 1, 256>}, {transform_indices = @transform_10, window_bounds = array<i64: 1, 16, 256>}]} {
    %c0 = arith.constant 0 : index
    %0 = memref.load %arg1[%c0] : memref<3xf32, #tpu.memory_space<smem>>
    %c1 = arith.constant 1 : index
    %1 = memref.load %arg1[%c1] : memref<3xf32, #tpu.memory_space<smem>>
    %c2 = arith.constant 2 : index
    %2 = memref.load %arg1[%c2] : memref<3xf32, #tpu.memory_space<smem>>
    %c0_0 = arith.constant 0 : index
    %c0_1 = arith.constant 0 : index
    %c0_2 = arith.constant 0 : index
    %3 = vector.load %arg2[%c0_0, %c0_1, %c0_2] : memref<1x64x16xf32, #tpu.memory_space<vmem>>, vector<1x64x16xf32>
    %4 = vector.shape_cast %3 : vector<1x64x16xf32> to vector<64x16xf32>
    %c0_3 = arith.constant 0 : index
    %c0_4 = arith.constant 0 : index
    %5 = vector.load %arg3[%c0_3, %c0_4] : memref<16x128xf32, #tpu.memory_space<vmem>>, vector<16x128xf32>
    %cst = arith.constant dense<0.000000e+00> : vector<64x128xf32>
    %6 = tpu.matmul %4, %5, %cst {dimension_numbers = #tpu.dot_dimension_numbers<[1], [0], [0], [1], [0, 0, 1, 1], [], []>} : vector<64x16xf32>, vector<16x128xf32>, vector<64x128xf32> -> vector<64x128xf32>
    %c0_5 = arith.constant 0 : index
    %c0_6 = arith.constant 0 : index
    %7 = vector.load %arg4[%c0_5, %c0_6] : memref<1x128xf32, #tpu.memory_space<vmem>>, vector<1x128xf32>
    %8 = vector.broadcast %7 : vector<1x128xf32> to vector<64x128xf32>
    %9 = arith.addf %6, %8 : vector<64x128xf32>
    %cst_7 = arith.constant 0.000000e+00 : f32
    %10 = vector.broadcast %cst_7 : f32 to vector<64x128xf32>
    %11 = arith.cmpf ogt, %9, %10 : vector<64x128xf32>
    %12 = vector.broadcast %0 : f32 to vector<64x128xf32>
    %13 = arith.mulf %12, %9 : vector<64x128xf32>
    %14 = arith.select %11, %9, %13 : vector<64x128xi1>, vector<64x128xf32>
    %c0_8 = arith.constant 0 : index
    %c0_9 = arith.constant 0 : index
    %15 = vector.load %arg12[%c0_8, %c0_9] : memref<64x128xf32, #tpu.memory_space<vmem>>, vector<64x128xf32>
    tpu.vector_store %arg12[%c0_8, %c0_9], %14 {strides = array<i32>} : memref<64x128xf32, #tpu.memory_space<vmem>>, vector<64x128xf32>,
    %cst_10 = arith.constant 0.000000e+00 : f32
    %16 = vector.broadcast %cst_10 : f32 to vector<32x128xf32>
    %c0_11 = arith.constant 0 : index
    %c0_12 = arith.constant 0 : index
    %c0_13 = arith.constant 0 : index
    %17 = vector.load %arg5[%c0_11, %c0_12, %c0_13] : memref<8x32x64xf32, #tpu.memory_space<vmem>>, vector<1x32x64xf32>
    %18 = vector.shape_cast %17 : vector<1x32x64xf32> to vector<32x64xf32>
    %c0_14 = arith.constant 0 : index
    %c0_15 = arith.constant 0 : index
    %19 = vector.load %arg12[%c0_14, %c0_15] : memref<64x128xf32, #tpu.memory_space<vmem>>, vector<64x128xf32>
    %cst_16 = arith.constant dense<0.000000e+00> : vector<32x128xf32>
    %20 = tpu.matmul %18, %19, %cst_16 {dimension_numbers = #tpu.dot_dimension_numbers<[1], [0], [0], [1], [0, 0, 1, 1], [], []>} : vector<32x64xf32>, vector<64x128xf32>, vector<32x128xf32> -> vector<32x128xf32>
    %c0_17 = arith.constant 0 : index
    %c0_18 = arith.constant 0 : index
    %c0_19 = arith.constant 0 : index
    %21 = vector.load %arg6[%c0_17, %c0_18, %c0_19] : memref<8x128x128xf32, #tpu.memory_space<vmem>>, vector<1x128x128xf32>
    %22 = vector.shape_cast %21 : vector<1x128x128xf32> to vector<128x128xf32>
    %cst_20 = arith.constant dense<0.000000e+00> : vector<32x128xf32>
    %23 = tpu.matmul %20, %22, %cst_20 {dimension_numbers = #tpu.dot_dimension_numbers<[1], [0], [0], [1], [0, 0, 1, 1], [], []>} : vector<32x128xf32>, vector<128x128xf32>, vector<32x128xf32> -> vector<32x128xf32>
    %24 = arith.addf %16, %23 : vector<32x128xf32>
    %c1_21 = arith.constant 1 : index
    %c0_22 = arith.constant 0 : index
    %c0_23 = arith.constant 0 : index
    %25 = vector.load %arg5[%c1_21, %c0_22, %c0_23] : memref<8x32x64xf32, #tpu.memory_space<vmem>>, vector<1x32x64xf32>
    %26 = vector.shape_cast %25 : vector<1x32x64xf32> to vector<32x64xf32>
    %c0_24 = arith.constant 0 : index
    %c0_25 = arith.constant 0 : index
    %27 = vector.load %arg12[%c0_24, %c0_25] : memref<64x128xf32, #tpu.memory_space<vmem>>, vector<64x128xf32>
    %cst_26 = arith.constant dense<0.000000e+00> : vector<32x128xf32>
    %28 = tpu.matmul %26, %27, %cst_26 {dimension_numbers = #tpu.dot_dimension_numbers<[1], [0], [0], [1], [0, 0, 1, 1], [], []>} : vector<32x64xf32>, vector<64x128xf32>, vector<32x128xf32> -> vector<32x128xf32>
    %c1_27 = arith.constant 1 : index
    %c0_28 = arith.constant 0 : index
    %c0_29 = arith.constant 0 : index
    %29 = vector.load %arg6[%c1_27, %c0_28, %c0_29] : memref<8x128x128xf32, #tpu.memory_space<vmem>>, vector<1x128x128xf32>
    %30 = vector.shape_cast %29 : vector<1x128x128xf32> to vector<128x128xf32>
    %cst_30 = arith.constant dense<0.000000e+00> : vector<32x128xf32>
    %31 = tpu.matmul %28, %30, %cst_30 {dimension_numbers = #tpu.dot_dimension_numbers<[1], [0], [0], [1], [0, 0, 1, 1], [], []>} : vector<32x128xf32>, vector<128x128xf32>, vector<32x128xf32> -> vector<32x128xf32>
    %32 = arith.addf %24, %31 : vector<32x128xf32>
    %c2_31 = arith.constant 2 : index
    %c0_32 = arith.constant 0 : index
    %c0_33 = arith.constant 0 : index
    %33 = vector.load %arg5[%c2_31, %c0_32, %c0_33] : memref<8x32x64xf32, #tpu.memory_space<vmem>>, vector<1x32x64xf32>
    %34 = vector.shape_cast %33 : vector<1x32x64xf32> to vector<32x64xf32>
    %c0_34 = arith.constant 0 : index
    %c0_35 = arith.constant 0 : index
    %35 = vector.load %arg12[%c0_34, %c0_35] : memref<64x128xf32, #tpu.memory_space<vmem>>, vector<64x128xf32>
    %cst_36 = arith.constant dense<0.000000e+00> : vector<32x128xf32>
    %36 = tpu.matmul %34, %35, %cst_36 {dimension_numbers = #tpu.dot_dimension_numbers<[1], [0], [0], [1], [0, 0, 1, 1], [], []>} : vector<32x64xf32>, vector<64x128xf32>, vector<32x128xf32> -> vector<32x128xf32>
    %c2_37 = arith.constant 2 : index
    %c0_38 = arith.constant 0 : index
    %c0_39 = arith.constant 0 : index
    %37 = vector.load %arg6[%c2_37, %c0_38, %c0_39] : memref<8x128x128xf32, #tpu.memory_space<vmem>>, vector<1x128x128xf32>
    %38 = vector.shape_cast %37 : vector<1x128x128xf32> to vector<128x128xf32>
    %cst_40 = arith.constant dense<0.000000e+00> : vector<32x128xf32>
    %39 = tpu.matmul %36, %38, %cst_40 {dimension_numbers = #tpu.dot_dimension_numbers<[1], [0], [0], [1], [0, 0, 1, 1], [], []>} : vector<32x128xf32>, vector<128x128xf32>, vector<32x128xf32> -> vector<32x128xf32>
    %40 = arith.addf %32, %39 : vector<32x128xf32>
    %c3 = arith.constant 3 : index
    %c0_41 = arith.constant 0 : index
    %c0_42 = arith.constant 0 : index
    %41 = vector.load %arg5[%c3, %c0_41, %c0_42] : memref<8x32x64xf32, #tpu.memory_space<vmem>>, vector<1x32x64xf32>
    %42 = vector.shape_cast %41 : vector<1x32x64xf32> to vector<32x64xf32>
    %c0_43 = arith.constant 0 : index
    %c0_44 = arith.constant 0 : index
    %43 = vector.load %arg12[%c0_43, %c0_44] : memref<64x128xf32, #tpu.memory_space<vmem>>, vector<64x128xf32>
    %cst_45 = arith.constant dense<0.000000e+00> : vector<32x128xf32>
    %44 = tpu.matmul %42, %43, %cst_45 {dimension_numbers = #tpu.dot_dimension_numbers<[1], [0], [0], [1], [0, 0, 1, 1], [], []>} : vector<32x64xf32>, vector<64x128xf32>, vector<32x128xf32> -> vector<32x128xf32>
    %c3_46 = arith.constant 3 : index
    %c0_47 = arith.constant 0 : index
    %c0_48 = arith.constant 0 : index
    %45 = vector.load %arg6[%c3_46, %c0_47, %c0_48] : memref<8x128x128xf32, #tpu.memory_space<vmem>>, vector<1x128x128xf32>
    %46 = vector.shape_cast %45 : vector<1x128x128xf32> to vector<128x128xf32>
    %cst_49 = arith.constant dense<0.000000e+00> : vector<32x128xf32>
    %47 = tpu.matmul %44, %46, %cst_49 {dimension_numbers = #tpu.dot_dimension_numbers<[1], [0], [0], [1], [0, 0, 1, 1], [], []>} : vector<32x128xf32>, vector<128x128xf32>, vector<32x128xf32> -> vector<32x128xf32>
    %48 = arith.addf %40, %47 : vector<32x128xf32>
    %c4 = arith.constant 4 : index
    %c0_50 = arith.constant 0 : index
    %c0_51 = arith.constant 0 : index
    %49 = vector.load %arg5[%c4, %c0_50, %c0_51] : memref<8x32x64xf32, #tpu.memory_space<vmem>>, vector<1x32x64xf32>
    %50 = vector.shape_cast %49 : vector<1x32x64xf32> to vector<32x64xf32>
    %c0_52 = arith.constant 0 : index
    %c0_53 = arith.constant 0 : index
    %51 = vector.load %arg12[%c0_52, %c0_53] : memref<64x128xf32, #tpu.memory_space<vmem>>, vector<64x128xf32>
    %cst_54 = arith.constant dense<0.000000e+00> : vector<32x128xf32>
    %52 = tpu.matmul %50, %51, %cst_54 {dimension_numbers = #tpu.dot_dimension_numbers<[1], [0], [0], [1], [0, 0, 1, 1], [], []>} : vector<32x64xf32>, vector<64x128xf32>, vector<32x128xf32> -> vector<32x128xf32>
    %c4_55 = arith.constant 4 : index
    %c0_56 = arith.constant 0 : index
    %c0_57 = arith.constant 0 : index
    %53 = vector.load %arg6[%c4_55, %c0_56, %c0_57] : memref<8x128x128xf32, #tpu.memory_space<vmem>>, vector<1x128x128xf32>
    %54 = vector.shape_cast %53 : vector<1x128x128xf32> to vector<128x128xf32>
    %cst_58 = arith.constant dense<0.000000e+00> : vector<32x128xf32>
    %55 = tpu.matmul %52, %54, %cst_58 {dimension_numbers = #tpu.dot_dimension_numbers<[1], [0], [0], [1], [0, 0, 1, 1], [], []>} : vector<32x128xf32>, vector<128x128xf32>, vector<32x128xf32> -> vector<32x128xf32>
    %56 = arith.addf %48, %55 : vector<32x128xf32>
    %c5 = arith.constant 5 : index
    %c0_59 = arith.constant 0 : index
    %c0_60 = arith.constant 0 : index
    %57 = vector.load %arg5[%c5, %c0_59, %c0_60] : memref<8x32x64xf32, #tpu.memory_space<vmem>>, vector<1x32x64xf32>
    %58 = vector.shape_cast %57 : vector<1x32x64xf32> to vector<32x64xf32>
    %c0_61 = arith.constant 0 : index
    %c0_62 = arith.constant 0 : index
    %59 = vector.load %arg12[%c0_61, %c0_62] : memref<64x128xf32, #tpu.memory_space<vmem>>, vector<64x128xf32>
    %cst_63 = arith.constant dense<0.000000e+00> : vector<32x128xf32>
    %60 = tpu.matmul %58, %59, %cst_63 {dimension_numbers = #tpu.dot_dimension_numbers<[1], [0], [0], [1], [0, 0, 1, 1], [], []>} : vector<32x64xf32>, vector<64x128xf32>, vector<32x128xf32> -> vector<32x128xf32>
    %c5_64 = arith.constant 5 : index
    %c0_65 = arith.constant 0 : index
    %c0_66 = arith.constant 0 : index
    %61 = vector.load %arg6[%c5_64, %c0_65, %c0_66] : memref<8x128x128xf32, #tpu.memory_space<vmem>>, vector<1x128x128xf32>
    %62 = vector.shape_cast %61 : vector<1x128x128xf32> to vector<128x128xf32>
    %cst_67 = arith.constant dense<0.000000e+00> : vector<32x128xf32>
    %63 = tpu.matmul %60, %62, %cst_67 {dimension_numbers = #tpu.dot_dimension_numbers<[1], [0], [0], [1], [0, 0, 1, 1], [], []>} : vector<32x128xf32>, vector<128x128xf32>, vector<32x128xf32> -> vector<32x128xf32>
    %64 = arith.addf %56, %63 : vector<32x128xf32>
    %c6 = arith.constant 6 : index
    %c0_68 = arith.constant 0 : index
    %c0_69 = arith.constant 0 : index
    %65 = vector.load %arg5[%c6, %c0_68, %c0_69] : memref<8x32x64xf32, #tpu.memory_space<vmem>>, vector<1x32x64xf32>
    %66 = vector.shape_cast %65 : vector<1x32x64xf32> to vector<32x64xf32>
    %c0_70 = arith.constant 0 : index
    %c0_71 = arith.constant 0 : index
    %67 = vector.load %arg12[%c0_70, %c0_71] : memref<64x128xf32, #tpu.memory_space<vmem>>, vector<64x128xf32>
    %cst_72 = arith.constant dense<0.000000e+00> : vector<32x128xf32>
    %68 = tpu.matmul %66, %67, %cst_72 {dimension_numbers = #tpu.dot_dimension_numbers<[1], [0], [0], [1], [0, 0, 1, 1], [], []>} : vector<32x64xf32>, vector<64x128xf32>, vector<32x128xf32> -> vector<32x128xf32>
    %c6_73 = arith.constant 6 : index
    %c0_74 = arith.constant 0 : index
    %c0_75 = arith.constant 0 : index
    %69 = vector.load %arg6[%c6_73, %c0_74, %c0_75] : memref<8x128x128xf32, #tpu.memory_space<vmem>>, vector<1x128x128xf32>
    %70 = vector.shape_cast %69 : vector<1x128x128xf32> to vector<128x128xf32>
    %cst_76 = arith.constant dense<0.000000e+00> : vector<32x128xf32>
    %71 = tpu.matmul %68, %70, %cst_76 {dimension_numbers = #tpu.dot_dimension_numbers<[1], [0], [0], [1], [0, 0, 1, 1], [], []>} : vector<32x128xf32>, vector<128x128xf32>, vector<32x128xf32> -> vector<32x128xf32>
    %72 = arith.addf %64, %71 : vector<32x128xf32>
    %c7 = arith.constant 7 : index
    %c0_77 = arith.constant 0 : index
    %c0_78 = arith.constant 0 : index
    %73 = vector.load %arg5[%c7, %c0_77, %c0_78] : memref<8x32x64xf32, #tpu.memory_space<vmem>>, vector<1x32x64xf32>
    %74 = vector.shape_cast %73 : vector<1x32x64xf32> to vector<32x64xf32>
    %c0_79 = arith.constant 0 : index
    %c0_80 = arith.constant 0 : index
    %75 = vector.load %arg12[%c0_79, %c0_80] : memref<64x128xf32, #tpu.memory_space<vmem>>, vector<64x128xf32>
    %cst_81 = arith.constant dense<0.000000e+00> : vector<32x128xf32>
    %76 = tpu.matmul %74, %75, %cst_81 {dimension_numbers = #tpu.dot_dimension_numbers<[1], [0], [0], [1], [0, 0, 1, 1], [], []>} : vector<32x64xf32>, vector<64x128xf32>, vector<32x128xf32> -> vector<32x128xf32>
    %c7_82 = arith.constant 7 : index
    %c0_83 = arith.constant 0 : index
    %c0_84 = arith.constant 0 : index
    %77 = vector.load %arg6[%c7_82, %c0_83, %c0_84] : memref<8x128x128xf32, #tpu.memory_space<vmem>>, vector<1x128x128xf32>
    %78 = vector.shape_cast %77 : vector<1x128x128xf32> to vector<128x128xf32>
    %cst_85 = arith.constant dense<0.000000e+00> : vector<32x128xf32>
    %79 = tpu.matmul %76, %78, %cst_85 {dimension_numbers = #tpu.dot_dimension_numbers<[1], [0], [0], [1], [0, 0, 1, 1], [], []>} : vector<32x128xf32>, vector<128x128xf32>, vector<32x128xf32> -> vector<32x128xf32>
    %80 = arith.addf %72, %79 : vector<32x128xf32>
    %c0_86 = arith.constant 0 : index
    %c0_87 = arith.constant 0 : index
    %81 = vector.load %arg7[%c0_86, %c0_87] : memref<1x128xf32, #tpu.memory_space<vmem>>, vector<1x128xf32>
    %82 = vector.broadcast %81 : vector<1x128xf32> to vector<32x128xf32>
    %83 = arith.addf %80, %82 : vector<32x128xf32>
    %cst_88 = arith.constant 0.000000e+00 : f32
    %84 = vector.broadcast %cst_88 : f32 to vector<32x128xf32>
    %85 = arith.cmpf ogt, %83, %84 : vector<32x128xf32>
    %86 = vector.broadcast %1 : f32 to vector<32x128xf32>
    %87 = arith.mulf %86, %83 : vector<32x128xf32>
    %88 = arith.select %85, %83, %87 : vector<32x128xi1>, vector<32x128xf32>
    %c0_89 = arith.constant 0 : index
    %c0_90 = arith.constant 0 : index
    %89 = vector.load %arg13[%c0_89, %c0_90] : memref<32x128xf32, #tpu.memory_space<vmem>>, vector<32x128xf32>
    tpu.vector_store %arg13[%c0_89, %c0_90], %88 {strides = array<i32>} : memref<32x128xf32, #tpu.memory_space<vmem>>, vector<32x128xf32>,
    %cst_91 = arith.constant 0.000000e+00 : f32
    %90 = vector.broadcast %cst_91 : f32 to vector<16x256xf32>
    %c0_92 = arith.constant 0 : index
    %c0_93 = arith.constant 0 : index
    %c0_94 = arith.constant 0 : index
    %91 = vector.load %arg8[%c0_92, %c0_93, %c0_94] : memref<8x16x32xf32, #tpu.memory_space<vmem>>, vector<1x16x32xf32>
    %92 = vector.shape_cast %91 : vector<1x16x32xf32> to vector<16x32xf32>
    %c0_95 = arith.constant 0 : index
    %c0_96 = arith.constant 0 : index
    %93 = vector.load %arg13[%c0_95, %c0_96] : memref<32x128xf32, #tpu.memory_space<vmem>>, vector<32x128xf32>
    %cst_97 = arith.constant dense<0.000000e+00> : vector<16x128xf32>
    %94 = tpu.matmul %92, %93, %cst_97 {dimension_numbers = #tpu.dot_dimension_numbers<[1], [0], [0], [1], [0, 0, 1, 1], [], []>} : vector<16x32xf32>, vector<32x128xf32>, vector<16x128xf32> -> vector<16x128xf32>
    %c0_98 = arith.constant 0 : index
    %c0_99 = arith.constant 0 : index
    %c0_100 = arith.constant 0 : index
    %95 = vector.load %arg9[%c0_98, %c0_99, %c0_100] : memref<8x128x256xf32, #tpu.memory_space<vmem>>, vector<1x128x256xf32>
    %96 = vector.shape_cast %95 : vector<1x128x256xf32> to vector<128x256xf32>
    %cst_101 = arith.constant dense<0.000000e+00> : vector<16x256xf32>
    %97 = tpu.matmul %94, %96, %cst_101 {dimension_numbers = #tpu.dot_dimension_numbers<[1], [0], [0], [1], [0, 0, 1, 1], [], []>} : vector<16x128xf32>, vector<128x256xf32>, vector<16x256xf32> -> vector<16x256xf32>
    %98 = arith.addf %90, %97 : vector<16x256xf32>
    %c1_102 = arith.constant 1 : index
    %c0_103 = arith.constant 0 : index
    %c0_104 = arith.constant 0 : index
    %99 = vector.load %arg8[%c1_102, %c0_103, %c0_104] : memref<8x16x32xf32, #tpu.memory_space<vmem>>, vector<1x16x32xf32>
    %100 = vector.shape_cast %99 : vector<1x16x32xf32> to vector<16x32xf32>
    %c0_105 = arith.constant 0 : index
    %c0_106 = arith.constant 0 : index
    %101 = vector.load %arg13[%c0_105, %c0_106] : memref<32x128xf32, #tpu.memory_space<vmem>>, vector<32x128xf32>
    %cst_107 = arith.constant dense<0.000000e+00> : vector<16x128xf32>
    %102 = tpu.matmul %100, %101, %cst_107 {dimension_numbers = #tpu.dot_dimension_numbers<[1], [0], [0], [1], [0, 0, 1, 1], [], []>} : vector<16x32xf32>, vector<32x128xf32>, vector<16x128xf32> -> vector<16x128xf32>
    %c1_108 = arith.constant 1 : index
    %c0_109 = arith.constant 0 : index
    %c0_110 = arith.constant 0 : index
    %103 = vector.load %arg9[%c1_108, %c0_109, %c0_110] : memref<8x128x256xf32, #tpu.memory_space<vmem>>, vector<1x128x256xf32>
    %104 = vector.shape_cast %103 : vector<1x128x256xf32> to vector<128x256xf32>
    %cst_111 = arith.constant dense<0.000000e+00> : vector<16x256xf32>
    %105 = tpu.matmul %102, %104, %cst_111 {dimension_numbers = #tpu.dot_dimension_numbers<[1], [0], [0], [1], [0, 0, 1, 1], [], []>} : vector<16x128xf32>, vector<128x256xf32>, vector<16x256xf32> -> vector<16x256xf32>
    %106 = arith.addf %98, %105 : vector<16x256xf32>
    %c2_112 = arith.constant 2 : index
    %c0_113 = arith.constant 0 : index
    %c0_114 = arith.constant 0 : index
    %107 = vector.load %arg8[%c2_112, %c0_113, %c0_114] : memref<8x16x32xf32, #tpu.memory_space<vmem>>, vector<1x16x32xf32>
    %108 = vector.shape_cast %107 : vector<1x16x32xf32> to vector<16x32xf32>
    %c0_115 = arith.constant 0 : index
    %c0_116 = arith.constant 0 : index
    %109 = vector.load %arg13[%c0_115, %c0_116] : memref<32x128xf32, #tpu.memory_space<vmem>>, vector<32x128xf32>
    %cst_117 = arith.constant dense<0.000000e+00> : vector<16x128xf32>
    %110 = tpu.matmul %108, %109, %cst_117 {dimension_numbers = #tpu.dot_dimension_numbers<[1], [0], [0], [1], [0, 0, 1, 1], [], []>} : vector<16x32xf32>, vector<32x128xf32>, vector<16x128xf32> -> vector<16x128xf32>
    %c2_118 = arith.constant 2 : index
    %c0_119 = arith.constant 0 : index
    %c0_120 = arith.constant 0 : index
    %111 = vector.load %arg9[%c2_118, %c0_119, %c0_120] : memref<8x128x256xf32, #tpu.memory_space<vmem>>, vector<1x128x256xf32>
    %112 = vector.shape_cast %111 : vector<1x128x256xf32> to vector<128x256xf32>
    %cst_121 = arith.constant dense<0.000000e+00> : vector<16x256xf32>
    %113 = tpu.matmul %110, %112, %cst_121 {dimension_numbers = #tpu.dot_dimension_numbers<[1], [0], [0], [1], [0, 0, 1, 1], [], []>} : vector<16x128xf32>, vector<128x256xf32>, vector<16x256xf32> -> vector<16x256xf32>
    %114 = arith.addf %106, %113 : vector<16x256xf32>
    %c3_122 = arith.constant 3 : index
    %c0_123 = arith.constant 0 : index
    %c0_124 = arith.constant 0 : index
    %115 = vector.load %arg8[%c3_122, %c0_123, %c0_124] : memref<8x16x32xf32, #tpu.memory_space<vmem>>, vector<1x16x32xf32>
    %116 = vector.shape_cast %115 : vector<1x16x32xf32> to vector<16x32xf32>
    %c0_125 = arith.constant 0 : index
    %c0_126 = arith.constant 0 : index
    %117 = vector.load %arg13[%c0_125, %c0_126] : memref<32x128xf32, #tpu.memory_space<vmem>>, vector<32x128xf32>
    %cst_127 = arith.constant dense<0.000000e+00> : vector<16x128xf32>
    %118 = tpu.matmul %116, %117, %cst_127 {dimension_numbers = #tpu.dot_dimension_numbers<[1], [0], [0], [1], [0, 0, 1, 1], [], []>} : vector<16x32xf32>, vector<32x128xf32>, vector<16x128xf32> -> vector<16x128xf32>
    %c3_128 = arith.constant 3 : index
    %c0_129 = arith.constant 0 : index
    %c0_130 = arith.constant 0 : index
    %119 = vector.load %arg9[%c3_128, %c0_129, %c0_130] : memref<8x128x256xf32, #tpu.memory_space<vmem>>, vector<1x128x256xf32>
    %120 = vector.shape_cast %119 : vector<1x128x256xf32> to vector<128x256xf32>
    %cst_131 = arith.constant dense<0.000000e+00> : vector<16x256xf32>
    %121 = tpu.matmul %118, %120, %cst_131 {dimension_numbers = #tpu.dot_dimension_numbers<[1], [0], [0], [1], [0, 0, 1, 1], [], []>} : vector<16x128xf32>, vector<128x256xf32>, vector<16x256xf32> -> vector<16x256xf32>
    %122 = arith.addf %114, %121 : vector<16x256xf32>
    %c4_132 = arith.constant 4 : index
    %c0_133 = arith.constant 0 : index
    %c0_134 = arith.constant 0 : index
    %123 = vector.load %arg8[%c4_132, %c0_133, %c0_134] : memref<8x16x32xf32, #tpu.memory_space<vmem>>, vector<1x16x32xf32>
    %124 = vector.shape_cast %123 : vector<1x16x32xf32> to vector<16x32xf32>
    %c0_135 = arith.constant 0 : index
    %c0_136 = arith.constant 0 : index
    %125 = vector.load %arg13[%c0_135, %c0_136] : memref<32x128xf32, #tpu.memory_space<vmem>>, vector<32x128xf32>
    %cst_137 = arith.constant dense<0.000000e+00> : vector<16x128xf32>
    %126 = tpu.matmul %124, %125, %cst_137 {dimension_numbers = #tpu.dot_dimension_numbers<[1], [0], [0], [1], [0, 0, 1, 1], [], []>} : vector<16x32xf32>, vector<32x128xf32>, vector<16x128xf32> -> vector<16x128xf32>
    %c4_138 = arith.constant 4 : index
    %c0_139 = arith.constant 0 : index
    %c0_140 = arith.constant 0 : index
    %127 = vector.load %arg9[%c4_138, %c0_139, %c0_140] : memref<8x128x256xf32, #tpu.memory_space<vmem>>, vector<1x128x256xf32>
    %128 = vector.shape_cast %127 : vector<1x128x256xf32> to vector<128x256xf32>
    %cst_141 = arith.constant dense<0.000000e+00> : vector<16x256xf32>
    %129 = tpu.matmul %126, %128, %cst_141 {dimension_numbers = #tpu.dot_dimension_numbers<[1], [0], [0], [1], [0, 0, 1, 1], [], []>} : vector<16x128xf32>, vector<128x256xf32>, vector<16x256xf32> -> vector<16x256xf32>
    %130 = arith.addf %122, %129 : vector<16x256xf32>
    %c5_142 = arith.constant 5 : index
    %c0_143 = arith.constant 0 : index
    %c0_144 = arith.constant 0 : index
    %131 = vector.load %arg8[%c5_142, %c0_143, %c0_144] : memref<8x16x32xf32, #tpu.memory_space<vmem>>, vector<1x16x32xf32>
    %132 = vector.shape_cast %131 : vector<1x16x32xf32> to vector<16x32xf32>
    %c0_145 = arith.constant 0 : index
    %c0_146 = arith.constant 0 : index
    %133 = vector.load %arg13[%c0_145, %c0_146] : memref<32x128xf32, #tpu.memory_space<vmem>>, vector<32x128xf32>
    %cst_147 = arith.constant dense<0.000000e+00> : vector<16x128xf32>
    %134 = tpu.matmul %132, %133, %cst_147 {dimension_numbers = #tpu.dot_dimension_numbers<[1], [0], [0], [1], [0, 0, 1, 1], [], []>} : vector<16x32xf32>, vector<32x128xf32>, vector<16x128xf32> -> vector<16x128xf32>
    %c5_148 = arith.constant 5 : index
    %c0_149 = arith.constant 0 : index
    %c0_150 = arith.constant 0 : index
    %135 = vector.load %arg9[%c5_148, %c0_149, %c0_150] : memref<8x128x256xf32, #tpu.memory_space<vmem>>, vector<1x128x256xf32>
    %136 = vector.shape_cast %135 : vector<1x128x256xf32> to vector<128x256xf32>
    %cst_151 = arith.constant dense<0.000000e+00> : vector<16x256xf32>
    %137 = tpu.matmul %134, %136, %cst_151 {dimension_numbers = #tpu.dot_dimension_numbers<[1], [0], [0], [1], [0, 0, 1, 1], [], []>} : vector<16x128xf32>, vector<128x256xf32>, vector<16x256xf32> -> vector<16x256xf32>
    %138 = arith.addf %130, %137 : vector<16x256xf32>
    %c6_152 = arith.constant 6 : index
    %c0_153 = arith.constant 0 : index
    %c0_154 = arith.constant 0 : index
    %139 = vector.load %arg8[%c6_152, %c0_153, %c0_154] : memref<8x16x32xf32, #tpu.memory_space<vmem>>, vector<1x16x32xf32>
    %140 = vector.shape_cast %139 : vector<1x16x32xf32> to vector<16x32xf32>
    %c0_155 = arith.constant 0 : index
    %c0_156 = arith.constant 0 : index
    %141 = vector.load %arg13[%c0_155, %c0_156] : memref<32x128xf32, #tpu.memory_space<vmem>>, vector<32x128xf32>
    %cst_157 = arith.constant dense<0.000000e+00> : vector<16x128xf32>
    %142 = tpu.matmul %140, %141, %cst_157 {dimension_numbers = #tpu.dot_dimension_numbers<[1], [0], [0], [1], [0, 0, 1, 1], [], []>} : vector<16x32xf32>, vector<32x128xf32>, vector<16x128xf32> -> vector<16x128xf32>
    %c6_158 = arith.constant 6 : index
    %c0_159 = arith.constant 0 : index
    %c0_160 = arith.constant 0 : index
    %143 = vector.load %arg9[%c6_158, %c0_159, %c0_160] : memref<8x128x256xf32, #tpu.memory_space<vmem>>, vector<1x128x256xf32>
    %144 = vector.shape_cast %143 : vector<1x128x256xf32> to vector<128x256xf32>
    %cst_161 = arith.constant dense<0.000000e+00> : vector<16x256xf32>
    %145 = tpu.matmul %142, %144, %cst_161 {dimension_numbers = #tpu.dot_dimension_numbers<[1], [0], [0], [1], [0, 0, 1, 1], [], []>} : vector<16x128xf32>, vector<128x256xf32>, vector<16x256xf32> -> vector<16x256xf32>
    %146 = arith.addf %138, %145 : vector<16x256xf32>
    %c7_162 = arith.constant 7 : index
    %c0_163 = arith.constant 0 : index
    %c0_164 = arith.constant 0 : index
    %147 = vector.load %arg8[%c7_162, %c0_163, %c0_164] : memref<8x16x32xf32, #tpu.memory_space<vmem>>, vector<1x16x32xf32>
    %148 = vector.shape_cast %147 : vector<1x16x32xf32> to vector<16x32xf32>
    %c0_165 = arith.constant 0 : index
    %c0_166 = arith.constant 0 : index
    %149 = vector.load %arg13[%c0_165, %c0_166] : memref<32x128xf32, #tpu.memory_space<vmem>>, vector<32x128xf32>
    %cst_167 = arith.constant dense<0.000000e+00> : vector<16x128xf32>
    %150 = tpu.matmul %148, %149, %cst_167 {dimension_numbers = #tpu.dot_dimension_numbers<[1], [0], [0], [1], [0, 0, 1, 1], [], []>} : vector<16x32xf32>, vector<32x128xf32>, vector<16x128xf32> -> vector<16x128xf32>
    %c7_168 = arith.constant 7 : index
    %c0_169 = arith.constant 0 : index
    %c0_170 = arith.constant 0 : index
    %151 = vector.load %arg9[%c7_168, %c0_169, %c0_170] : memref<8x128x256xf32, #tpu.memory_space<vmem>>, vector<1x128x256xf32>
    %152 = vector.shape_cast %151 : vector<1x128x256xf32> to vector<128x256xf32>
    %cst_171 = arith.constant dense<0.000000e+00> : vector<16x256xf32>
    %153 = tpu.matmul %150, %152, %cst_171 {dimension_numbers = #tpu.dot_dimension_numbers<[1], [0], [0], [1], [0, 0, 1, 1], [], []>} : vector<16x128xf32>, vector<128x256xf32>, vector<16x256xf32> -> vector<16x256xf32>
    %154 = arith.addf %146, %153 : vector<16x256xf32>
    %c0_172 = arith.constant 0 : index
    %c0_173 = arith.constant 0 : index
    %155 = vector.load %arg10[%c0_172, %c0_173] : memref<1x256xf32, #tpu.memory_space<vmem>>, vector<1x256xf32>
    %156 = vector.broadcast %155 : vector<1x256xf32> to vector<16x256xf32>
    %157 = arith.addf %154, %156 : vector<16x256xf32>
    %cst_174 = arith.constant 0.000000e+00 : f32
    %158 = vector.broadcast %cst_174 : f32 to vector<16x256xf32>
    %159 = arith.cmpf ogt, %157, %158 : vector<16x256xf32>
    %160 = vector.broadcast %2 : f32 to vector<16x256xf32>
    %161 = arith.mulf %160, %157 : vector<16x256xf32>
    %162 = arith.select %159, %157, %161 : vector<16x256xi1>, vector<16x256xf32>
    %c0_175 = arith.constant 0 : index
    %c0_176 = arith.constant 0 : index
    %c0_177 = arith.constant 0 : index
    %163 = vector.load %arg11[%c0_175, %c0_176, %c0_177] : memref<1x16x256xf32, #tpu.memory_space<vmem>>, vector<1x16x256xf32>
    %164 = vector.shape_cast %163 : vector<1x16x256xf32> to vector<16x256xf32>
    %165 = vector.shape_cast %162 : vector<16x256xf32> to vector<1x16x256xf32>
    tpu.vector_store %arg11[%c0_175, %c0_176, %c0_177], %165 {strides = array<i32>} : memref<1x16x256xf32, #tpu.memory_space<vmem>>, vector<1x16x256xf32>,
    return
  }
  func.func @transform_0(%arg0: i32) -> i32 {
    %c0_i32 = arith.constant 0 : i32
    %c0_i32_0 = arith.constant 0 : i32
    return %c0_i32 : i32
  }
  func.func @transform_1(%arg0: i32) -> (i32, i32, i32) {
    %c0_i32 = arith.constant 0 : i32
    %c0_i32_0 = arith.constant 0 : i32
    %c0_i32_1 = arith.constant 0 : i32
    return %arg0, %c0_i32, %c0_i32_0 : i32, i32, i32
  }
  func.func @transform_2(%arg0: i32) -> (i32, i32) {
    %c0_i32 = arith.constant 0 : i32
    %c0_i32_0 = arith.constant 0 : i32
    %c0_i32_1 = arith.constant 0 : i32
    return %c0_i32, %c0_i32_0 : i32, i32
  }
  func.func @transform_3(%arg0: i32) -> (i32, i32) {
    %c0_i32 = arith.constant 0 : i32
    %c0_i32_0 = arith.constant 0 : i32
    %c0_i32_1 = arith.constant 0 : i32
    return %c0_i32, %c0_i32_0 : i32, i32
  }
  func.func @transform_4(%arg0: i32) -> (i32, i32, i32) {
    %c0_i32 = arith.constant 0 : i32
    %c0_i32_0 = arith.constant 0 : i32
    %c0_i32_1 = arith.constant 0 : i32
    %c0_i32_2 = arith.constant 0 : i32
    return %c0_i32, %c0_i32_0, %c0_i32_1 : i32, i32, i32
  }
  func.func @transform_5(%arg0: i32) -> (i32, i32, i32) {
    %c0_i32 = arith.constant 0 : i32
    %c0_i32_0 = arith.constant 0 : i32
    %c0_i32_1 = arith.constant 0 : i32
    %c0_i32_2 = arith.constant 0 : i32
    return %c0_i32, %c0_i32_0, %c0_i32_1 : i32, i32, i32
  }
  func.func @transform_6(%arg0: i32) -> (i32, i32) {
    %c0_i32 = arith.constant 0 : i32
    %c0_i32_0 = arith.constant 0 : i32
    %c0_i32_1 = arith.constant 0 : i32
    return %c0_i32, %c0_i32_0 : i32, i32
  }
  func.func @transform_7(%arg0: i32) -> (i32, i32, i32) {
    %c0_i32 = arith.constant 0 : i32
    %c0_i32_0 = arith.constant 0 : i32
    %c0_i32_1 = arith.constant 0 : i32
    %c0_i32_2 = arith.constant 0 : i32
    return %c0_i32, %c0_i32_0, %c0_i32_1 : i32, i32, i32
  }
  func.func @transform_8(%arg0: i32) -> (i32, i32, i32) {
    %c0_i32 = arith.constant 0 : i32
    %c0_i32_0 = arith.constant 0 : i32
    %c0_i32_1 = arith.constant 0 : i32
    %c0_i32_2 = arith.constant 0 : i32
    return %c0_i32, %c0_i32_0, %c0_i32_1 : i32, i32, i32
  }
  func.func @transform_9(%arg0: i32) -> (i32, i32) {
    %c0_i32 = arith.constant 0 : i32
    %c0_i32_0 = arith.constant 0 : i32
    %c0_i32_1 = arith.constant 0 : i32
    return %c0_i32, %c0_i32_0 : i32, i32
  }
  func.func @transform_10(%arg0: i32) -> (i32, i32, i32) {
    %c0_i32 = arith.constant 0 : i32
    %c0_i32_0 = arith.constant 0 : i32
    %c0_i32_1 = arith.constant 0 : i32
    return %arg0, %c0_i32, %c0_i32_0 : i32, i32, i32
  }
}

</mosaic_0001>

<llo_original>
// kernel: encoder_forward.1
$region0: #{encoder_forward.1}
  #allocation0 [shape = 'u32[]', space=smem, size = 0x4, offset = 0x4, fixed_abs, tag = 'smem constant byte address 0x4 - core index']
  #allocation1 [shape = 'u32[144,128]{1,0:T(1,128)}', space=vmem, size = 0x12000, scoped, tag = 'internal scratch']
  #allocation2 [shape = 'f32[64,128]{1,0:T(8,128)}', space=vmem, size = 0x8000, scoped, tag = 'scratch operand']
  #allocation3 [shape = 'f32[32,128]{1,0:T(8,128)}', space=vmem, size = 0x4000, scoped, tag = 'scratch operand']
  %s0 = inlined_call_operand.vmem [shape: f32[3], index: 0, kind: input, shape index: {}]
  %s1 = inlined_call_operand.vmem [shape: f32[2,64,16], index: 1, kind: input, shape index: {}]
  %s2 = inlined_call_operand.vmem [shape: f32[16,128], index: 2, kind: input, shape index: {}]
  %s3 = inlined_call_operand.vmem [shape: f32[1,128], index: 3, kind: input, shape index: {}]
  %s4 = inlined_call_operand.vmem [shape: f32[8,32,64], index: 4, kind: input, shape index: {}]
  %s5 = inlined_call_operand.vmem [shape: f32[8,128,128], index: 5, kind: input, shape index: {}]
  %s6 = inlined_call_operand.vmem [shape: f32[1,128], index: 6, kind: input, shape index: {}]
  %s7 = inlined_call_operand.vmem [shape: f32[8,16,32], index: 7, kind: input, shape index: {}]
  %s8 = inlined_call_operand.vmem [shape: f32[8,128,256], index: 8, kind: input, shape index: {}]
  %s9 = inlined_call_operand.vmem [shape: f32[1,256], index: 9, kind: input, shape index: {}]
  %s10 = inlined_call_operand.vmem [shape: f32[2,16,256], index: 10, kind: output, shape index: {}]
  %s11 = sld [smem:[#allocation0]]
  $region77: #{encoder_forward.1} parent=0
    _
  %s13 = ssub.s32 1, %s11
  %s14 = scalar_select 0, %s13, %s11
  $region1: #{encoder_forward.1} parent=0
    #allocation4 [shape = 'u8[512]{0}', space=smem, size = 0x200, scoped, tag = 'input window, operand 0, single buffered']
    #allocation5 [shape = 's32[2]{0}', space=sflag, size = 0x8, scoped, tag = 'scoped memory for encoder_forward.1']
    %15 = vsyncpa [#allocation5], 0
    loop: start=0, step=1, limit=4
    $region2: #{encoder_forward.1} parent=1 // loop_pre_header
      _
    $region3: #{encoder_forward.1} parent=1 // loop_header
      %s17 = sphi 0, %s21
      %p18 = scmp.ge.s32.totalorder %s17, 4
      %s25 = sphi 0, %s25
      %s27 = sphi 0, %s25
      %s28 = sphi 0, %s27
      %s42 = sphi 0, %s28
      %s48 = sphi 0, %s50
      %s51 = sphi 0, %s48
      %s52 = sphi 0, %s51
      %s68 = sphi 0, %s52
      %s72 = sphi 0, %s72
      %s74 = sphi 0, %s72
      %s75 = sphi 0, %s74
      %s89 = sphi 0, %s75
      %s93 = sphi 0, %s93
      %s95 = sphi 0, %s93
      %s96 = sphi 0, %s95
      %s110 = sphi 0, %s96
      %s114 = sphi 0, %s114
      %s116 = sphi 0, %s114
      %s117 = sphi 0, %s116
      %s131 = sphi 0, %s117
      %s135 = sphi 0, %s135
      %s137 = sphi 0, %s135
      %s138 = sphi 0, %s137
      %s152 = sphi 0, %s138
      %s156 = sphi 0, %s156
      %s158 = sphi 0, %s156
      %s159 = sphi 0, %s158
      %s173 = sphi 0, %s159
      %s177 = sphi 0, %s177
      %s179 = sphi 0, %s177
      %s180 = sphi 0, %s179
      %s194 = sphi 0, %s180
      %s198 = sphi 0, %s198
      %s200 = sphi 0, %s198
      %s201 = sphi 0, %s200
      %s215 = sphi 0, %s201
      %s219 = sphi 0, %s219
      %s221 = sphi 0, %s219
      %s222 = sphi 0, %s221
      %s236 = sphi 0, %s222
      %s242 = sphi 0, %s244
      %s245 = sphi 0, %s242
      %s246 = sphi 0, %s245
      %s262 = sphi 0, %s246
    $region4: #{encoder_forward.1} parent=1 // loop_header_branch
      %20 = sbr.rel (%p18) target = $region8
    $region5: #{encoder_forward.1} parent=1 // loop_body
      %s22 = ssub.s32 %s17, 1
      %s23 = ssub.s32 %s17, 2
      %s24 = sadd.s32 %s17, 1
      %s26 = sadd.s32 %s25, 1
      %p29 = scmp.eq.s32.totalorder %s17, 1
      %p30 = scmp.ne.s32.totalorder %s25, %s27
      %p31 = scmp.eq.s32.totalorder %s17, 0
      %p32 = por %p30, %p31
      %p33 = scmp.ne.s32.totalorder %s25, %s27
      %p34 = scmp.eq.s32.totalorder %s22, 1
      %p35 = por %p33, %p34
      %p36 = scmp.ne.s32.totalorder %s27, %s28
      %p37 = scmp.eq.s32.totalorder %s22, 0
      %p38 = por %p36, %p37
      %p39 = scmp.ne.s32.totalorder %s27, %s28
      %p40 = scmp.eq.s32.totalorder %s23, 1
      %p41 = por %p39, %p40
      %p43 = scmp.ne.s32.totalorder %s28, %s42
      %p44 = scmp.eq.s32.totalorder %s23, 0
      %p45 = por %p43, %p44
      %s46 = ssub.s32 %s17, %s24
      %p47 = scmp.eq.s32.totalorder %s46, 0
      %s49 = sadd.s32 %s48, 1
      %s50 = scalar_select %p47, %s48, %s49
      %p53 = pneg %p47
      %p54 = scmp.eq.s32.totalorder %s17, 1
      %p55 = por %p53, %p54
      %p56 = scmp.ne.s32.totalorder %s48, %s51
      %p57 = scmp.eq.s32.totalorder %s17, 0
      %p58 = por %p56, %p57
      %p59 = scmp.ne.s32.totalorder %s48, %s51
      %p60 = scmp.eq.s32.totalorder %s22, 1
      %p61 = por %p59, %p60
      %p62 = scmp.ne.s32.totalorder %s51, %s52
      %p63 = scmp.eq.s32.totalorder %s22, 0
      %p64 = por %p62, %p63
      %p65 = scmp.ne.s32.totalorder %s51, %s52
      %p66 = scmp.eq.s32.totalorder %s23, 1
      %p67 = por %p65, %p66
      %p69 = scmp.ne.s32.totalorder %s52, %s68
      %p70 = scmp.eq.s32.totalorder %s23, 0
      %p71 = por %p69, %p70
      %s73 = sadd.s32 %s72, 1
      %p76 = scmp.eq.s32.totalorder %s17, 1
      %p77 = scmp.ne.s32.totalorder %s72, %s74
      %p78 = scmp.eq.s32.totalorder %s17, 0
      %p79 = por %p77, %p78
      %p80 = scmp.ne.s32.totalorder %s72, %s74
      %p81 = scmp.eq.s32.totalorder %s22, 1
      %p82 = por %p80, %p81
      %p83 = scmp.ne.s32.totalorder %s74, %s75
      %p84 = scmp.eq.s32.totalorder %s22, 0
      %p85 = por %p83, %p84
      %p86 = scmp.ne.s32.totalorder %s74, %s75
      %p87 = scmp.eq.s32.totalorder %s23, 1
      %p88 = por %p86, %p87
      %p90 = scmp.ne.s32.totalorder %s75, %s89
      %p91 = scmp.eq.s32.totalorder %s23, 0
      %p92 = por %p90, %p91
      %s94 = sadd.s32 %s93, 1
      %p97 = scmp.eq.s32.totalorder %s17, 1
      %p98 = scmp.ne.s32.totalorder %s93, %s95
      %p99 = scmp.eq.s32.totalorder %s17, 0
      %p100 = por %p98, %p99
      %p101 = scmp.ne.s32.totalorder %s93, %s95
      %p102 = scmp.eq.s32.totalorder %s22, 1
      %p103 = por %p101, %p102
      %p104 = scmp.ne.s32.totalorder %s95, %s96
      %p105 = scmp.eq.s32.totalorder %s22, 0
      %p106 = por %p104, %p105
      %p107 = scmp.ne.s32.totalorder %s95, %s96
      %p108 = scmp.eq.s32.totalorder %s23, 1
      %p109 = por %p107, %p108
      %p111 = scmp.ne.s32.totalorder %s96, %s110
      %p112 = scmp.eq.s32.totalorder %s23, 0
      %p113 = por %p111, %p112
      %s115 = sadd.s32 %s114, 1
      %p118 = scmp.eq.s32.totalorder %s17, 1
      %p119 = scmp.ne.s32.totalorder %s114, %s116
      %p120 = scmp.eq.s32.totalorder %s17, 0
      %p121 = por %p119, %p120
      %p122 = scmp.ne.s32.totalorder %s114, %s116
      %p123 = scmp.eq.s32.totalorder %s22, 1
      %p124 = por %p122, %p123
      %p125 = scmp.ne.s32.totalorder %s116, %s117
      %p126 = scmp.eq.s32.totalorder %s22, 0
      %p127 = por %p125, %p126
      %p128 = scmp.ne.s32.totalorder %s116, %s117
      %p129 = scmp.eq.s32.totalorder %s23, 1
      %p130 = por %p128, %p129
      %p132 = scmp.ne.s32.totalorder %s117, %s131
      %p133 = scmp.eq.s32.totalorder %s23, 0
      %p134 = por %p132, %p133
      %s136 = sadd.s32 %s135, 1
      %p139 = scmp.eq.s32.totalorder %s17, 1
      %p140 = scmp.ne.s32.totalorder %s135, %s137
      %p141 = scmp.eq.s32.totalorder %s17, 0
      %p142 = por %p140, %p141
      %p143 = scmp.ne.s32.totalorder %s135, %s137
      %p144 = scmp.eq.s32.totalorder %s22, 1
      %p145 = por %p143, %p144
      %p146 = scmp.ne.s32.totalorder %s137, %s138
      %p147 = scmp.eq.s32.totalorder %s22, 0
      %p148 = por %p146, %p147
      %p149 = scmp.ne.s32.totalorder %s137, %s138
      %p150 = scmp.eq.s32.totalorder %s23, 1
      %p151 = por %p149, %p150
      %p153 = scmp.ne.s32.totalorder %s138, %s152
      %p154 = scmp.eq.s32.totalorder %s23, 0
      %p155 = por %p153, %p154
      %s157 = sadd.s32 %s156, 1
      %p160 = scmp.eq.s32.totalorder %s17, 1
      %p161 = scmp.ne.s32.totalorder %s156, %s158
      %p162 = scmp.eq.s32.totalorder %s17, 0
      %p163 = por %p161, %p162
      %p164 = scmp.ne.s32.totalorder %s156, %s158
      %p165 = scmp.eq.s32.totalorder %s22, 1
      %p166 = por %p164, %p165
      %p167 = scmp.ne.s32.totalorder %s158, %s159
      %p168 = scmp.eq.s32.totalorder %s22, 0
      %p169 = por %p167, %p168
      %p170 = scmp.ne.s32.totalorder %s158, %s159
      %p171 = scmp.eq.s32.totalorder %s23, 1
      %p172 = por %p170, %p171
      %p174 = scmp.ne.s32.totalorder %s159, %s173
      %p175 = scmp.eq.s32.totalorder %s23, 0
      %p176 = por %p174, %p175
      %s178 = sadd.s32 %s177, 1
      %p181 = scmp.eq.s32.totalorder %s17, 1
      %p182 = scmp.ne.s32.totalorder %s177, %s179
      %p183 = scmp.eq.s32.totalorder %s17, 0
      %p184 = por %p182, %p183
      %p185 = scmp.ne.s32.totalorder %s177, %s179
      %p186 = scmp.eq.s32.totalorder %s22, 1
      %p187 = por %p185, %p186
      %p188 = scmp.ne.s32.totalorder %s179, %s180
      %p189 = scmp.eq.s32.totalorder %s22, 0
      %p190 = por %p188, %p189
      %p191 = scmp.ne.s32.totalorder %s179, %s180
      %p192 = scmp.eq.s32.totalorder %s23, 1
      %p193 = por %p191, %p192
      %p195 = scmp.ne.s32.totalorder %s180, %s194
      %p196 = scmp.eq.s32.totalorder %s23, 0
      %p197 = por %p195, %p196
      %s199 = sadd.s32 %s198, 1
      %p202 = scmp.eq.s32.totalorder %s17, 1
      %p203 = scmp.ne.s32.totalorder %s198, %s200
      %p204 = scmp.eq.s32.totalorder %s17, 0
      %p205 = por %p203, %p204
      %p206 = scmp.ne.s32.totalorder %s198, %s200
      %p207 = scmp.eq.s32.totalorder %s22, 1
      %p208 = por %p206, %p207
      %p209 = scmp.ne.s32.totalorder %s200, %s201
      %p210 = scmp.eq.s32.totalorder %s22, 0
      %p211 = por %p209, %p210
      %p212 = scmp.ne.s32.totalorder %s200, %s201
      %p213 = scmp.eq.s32.totalorder %s23, 1
      %p214 = por %p212, %p213
      %p216 = scmp.ne.s32.totalorder %s201, %s215
      %p217 = scmp.eq.s32.totalorder %s23, 0
      %p218 = por %p216, %p217
      %s220 = sadd.s32 %s219, 1
      %p223 = scmp.eq.s32.totalorder %s17, 1
      %p224 = scmp.ne.s32.totalorder %s219, %s221
      %p225 = scmp.eq.s32.totalorder %s17, 0
      %p226 = por %p224, %p225
      %p227 = scmp.ne.s32.totalorder %s219, %s221
      %p228 = scmp.eq.s32.totalorder %s22, 1
      %p229 = por %p227, %p228
      %p230 = scmp.ne.s32.totalorder %s221, %s222
      %p231 = scmp.eq.s32.totalorder %s22, 0
      %p232 = por %p230, %p231
      %p233 = scmp.ne.s32.totalorder %s221, %s222
      %p234 = scmp.eq.s32.totalorder %s23, 1
      %p235 = por %p233, %p234
      %p237 = scmp.ne.s32.totalorder %s222, %s236
      %p238 = scmp.eq.s32.totalorder %s23, 0
      %p239 = por %p237, %p238
      %s240 = ssub.s32 %s17, %s24
      %p241 = scmp.eq.s32.totalorder %s240, 0
      %s243 = sadd.s32 %s242, 1
      %s244 = scalar_select %p241, %s242, %s243
      %p247 = pneg %p241
      %p248 = scmp.eq.s32.totalorder %s17, 1
      %p249 = por %p247, %p248
      %p250 = scmp.ne.s32.totalorder %s242, %s245
      %p251 = scmp.eq.s32.totalorder %s17, 0
      %p252 = por %p250, %p251
      %p253 = scmp.ne.s32.totalorder %s242, %s245
      %p254 = scmp.eq.s32.totalorder %s22, 1
      %p255 = por %p253, %p254
      %p256 = scmp.ne.s32.totalorder %s245, %s246
      %p257 = scmp.eq.s32.totalorder %s22, 0
      %p258 = por %p256, %p257
      %p259 = scmp.ne.s32.totalorder %s245, %s246
      %p260 = scmp.eq.s32.totalorder %s23, 1
      %p261 = por %p259, %p260
      %p263 = scmp.ne.s32.totalorder %s246, %s262
      %p264 = scmp.eq.s32.totalorder %s23, 0
      %p265 = por %p263, %p264
      %p266 = scmp.le.s32.totalorder 1, %s17
      %p267 = scmp.lt.s32.totalorder %s17, 3
      %p268 = pnand %p266, %p267
      %p269 = pneg %p268
      // Predicated region
      $region9: #{encoder_forward.1} parent=5 // pred_check
        _
      $region10: #{encoder_forward.1} parent=5 // pred_check_branch
        %271 = sbr.rel (%p268) target = $region12
      $region11: #{encoder_forward.1} parent=5 // pred_region
        %s272 = ssub.s32 %s17, 1
        // Predicated region
        $region13: #{encoder_forward.1} parent=11 // pred_check
          %p273 = pneg %p38
        $region14: #{encoder_forward.1} parent=11 // pred_check_branch
          %275 = sbr.rel (%p273) target = $region16
        $region15: #{encoder_forward.1} parent=11 // pred_region
          %s277 = ssub.s32 16, 16
          %278 = vsyncadd [#allocation5], %s277
          %s280 = sshll.u32 %s0, 4
          %s281 = int_to_ptr.vmem [resolvable:$true] %s280
          %283 = dma.vmem_to_smem %s281, 16, [#allocation4], [#allocation5]
        $region16: #{encoder_forward.1} parent=11 // pred_fallthru
          _
        // Predicated region
        $region17: #{encoder_forward.1} parent=11 // pred_check
          %p284 = pneg %p85
        $region18: #{encoder_forward.1} parent=11 // pred_check_branch
          %286 = sbr.rel (%p284) target = $region20
        $region19: #{encoder_forward.1} parent=11 // pred_region
          _
        $region20: #{encoder_forward.1} parent=11 // pred_fallthru
          _
        // Predicated region
        $region21: #{encoder_forward.1} parent=11 // pred_check
          %p287 = pneg %p106
        $region22: #{encoder_forward.1} parent=11 // pred_check_branch
          %289 = sbr.rel (%p287) target = $region24
        $region23: #{encoder_forward.1} parent=11 // pred_region
          _
        $region24: #{encoder_forward.1} parent=11 // pred_fallthru
          _
        // Predicated region
        $region25: #{encoder_forward.1} parent=11 // pred_check
          %p290 = pneg %p127
        $region26: #{encoder_forward.1} parent=11 // pred_check_branch
          %292 = sbr.rel (%p290) target = $region28
        $region27: #{encoder_forward.1} parent=11 // pred_region
          _
        $region28: #{encoder_forward.1} parent=11 // pred_fallthru
          _
        // Predicated region
        $region29: #{encoder_forward.1} parent=11 // pred_check
          %p293 = pneg %p148
        $region30: #{encoder_forward.1} parent=11 // pred_check_branch
          %295 = sbr.rel (%p293) target = $region32
        $region31: #{encoder_forward.1} parent=11 // pred_region
          _
        $region32: #{encoder_forward.1} parent=11 // pred_fallthru
          _
        // Predicated region
        $region33: #{encoder_forward.1} parent=11 // pred_check
          %p296 = pneg %p169
        $region34: #{encoder_forward.1} parent=11 // pred_check_branch
          %298 = sbr.rel (%p296) target = $region36
        $region35: #{encoder_forward.1} parent=11 // pred_region
          _
        $region36: #{encoder_forward.1} parent=11 // pred_fallthru
          _
        // Predicated region
        $region37: #{encoder_forward.1} parent=11 // pred_check
          %p299 = pneg %p190
        $region38: #{encoder_forward.1} parent=11 // pred_check_branch
          %301 = sbr.rel (%p299) target = $region40
        $region39: #{encoder_forward.1} parent=11 // pred_region
          _
        $region40: #{encoder_forward.1} parent=11 // pred_fallthru
          _
        // Predicated region
        $region41: #{encoder_forward.1} parent=11 // pred_check
          %p302 = pneg %p211
        $region42: #{encoder_forward.1} parent=11 // pred_check_branch
          %304 = sbr.rel (%p302) target = $region44
        $region43: #{encoder_forward.1} parent=11 // pred_region
          _
        $region44: #{encoder_forward.1} parent=11 // pred_fallthru
          _
        // Predicated region
        $region45: #{encoder_forward.1} parent=11 // pred_check
          %p305 = pneg %p232
        $region46: #{encoder_forward.1} parent=11 // pred_check_branch
          %307 = sbr.rel (%p305) target = $region48
        $region47: #{encoder_forward.1} parent=11 // pred_region
          _
        $region48: #{encoder_forward.1} parent=11 // pred_fallthru
          _
      $region12: #{encoder_forward.1} parent=5 // pred_fallthru
        _
      %p308 = scmp.lt.s32.totalorder %s17, 2
      // Predicated region
      $region49: #{encoder_forward.1} parent=5 // pred_check
        %p309 = pneg %p308
      $region50: #{encoder_forward.1} parent=5 // pred_check_branch
        %311 = sbr.rel (%p309) target = $region52
      $region51: #{encoder_forward.1} parent=5 // pred_region
        // Predicated region
        $region53: #{encoder_forward.1} parent=51 // pred_check
          %p312 = pneg %p58
        $region54: #{encoder_forward.1} parent=51 // pred_check_branch
          %314 = sbr.rel (%p312) target = $region56
        $region55: #{encoder_forward.1} parent=51 // pred_region
          %p315 = scmp.lt.s32.totalorder %s17, 1
          %s316 = scalar_select %p315, %s17, 1
          %s317 = smul.addr %s316, 8
          %s318 = smul.addr %s317, 8
          %s319 = scalar_lea.vmem %s1, %s318
        $region56: #{encoder_forward.1} parent=51 // pred_fallthru
          _
      $region52: #{encoder_forward.1} parent=5 // pred_fallthru
        _
      %p320 = scmp.le.s32.totalorder 1, %s17
      %p321 = scmp.lt.s32.totalorder %s17, 3
      %p322 = pnand %p320, %p321
      %p323 = pneg %p322
      // Predicated region
      $region57: #{encoder_forward.1} parent=5 // pred_check
        _
      $region58: #{encoder_forward.1} parent=5 // pred_check_branch
        %325 = sbr.rel (%p322) target = $region60
      $region59: #{encoder_forward.1} parent=5 // pred_region
        %s326 = ssub.s32 %s17, 1
        // Predicated region
        $region61: #{encoder_forward.1} parent=59 // pred_check
          %p327 = pneg %p38
        $region62: #{encoder_forward.1} parent=59 // pred_check_branch
          %329 = sbr.rel (%p327) target = $region64
        $region63: #{encoder_forward.1} parent=59 // pred_region
          %330 = dma.done [#allocation5], 16
        $region64: #{encoder_forward.1} parent=59 // pred_fallthru
          _
        %331 = sfence
        %p332 = pneg %p38
        %p333 = pneg %p35
        %p334 = scmp.lt.s32.totalorder %s22, 1
        %s335 = scalar_select %p334, %s22, 1
        %s336 = smul.addr %s335, 8
        %s337 = smul.addr %s336, 8
        %s338 = scalar_lea.vmem %s1, %s337
        %p339 = pneg %p64
        %p340 = pneg %p61
        %p341 = pneg %p85
        %p342 = pneg %p82
        %p343 = pneg %p106
        %p344 = pneg %p103
        %p345 = pneg %p127
        %p346 = pneg %p124
        %p347 = pneg %p148
        %p348 = pneg %p145
        %p349 = pneg %p169
        %p350 = pneg %p166
        %p351 = pneg %p190
        %p352 = pneg %p187
        %p353 = pneg %p211
        %p354 = pneg %p208
        %p355 = pneg %p232
        %p356 = pneg %p229
        %p357 = pneg %p258
        %p358 = pneg %p255
        %p359 = scmp.lt.s32.totalorder %s22, 1
        %s360 = scalar_select %p359, %s22, 1
        %s361 = smul.addr %s360, 4
        %s362 = smul.addr %s361, 8
        %s363 = scalar_lea.vmem %s10, %s362
        %p364 = scmp.lt.s32.totalorder %s22, 1
        %s365 = scalar_select %p364, %s22, 1
        %s366 = smul.addr %s365, 8
        %s367 = smul.addr %s366, 8
        %s368 = scalar_lea.vmem %s1, %s367
        %p369 = scmp.lt.s32.totalorder %s22, 1
        %s370 = scalar_select %p369, %s22, 1
        %s371 = smul.addr %s370, 4
        %s372 = smul.addr %s371, 8
        %s373 = scalar_lea.vmem %s10, %s372
        %s374 = sld [smem:[#allocation4]]
        %s375 = sld [smem:[#allocation4 + $0x1]]
        %s376 = sld [smem:[#allocation4 + $0x2]]
        %v377 = vld [vmem:[%s368] sm:$0xff]
        %v378 = vld [vmem:[%s368 + $0x8] sm:$0xff]
        %v379 = vld [vmem:[%s368 + $0x10] sm:$0xff]
        %v380 = vld [vmem:[%s368 + $0x18] sm:$0xff]
        %v381 = vld [vmem:[%s368 + $0x20] sm:$0xff]
        %v382 = vld [vmem:[%s368 + $0x28] sm:$0xff]
        %v383 = vld [vmem:[%s368 + $0x30] sm:$0xff]
        %v384 = vld [vmem:[%s368 + $0x38] sm:$0xff]
        %v385 = vld [vmem:[%s2] sm:$0xff]
        %v386 = vld [vmem:[%s2 + $0x8] sm:$0xff]
        %v387 = vld [vmem:[%s3] sm:$0x1]
        %v389 = vlaneseq
        %v390 = vshrl.u32 %v389, 7
        %v391 = vsub.s32 0, %v390
        %v392 = vrot.slane %v387, %v391
        %vm394 = vcmask 130048
        %v396 = vsel %vm394, %v377, 0
        %v399 = vsel %vm394, %v378, 0
        %v402 = vsel %vm394, %v379, 0
        %v405 = vsel %vm394, %v380, 0
        %v408 = vsel %vm394, %v381, 0
        %v411 = vsel %vm394, %v382, 0
        %v414 = vsel %vm394, %v383, 0
        %v417 = vsel %vm394, %v384, 0
        %419 = vmatprep.subr.mxu0 0.0
        %420 = vmatpush1.msra.mxu0 %v385
        %421 = vmatprep.subr.mxu0 0.0
        %422 = vmatpush1.msra.mxu0 %v386
        %423 = vmatprep.subr.mxu0 0.0
        %424 = vmatpush1.msra.mxu0 0.0
        %425 = vmatprep.subr.mxu0 0.0
        %426 = vmatpush1.msra.mxu0 0.0
        %427 = vmatprep.subr.mxu0 0.0
        %428 = vmatpush1.msra.mxu0 0.0
        %429 = vmatprep.subr.mxu0 0.0
        %430 = vmatpush1.msra.mxu0 0.0
        %431 = vmatprep.subr.mxu0 0.0
        %432 = vmatpush1.msra.mxu0 0.0
        %433 = vmatprep.subr.mxu0 0.0
        %434 = vmatpush1.msra.mxu0 0.0
        %435 = vmatprep.subr.mxu0 0.0
        %436 = vmatpush1.msra.mxu0 0.0
        %437 = vmatprep.subr.mxu0 0.0
        %438 = vmatpush1.msra.mxu0 0.0
        %439 = vmatprep.subr.mxu0 0.0
        %440 = vmatpush1.msra.mxu0 0.0
        %441 = vmatprep.subr.mxu0 0.0
        %442 = vmatpush1.msra.mxu0 0.0
        %443 = vmatprep.subr.mxu0 0.0
        %444 = vmatpush1.msra.mxu0 0.0
        %445 = vmatprep.subr.mxu0 0.0
        %446 = vmatpush1.msra.mxu0 0.0
        %447 = vmatprep.subr.mxu0 0.0
        %448 = vmatpush1.msra.mxu0 0.0
        %449 = vmatprep.subr.mxu0 0.0
        %450 = vmatpush1.msra.mxu0 0.0
        %451 = vmatprep.subr.mxu0 0.0
        %452 = vmatpush1.msra.mxu0 0.0
        %453 = vmatprep.subr.mxu0 0.0
        %454 = vmatpush1.msra.mxu0 0.0
        %455 = vmatprep.subr.mxu0 0.0
        %456 = vmatpush1.msra.mxu0 0.0
        %457 = vmatprep.subr.mxu0 0.0
        %458 = vmatpush1.msra.mxu0 0.0
        %459 = vmatprep.subr.mxu0 0.0
        %460 = vmatpush1.msra.mxu0 0.0
        %461 = vmatprep.subr.mxu0 0.0
        %462 = vmatpush1.msra.mxu0 0.0
        %463 = vmatprep.subr.mxu0 0.0
        %464 = vmatpush1.msra.mxu0 0.0
        %465 = vmatprep.subr.mxu0 0.0
        %466 = vmatpush1.msra.mxu0 0.0
        %467 = vmatprep.subr.mxu0 0.0
        %468 = vmatpush1.msra.mxu0 0.0
        %469 = vmatprep.subr.mxu0 0.0
        %470 = vmatpush1.msra.mxu0 0.0
        %471 = vmatprep.subr.mxu0 0.0
        %472 = vmatpush1.msra.mxu0 0.0
        %473 = vmatprep.subr.mxu0 0.0
        %474 = vmatpush1.msra.mxu0 0.0
        %475 = vmatprep.subr.mxu0 0.0
        %476 = vmatpush1.msra.mxu0 0.0
        %477 = vmatprep.subr.mxu0 0.0
        %478 = vmatpush1.msra.mxu0 0.0
        %479 = vmatprep.subr.mxu0 0.0
        %480 = vmatpush1.msra.mxu0 0.0
        %481 = vmatprep.subr.mxu0 0.0
        %482 = vmatpush1.msra.mxu0 0.0
        %483 = vmatprep.mubr.f32.mxu0 0.0
        %484 = vmatmul.mubr.f32.gmra.mrb[0].mxu0 %v396
        %v485 = vpop.f32.mrb[0].mxu0
        %v486 = vadd.f32 %v392, %v485
        %v487 = vpop.f32.mrb[0].mxu0
        %488 = vmatprep.mubr.f32.mxu0 0.0
        %489 = vmatmul.mubr.f32.gmra.mrb[0].mxu0 %v399
        %v490 = vpop.f32.mrb[0].mxu0
        %v491 = vadd.f32 %v392, %v490
        %v492 = vpop.f32.mrb[0].mxu0
        %493 = vmatprep.mubr.f32.mxu0 0.0
        %494 = vmatmul.mubr.f32.gmra.mrb[0].mxu0 %v402
        %v495 = vpop.f32.mrb[0].mxu0
        %v496 = vadd.f32 %v392, %v495
        %v497 = vpop.f32.mrb[0].mxu0
        %498 = vmatprep.mubr.f32.mxu0 0.0
        %499 = vmatmul.mubr.f32.gmra.mrb[0].mxu0 %v405
        %v500 = vpop.f32.mrb[0].mxu0
        %v501 = vadd.f32 %v392, %v500
        %v502 = vpop.f32.mrb[0].mxu0
        %503 = vmatprep.mubr.f32.mxu0 0.0
        %504 = vmatmul.mubr.f32.gmra.mrb[0].mxu0 %v408
        %v505 = vpop.f32.mrb[0].mxu0
        %v506 = vadd.f32 %v392, %v505
        %v507 = vpop.f32.mrb[0].mxu0
        %508 = vmatprep.mubr.f32.mxu0 0.0
        %509 = vmatmul.mubr.f32.gmra.mrb[0].mxu0 %v411
        %v510 = vpop.f32.mrb[0].mxu0
        %v511 = vadd.f32 %v392, %v510
        %v512 = vpop.f32.mrb[0].mxu0
        %513 = vmatprep.mubr.f32.mxu0 0.0
        %514 = vmatmul.mubr.f32.gmra.mrb[0].mxu0 %v414
        %v515 = vpop.f32.mrb[0].mxu0
        %v516 = vadd.f32 %v392, %v515
        %v517 = vpop.f32.mrb[0].mxu0
        %518 = vmatprep.mubr.f32.mxu0 0.0
        %519 = vmatmul.mubr.f32.gmra.mrb[0].mxu0 %v417
        %v520 = vpop.f32.mrb[0].mxu0
        %v521 = vadd.f32 %v392, %v520
        %v522 = vpop.f32.mrb[0].mxu0
        %523 = vdwg.mxu0
        %vm524 = vcmp.gt.f32.partialorder %v486, 0.0
        %vm525 = vcmp.gt.f32.partialorder %v491, 0.0
        %vm526 = vcmp.gt.f32.partialorder %v496, 0.0
        %vm527 = vcmp.gt.f32.partialorder %v501, 0.0
        %vm528 = vcmp.gt.f32.partialorder %v506, 0.0
        %vm529 = vcmp.gt.f32.partialorder %v511, 0.0
        %vm530 = vcmp.gt.f32.partialorder %v516, 0.0
        %vm531 = vcmp.gt.f32.partialorder %v521, 0.0
        %v532 = vstv %s374
        %v533 = vmul.f32 %v532, %v486
        %v534 = vmul.f32 %v532, %v491
        %v535 = vmul.f32 %v532, %v496
        %v536 = vmul.f32 %v532, %v501
        %v537 = vmul.f32 %v532, %v506
        %v538 = vmul.f32 %v532, %v511
        %v539 = vmul.f32 %v532, %v516
        %v540 = vmul.f32 %v532, %v521
        %v541 = vsel %vm524, %v486, %v533
        %v542 = vsel %vm525, %v491, %v534
        %v543 = vsel %vm526, %v496, %v535
        %v544 = vsel %vm527, %v501, %v536
        %v545 = vsel %vm528, %v506, %v537
        %v546 = vsel %vm529, %v511, %v538
        %v547 = vsel %vm530, %v516, %v539
        %v548 = vsel %vm531, %v521, %v540
        %549 = vst [vmem:[#allocation2] sm:$0xff] %v541
        %550 = vst [vmem:[#allocation2 + $0x8] sm:$0xff] %v542
        %551 = vst [vmem:[#allocation2 + $0x10] sm:$0xff] %v543
        %552 = vst [vmem:[#allocation2 + $0x18] sm:$0xff] %v544
        %553 = vst [vmem:[#allocation2 + $0x20] sm:$0xff] %v545
        %554 = vst [vmem:[#allocation2 + $0x28] sm:$0xff] %v546
        %555 = vst [vmem:[#allocation2 + $0x30] sm:$0xff] %v547
        %556 = vst [vmem:[#allocation2 + $0x38] sm:$0xff] %v548
        %v557 = vld [vmem:[%s4] sm:$0xff]
        %v558 = vld [vmem:[%s4 + $0x8] sm:$0xff]
        %v559 = vld [vmem:[%s4 + $0x10] sm:$0xff]
        %v560 = vld [vmem:[%s4 + $0x18] sm:$0xff]
        %v561 = vld [vmem:[#allocation2] sm:$0xff]
        %v562 = vld [vmem:[#allocation2 + $0x8] sm:$0xff]
        %v563 = vld [vmem:[#allocation2 + $0x10] sm:$0xff]
        %v564 = vld [vmem:[#allocation2 + $0x18] sm:$0xff]
        %v565 = vld [vmem:[#allocation2 + $0x20] sm:$0xff]
        %v566 = vld [vmem:[#allocation2 + $0x28] sm:$0xff]
        %v567 = vld [vmem:[#allocation2 + $0x30] sm:$0xff]
        %v568 = vld [vmem:[#allocation2 + $0x38] sm:$0xff]
        %vm569 = vcmask 523264
        %v571 = vsel %vm569, %v557, 0
        %v574 = vsel %vm569, %v558, 0
        %v577 = vsel %vm569, %v559, 0
        %v580 = vsel %vm569, %v560, 0
        %582 = vmatprep.subr.mxu0 0.0
        %583 = vmatpush1.msra.mxu0 %v561
        %584 = vmatprep.subr.mxu0 0.0
        %585 = vmatpush1.msra.mxu0 %v562
        %586 = vmatprep.subr.mxu0 0.0
        %587 = vmatpush1.msra.mxu0 %v563
        %588 = vmatprep.subr.mxu0 0.0
        %589 = vmatpush1.msra.mxu0 %v564
        %590 = vmatprep.subr.mxu0 0.0
        %591 = vmatpush1.msra.mxu0 %v565
        %592 = vmatprep.subr.mxu0 0.0
        %593 = vmatpush1.msra.mxu0 %v566
        %594 = vmatprep.subr.mxu0 0.0
        %595 = vmatpush1.msra.mxu0 %v567
        %596 = vmatprep.subr.mxu0 0.0
        %597 = vmatpush1.msra.mxu0 %v568
        %598 = vmatprep.subr.mxu0 0.0
        %599 = vmatpush1.msra.mxu0 0.0
        %600 = vmatprep.subr.mxu0 0.0
        %601 = vmatpush1.msra.mxu0 0.0
        %602 = vmatprep.subr.mxu0 0.0
        %603 = vmatpush1.msra.mxu0 0.0
        %604 = vmatprep.subr.mxu0 0.0
        %605 = vmatpush1.msra.mxu0 0.0
        %606 = vmatprep.subr.mxu0 0.0
        %607 = vmatpush1.msra.mxu0 0.0
        %608 = vmatprep.subr.mxu0 0.0
        %609 = vmatpush1.msra.mxu0 0.0
        %610 = vmatprep.subr.mxu0 0.0
        %611 = vmatpush1.msra.mxu0 0.0
        %612 = vmatprep.subr.mxu0 0.0
        %613 = vmatpush1.msra.mxu0 0.0
        %614 = vmatprep.subr.mxu0 0.0
        %615 = vmatpush1.msra.mxu0 0.0
        %616 = vmatprep.subr.mxu0 0.0
        %617 = vmatpush1.msra.mxu0 0.0
        %618 = vmatprep.subr.mxu0 0.0
        %619 = vmatpush1.msra.mxu0 0.0
        %620 = vmatprep.subr.mxu0 0.0
        %621 = vmatpush1.msra.mxu0 0.0
        %622 = vmatprep.subr.mxu0 0.0
        %623 = vmatpush1.msra.mxu0 0.0
        %624 = vmatprep.subr.mxu0 0.0
        %625 = vmatpush1.msra.mxu0 0.0
        %626 = vmatprep.subr.mxu0 0.0
        %627 = vmatpush1.msra.mxu0 0.0
        %628 = vmatprep.subr.mxu0 0.0
        %629 = vmatpush1.msra.mxu0 0.0
        %630 = vmatprep.subr.mxu0 0.0
        %631 = vmatpush1.msra.mxu0 0.0
        %632 = vmatprep.subr.mxu0 0.0
        %633 = vmatpush1.msra.mxu0 0.0
        %634 = vmatprep.subr.mxu0 0.0
        %635 = vmatpush1.msra.mxu0 0.0
        %636 = vmatprep.subr.mxu0 0.0
        %637 = vmatpush1.msra.mxu0 0.0
        %638 = vmatprep.subr.mxu0 0.0
        %639 = vmatpush1.msra.mxu0 0.0
        %640 = vmatprep.subr.mxu0 0.0
        %641 = vmatpush1.msra.mxu0 0.0
        %642 = vmatprep.subr.mxu0 0.0
        %643 = vmatpush1.msra.mxu0 0.0
        %644 = vmatprep.subr.mxu0 0.0
        %645 = vmatpush1.msra.mxu0 0.0
        %646 = vmatprep.mubr.f32.mxu0 0.0
        %647 = vmatmul.mubr.f32.gmra.mrb[0].mxu0 %v571
        %v648 = vpop.f32.mrb[0].mxu0
        %v649 = vadd.f32 0.0, %v648
        %v650 = vpop.f32.mrb[0].mxu0
        %651 = vmatprep.mubr.f32.mxu0 0.0
        %652 = vmatmul.mubr.f32.gmra.mrb[0].mxu0 %v574
        %v653 = vpop.f32.mrb[0].mxu0
        %v654 = vadd.f32 0.0, %v653
        %v655 = vpop.f32.mrb[0].mxu0
        %656 = vmatprep.mubr.f32.mxu0 0.0
        %657 = vmatmul.mubr.f32.gmra.mrb[0].mxu0 %v577
        %v658 = vpop.f32.mrb[0].mxu0
        %v659 = vadd.f32 0.0, %v658
        %v660 = vpop.f32.mrb[0].mxu0
        %661 = vmatprep.mubr.f32.mxu0 0.0
        %662 = vmatmul.mubr.f32.gmra.mrb[0].mxu0 %v580
        %v663 = vpop.f32.mrb[0].mxu0
        %v664 = vadd.f32 0.0, %v663
        %v665 = vpop.f32.mrb[0].mxu0
        %666 = vdwg.mxu0
        %v667 = vld [vmem:[%s5] sm:$0xff]
        %v668 = vld [vmem:[%s5 + $0x8] sm:$0xff]
        %v669 = vld [vmem:[%s5 + $0x10] sm:$0xff]
        %v670 = vld [vmem:[%s5 + $0x18] sm:$0xff]
        %v671 = vld [vmem:[%s5 + $0x20] sm:$0xff]
        %v672 = vld [vmem:[%s5 + $0x28] sm:$0xff]
        %v673 = vld [vmem:[%s5 + $0x30] sm:$0xff]
        %v674 = vld [vmem:[%s5 + $0x38] sm:$0xff]
        %v675 = vld [vmem:[%s5 + $0x40] sm:$0xff]
        %v676 = vld [vmem:[%s5 + $0x48] sm:$0xff]
        %v677 = vld [vmem:[%s5 + $0x50] sm:$0xff]
        %v678 = vld [vmem:[%s5 + $0x58] sm:$0xff]
        %v679 = vld [vmem:[%s5 + $0x60] sm:$0xff]
        %v680 = vld [vmem:[%s5 + $0x68] sm:$0xff]
        %v681 = vld [vmem:[%s5 + $0x70] sm:$0xff]
        %v682 = vld [vmem:[%s5 + $0x78] sm:$0xff]
        %s683 = scalar_lea.vmem %s4, 32
        %v684 = vld [vmem:[%s683] sm:$0xff]
        %v685 = vld [vmem:[%s683 + $0x8] sm:$0xff]
        %v686 = vld [vmem:[%s683 + $0x10] sm:$0xff]
        %v687 = vld [vmem:[%s683 + $0x18] sm:$0xff]
        %v689 = vsel %vm569, %v684, 0
        %v692 = vsel %vm569, %v685, 0
        %v695 = vsel %vm569, %v686, 0
        %v698 = vsel %vm569, %v687, 0
        %700 = vmatprep.subr.mxu0 0.0
        %701 = vmatpush1.msra.mxu0 %v561
        %702 = vmatprep.subr.mxu0 0.0
        %703 = vmatpush1.msra.mxu0 %v562
        %704 = vmatprep.subr.mxu0 0.0
        %705 = vmatpush1.msra.mxu0 %v563
        %706 = vmatprep.subr.mxu0 0.0
        %707 = vmatpush1.msra.mxu0 %v564
        %708 = vmatprep.subr.mxu0 0.0
        %709 = vmatpush1.msra.mxu0 %v565
        %710 = vmatprep.subr.mxu0 0.0
        %711 = vmatpush1.msra.mxu0 %v566
        %712 = vmatprep.subr.mxu0 0.0
        %713 = vmatpush1.msra.mxu0 %v567
        %714 = vmatprep.subr.mxu0 0.0
        %715 = vmatpush1.msra.mxu0 %v568
        %716 = vmatprep.subr.mxu0 0.0
        %717 = vmatpush1.msra.mxu0 0.0
        %718 = vmatprep.subr.mxu0 0.0
        %719 = vmatpush1.msra.mxu0 0.0
        %720 = vmatprep.subr.mxu0 0.0
        %721 = vmatpush1.msra.mxu0 0.0
        %722 = vmatprep.subr.mxu0 0.0
        %723 = vmatpush1.msra.mxu0 0.0
        %724 = vmatprep.subr.mxu0 0.0
        %725 = vmatpush1.msra.mxu0 0.0
        %726 = vmatprep.subr.mxu0 0.0
        %727 = vmatpush1.msra.mxu0 0.0
        %728 = vmatprep.subr.mxu0 0.0
        %729 = vmatpush1.msra.mxu0 0.0
        %730 = vmatprep.subr.mxu0 0.0
        %731 = vmatpush1.msra.mxu0 0.0
        %732 = vmatprep.subr.mxu0 0.0
        %733 = vmatpush1.msra.mxu0 0.0
        %734 = vmatprep.subr.mxu0 0.0
        %735 = vmatpush1.msra.mxu0 0.0
        %736 = vmatprep.subr.mxu0 0.0
        %737 = vmatpush1.msra.mxu0 0.0
        %738 = vmatprep.subr.mxu0 0.0
        %739 = vmatpush1.msra.mxu0 0.0
        %740 = vmatprep.subr.mxu0 0.0
        %741 = vmatpush1.msra.mxu0 0.0
        %742 = vmatprep.subr.mxu0 0.0
        %743 = vmatpush1.msra.mxu0 0.0
        %744 = vmatprep.subr.mxu0 0.0
        %745 = vmatpush1.msra.mxu0 0.0
        %746 = vmatprep.subr.mxu0 0.0
        %747 = vmatpush1.msra.mxu0 0.0
        %748 = vmatprep.subr.mxu0 0.0
        %749 = vmatpush1.msra.mxu0 0.0
        %750 = vmatprep.subr.mxu0 0.0
        %751 = vmatpush1.msra.mxu0 0.0
        %752 = vmatprep.subr.mxu0 0.0
        %753 = vmatpush1.msra.mxu0 0.0
        %754 = vmatprep.subr.mxu0 0.0
        %755 = vmatpush1.msra.mxu0 0.0
        %756 = vmatprep.subr.mxu0 0.0
        %757 = vmatpush1.msra.mxu0 0.0
        %758 = vmatprep.subr.mxu0 0.0
        %759 = vmatpush1.msra.mxu0 0.0
        %760 = vmatprep.subr.mxu0 0.0
        %761 = vmatpush1.msra.mxu0 0.0
        %762 = vmatprep.subr.mxu0 0.0
        %763 = vmatpush1.msra.mxu0 0.0
        %764 = vmatprep.mubr.f32.mxu0 0.0
        %765 = vmatmul.mubr.f32.gmra.mrb[0].mxu0 %v689
        %v766 = vpop.f32.mrb[0].mxu0
        %v767 = vadd.f32 0.0, %v766
        %v768 = vpop.f32.mrb[0].mxu0
        %769 = vmatprep.mubr.f32.mxu0 0.0
        %770 = vmatmul.mubr.f32.gmra.mrb[0].mxu0 %v692
        %v771 = vpop.f32.mrb[0].mxu0
        %v772 = vadd.f32 0.0, %v771
        %v773 = vpop.f32.mrb[0].mxu0
        %774 = vmatprep.mubr.f32.mxu0 0.0
        %775 = vmatmul.mubr.f32.gmra.mrb[0].mxu0 %v695
        %v776 = vpop.f32.mrb[0].mxu0
        %v777 = vadd.f32 0.0, %v776
        %v778 = vpop.f32.mrb[0].mxu0
        %779 = vmatprep.mubr.f32.mxu0 0.0
        %780 = vmatmul.mubr.f32.gmra.mrb[0].mxu0 %v698
        %v781 = vpop.f32.mrb[0].mxu0
        %v782 = vadd.f32 0.0, %v781
        %v783 = vpop.f32.mrb[0].mxu0
        %784 = vdwg.mxu0
        %s785 = scalar_lea.vmem %s5, 128
        %v786 = vld [vmem:[%s785] sm:$0xff]
        %v787 = vld [vmem:[%s785 + $0x8] sm:$0xff]
        %v788 = vld [vmem:[%s785 + $0x10] sm:$0xff]
        %v789 = vld [vmem:[%s785 + $0x18] sm:$0xff]
        %v790 = vld [vmem:[%s785 + $0x20] sm:$0xff]
        %v791 = vld [vmem:[%s785 + $0x28] sm:$0xff]
        %v792 = vld [vmem:[%s785 + $0x30] sm:$0xff]
        %v793 = vld [vmem:[%s785 + $0x38] sm:$0xff]
        %v794 = vld [vmem:[%s785 + $0x40] sm:$0xff]
        %v795 = vld [vmem:[%s785 + $0x48] sm:$0xff]
        %v796 = vld [vmem:[%s785 + $0x50] sm:$0xff]
        %v797 = vld [vmem:[%s785 + $0x58] sm:$0xff]
        %v798 = vld [vmem:[%s785 + $0x60] sm:$0xff]
        %v799 = vld [vmem:[%s785 + $0x68] sm:$0xff]
        %v800 = vld [vmem:[%s785 + $0x70] sm:$0xff]
        %v801 = vld [vmem:[%s785 + $0x78] sm:$0xff]
        %802 = vmatprep.subr.mxu0 0.0
        %803 = vmatpush1.msra.mxu0 %v786
        %804 = vmatprep.subr.mxu0 0.0
        %805 = vmatpush1.msra.mxu0 %v787
        %806 = vmatprep.subr.mxu0 0.0
        %807 = vmatpush1.msra.mxu0 %v788
        %808 = vmatprep.subr.mxu0 0.0
        %809 = vmatpush1.msra.mxu0 %v789
        %810 = vmatprep.subr.mxu0 0.0
        %811 = vmatpush1.msra.mxu0 %v790
        %812 = vmatprep.subr.mxu0 0.0
        %813 = vmatpush1.msra.mxu0 %v791
        %814 = vmatprep.subr.mxu0 0.0
        %815 = vmatpush1.msra.mxu0 %v792
        %816 = vmatprep.subr.mxu0 0.0
        %817 = vmatpush1.msra.mxu0 %v793
        %818 = vmatprep.subr.mxu0 0.0
        %819 = vmatpush1.msra.mxu0 %v794
        %820 = vmatprep.subr.mxu0 0.0
        %821 = vmatpush1.msra.mxu0 %v795
        %822 = vmatprep.subr.mxu0 0.0
        %823 = vmatpush1.msra.mxu0 %v796
        %824 = vmatprep.subr.mxu0 0.0
        %825 = vmatpush1.msra.mxu0 %v797
        %826 = vmatprep.subr.mxu0 0.0
        %827 = vmatpush1.msra.mxu0 %v798
        %828 = vmatprep.subr.mxu0 0.0
        %829 = vmatpush1.msra.mxu0 %v799
        %830 = vmatprep.subr.mxu0 0.0
        %831 = vmatpush1.msra.mxu0 %v800
        %832 = vmatprep.subr.mxu0 0.0
        %833 = vmatpush1.msra.mxu0 %v801
        %834 = vmatprep.subr.mxu0 0.0
        %835 = vmatpush1.msra.mxu0 0.0
        %836 = vmatprep.subr.mxu0 0.0
        %837 = vmatpush1.msra.mxu0 0.0
        %838 = vmatprep.subr.mxu0 0.0
        %839 = vmatpush1.msra.mxu0 0.0
        %840 = vmatprep.subr.mxu0 0.0
        %841 = vmatpush1.msra.mxu0 0.0
        %842 = vmatprep.subr.mxu0 0.0
        %843 = vmatpush1.msra.mxu0 0.0
        %844 = vmatprep.subr.mxu0 0.0
        %845 = vmatpush1.msra.mxu0 0.0
        %846 = vmatprep.subr.mxu0 0.0
        %847 = vmatpush1.msra.mxu0 0.0
        %848 = vmatprep.subr.mxu0 0.0
        %849 = vmatpush1.msra.mxu0 0.0
        %850 = vmatprep.subr.mxu0 0.0
        %851 = vmatpush1.msra.mxu0 0.0
        %852 = vmatprep.subr.mxu0 0.0
        %853 = vmatpush1.msra.mxu0 0.0
        %854 = vmatprep.subr.mxu0 0.0
        %855 = vmatpush1.msra.mxu0 0.0
        %856 = vmatprep.subr.mxu0 0.0
        %857 = vmatpush1.msra.mxu0 0.0
        %858 = vmatprep.subr.mxu0 0.0
        %859 = vmatpush1.msra.mxu0 0.0
        %860 = vmatprep.subr.mxu0 0.0
        %861 = vmatpush1.msra.mxu0 0.0
        %862 = vmatprep.subr.mxu0 0.0
        %863 = vmatpush1.msra.mxu0 0.0
        %864 = vmatprep.subr.mxu0 0.0
        %865 = vmatpush1.msra.mxu0 0.0
        %866 = vmatprep.mubr.f32.mxu0 0.0
        %867 = vmatmul.mubr.f32.gmra.mrb[0].mxu0 %v767
        %v868 = vpop.f32.mrb[0].mxu0
        %v869 = vadd.f32 0.0, %v868
        %v870 = vpop.f32.mrb[0].mxu0
        %871 = vmatprep.mubr.f32.mxu0 0.0
        %872 = vmatmul.mubr.f32.gmra.mrb[0].mxu0 %v772
        %v873 = vpop.f32.mrb[0].mxu0
        %v874 = vadd.f32 0.0, %v873
        %v875 = vpop.f32.mrb[0].mxu0
        %876 = vmatprep.mubr.f32.mxu0 0.0
        %877 = vmatmul.mubr.f32.gmra.mrb[0].mxu0 %v777
        %v878 = vpop.f32.mrb[0].mxu0
        %v879 = vadd.f32 0.0, %v878
        %v880 = vpop.f32.mrb[0].mxu0
        %881 = vmatprep.mubr.f32.mxu0 0.0
        %882 = vmatmul.mubr.f32.gmra.mrb[0].mxu0 %v782
        %v883 = vpop.f32.mrb[0].mxu0
        %v884 = vadd.f32 0.0, %v883
        %v885 = vpop.f32.mrb[0].mxu0
        %886 = vdwg.mxu0
        %887 = vmatprep.subr.mxu0 0.0
        %888 = vmatpush1.msra.mxu0 %v667
        %889 = vmatprep.subr.mxu0 0.0
        %890 = vmatpush1.msra.mxu0 %v668
        %891 = vmatprep.subr.mxu0 0.0
        %892 = vmatpush1.msra.mxu0 %v669
        %893 = vmatprep.subr.mxu0 0.0
        %894 = vmatpush1.msra.mxu0 %v670
        %895 = vmatprep.subr.mxu0 0.0
        %896 = vmatpush1.msra.mxu0 %v671
        %897 = vmatprep.subr.mxu0 0.0
        %898 = vmatpush1.msra.mxu0 %v672
        %899 = vmatprep.subr.mxu0 0.0
        %900 = vmatpush1.msra.mxu0 %v673
        %901 = vmatprep.subr.mxu0 0.0
        %902 = vmatpush1.msra.mxu0 %v674
        %903 = vmatprep.subr.mxu0 0.0
        %904 = vmatpush1.msra.mxu0 %v675
        %905 = vmatprep.subr.mxu0 0.0
        %906 = vmatpush1.msra.mxu0 %v676
        %907 = vmatprep.subr.mxu0 0.0
        %908 = vmatpush1.msra.mxu0 %v677
        %909 = vmatprep.subr.mxu0 0.0
        %910 = vmatpush1.msra.mxu0 %v678
        %911 = vmatprep.subr.mxu0 0.0
        %912 = vmatpush1.msra.mxu0 %v679
        %913 = vmatprep.subr.mxu0 0.0
        %914 = vmatpush1.msra.mxu0 %v680
        %915 = vmatprep.subr.mxu0 0.0
        %916 = vmatpush1.msra.mxu0 %v681
        %917 = vmatprep.subr.mxu0 0.0
        %918 = vmatpush1.msra.mxu0 %v682
        %919 = vmatprep.subr.mxu0 0.0
        %920 = vmatpush1.msra.mxu0 0.0
        %921 = vmatprep.subr.mxu0 0.0
        %922 = vmatpush1.msra.mxu0 0.0
        %923 = vmatprep.subr.mxu0 0.0
        %924 = vmatpush1.msra.mxu0 0.0
        %925 = vmatprep.subr.mxu0 0.0
        %926 = vmatpush1.msra.mxu0 0.0
        %927 = vmatprep.subr.mxu0 0.0
        %928 = vmatpush1.msra.mxu0 0.0
        %929 = vmatprep.subr.mxu0 0.0
        %930 = vmatpush1.msra.mxu0 0.0
        %931 = vmatprep.subr.mxu0 0.0
        %932 = vmatpush1.msra.mxu0 0.0
        %933 = vmatprep.subr.mxu0 0.0
        %934 = vmatpush1.msra.mxu0 0.0
        %935 = vmatprep.subr.mxu0 0.0
        %936 = vmatpush1.msra.mxu0 0.0
        %937 = vmatprep.subr.mxu0 0.0
        %938 = vmatpush1.msra.mxu0 0.0
        %939 = vmatprep.subr.mxu0 0.0
        %940 = vmatpush1.msra.mxu0 0.0
        %941 = vmatprep.subr.mxu0 0.0
        %942 = vmatpush1.msra.mxu0 0.0
        %943 = vmatprep.subr.mxu0 0.0
        %944 = vmatpush1.msra.mxu0 0.0
        %945 = vmatprep.subr.mxu0 0.0
        %946 = vmatpush1.msra.mxu0 0.0
        %947 = vmatprep.subr.mxu0 0.0
        %948 = vmatpush1.msra.mxu0 0.0
        %949 = vmatprep.subr.mxu0 0.0
        %950 = vmatpush1.msra.mxu0 0.0
        %951 = vmatprep.mubr.f32.mxu0 0.0
        %952 = vmatmul.mubr.f32.gmra.mrb[0].mxu0 %v649
        %v953 = vpop.f32.mrb[0].mxu0
        %v954 = vadd.f32 %v869, %v953
        %v955 = vpop.f32.mrb[0].mxu0
        %956 = vmatprep.mubr.f32.mxu0 0.0
        %957 = vmatmul.mubr.f32.gmra.mrb[0].mxu0 %v654
        %v958 = vpop.f32.mrb[0].mxu0
        %v959 = vadd.f32 %v874, %v958
        %v960 = vpop.f32.mrb[0].mxu0
        %961 = vmatprep.mubr.f32.mxu0 0.0
        %962 = vmatmul.mubr.f32.gmra.mrb[0].mxu0 %v659
        %v963 = vpop.f32.mrb[0].mxu0
        %v964 = vadd.f32 %v879, %v963
        %v965 = vpop.f32.mrb[0].mxu0
        %966 = vmatprep.mubr.f32.mxu0 0.0
        %967 = vmatmul.mubr.f32.gmra.mrb[0].mxu0 %v664
        %v968 = vpop.f32.mrb[0].mxu0
        %v969 = vadd.f32 %v884, %v968
        %v970 = vpop.f32.mrb[0].mxu0
        %971 = vdwg.mxu0
        %s972 = scalar_lea.vmem %s4, 64
        %v973 = vld [vmem:[%s972] sm:$0xff]
        %v974 = vld [vmem:[%s972 + $0x8] sm:$0xff]
        %v975 = vld [vmem:[%s972 + $0x10] sm:$0xff]
        %v976 = vld [vmem:[%s972 + $0x18] sm:$0xff]
        %v978 = vsel %vm569, %v973, 0
        %v981 = vsel %vm569, %v974, 0
        %v984 = vsel %vm569, %v975, 0
        %v987 = vsel %vm569, %v976, 0
        %989 = vmatprep.subr.mxu0 0.0
        %990 = vmatpush1.msra.mxu0 %v561
        %991 = vmatprep.subr.mxu0 0.0
        %992 = vmatpush1.msra.mxu0 %v562
        %993 = vmatprep.subr.mxu0 0.0
        %994 = vmatpush1.msra.mxu0 %v563
        %995 = vmatprep.subr.mxu0 0.0
        %996 = vmatpush1.msra.mxu0 %v564
        %997 = vmatprep.subr.mxu0 0.0
        %998 = vmatpush1.msra.mxu0 %v565
        %999 = vmatprep.subr.mxu0 0.0
        %1000 = vmatpush1.msra.mxu0 %v566
        %1001 = vmatprep.subr.mxu0 0.0
        %1002 = vmatpush1.msra.mxu0 %v567
        %1003 = vmatprep.subr.mxu0 0.0
        %1004 = vmatpush1.msra.mxu0 %v568
        %1005 = vmatprep.subr.mxu0 0.0
        %1006 = vmatpush1.msra.mxu0 0.0
        %1007 = vmatprep.subr.mxu0 0.0
        %1008 = vmatpush1.msra.mxu0 0.0
        %1009 = vmatprep.subr.mxu0 0.0
        %1010 = vmatpush1.msra.mxu0 0.0
        %1011 = vmatprep.subr.mxu0 0.0
        %1012 = vmatpush1.msra.mxu0 0.0
        %1013 = vmatprep.subr.mxu0 0.0
        %1014 = vmatpush1.msra.mxu0 0.0
        %1015 = vmatprep.subr.mxu0 0.0
        %1016 = vmatpush1.msra.mxu0 0.0
        %1017 = vmatprep.subr.mxu0 0.0
        %1018 = vmatpush1.msra.mxu0 0.0
        %1019 = vmatprep.subr.mxu0 0.0
        %1020 = vmatpush1.msra.mxu0 0.0
        %1021 = vmatprep.subr.mxu0 0.0
        %1022 = vmatpush1.msra.mxu0 0.0
        %1023 = vmatprep.subr.mxu0 0.0
        %1024 = vmatpush1.msra.mxu0 0.0
        %1025 = vmatprep.subr.mxu0 0.0
        %1026 = vmatpush1.msra.mxu0 0.0
        %1027 = vmatprep.subr.mxu0 0.0
        %1028 = vmatpush1.msra.mxu0 0.0
        %1029 = vmatprep.subr.mxu0 0.0
        %1030 = vmatpush1.msra.mxu0 0.0
        %1031 = vmatprep.subr.mxu0 0.0
        %1032 = vmatpush1.msra.mxu0 0.0
        %1033 = vmatprep.subr.mxu0 0.0
        %1034 = vmatpush1.msra.mxu0 0.0
        %1035 = vmatprep.subr.mxu0 0.0
        %1036 = vmatpush1.msra.mxu0 0.0
        %1037 = vmatprep.subr.mxu0 0.0
        %1038 = vmatpush1.msra.mxu0 0.0
        %1039 = vmatprep.subr.mxu0 0.0
        %1040 = vmatpush1.msra.mxu0 0.0
        %1041 = vmatprep.subr.mxu0 0.0
        %1042 = vmatpush1.msra.mxu0 0.0
        %1043 = vmatprep.subr.mxu0 0.0
        %1044 = vmatpush1.msra.mxu0 0.0
        %1045 = vmatprep.subr.mxu0 0.0
        %1046 = vmatpush1.msra.mxu0 0.0
        %1047 = vmatprep.subr.mxu0 0.0
        %1048 = vmatpush1.msra.mxu0 0.0
        %1049 = vmatprep.subr.mxu0 0.0
        %1050 = vmatpush1.msra.mxu0 0.0
        %1051 = vmatprep.subr.mxu0 0.0
        %1052 = vmatpush1.msra.mxu0 0.0
        %1053 = vmatprep.mubr.f32.mxu0 0.0
        %1054 = vmatmul.mubr.f32.gmra.mrb[0].mxu0 %v978
        %v1055 = vpop.f32.mrb[0].mxu0
        %v1056 = vadd.f32 0.0, %v1055
        %v1057 = vpop.f32.mrb[0].mxu0
        %1058 = vmatprep.mubr.f32.mxu0 0.0
        %1059 = vmatmul.mubr.f32.gmra.mrb[0].mxu0 %v981
        %v1060 = vpop.f32.mrb[0].mxu0
        %v1061 = vadd.f32 0.0, %v1060
        %v1062 = vpop.f32.mrb[0].mxu0
        %1063 = vmatprep.mubr.f32.mxu0 0.0
        %1064 = vmatmul.mubr.f32.gmra.mrb[0].mxu0 %v984
        %v1065 = vpop.f32.mrb[0].mxu0
        %v1066 = vadd.f32 0.0, %v1065
        %v1067 = vpop.f32.mrb[0].mxu0
        %1068 = vmatprep.mubr.f32.mxu0 0.0
        %1069 = vmatmul.mubr.f32.gmra.mrb[0].mxu0 %v987
        %v1070 = vpop.f32.mrb[0].mxu0
        %v1071 = vadd.f32 0.0, %v1070
        %v1072 = vpop.f32.mrb[0].mxu0
        %1073 = vdwg.mxu0
        %s1074 = scalar_lea.vmem %s5, 256
        %v1075 = vld [vmem:[%s1074] sm:$0xff]
        %v1076 = vld [vmem:[%s1074 + $0x8] sm:$0xff]
        %v1077 = vld [vmem:[%s1074 + $0x10] sm:$0xff]
        %v1078 = vld [vmem:[%s1074 + $0x18] sm:$0xff]
        %v1079 = vld [vmem:[%s1074 + $0x20] sm:$0xff]
        %v1080 = vld [vmem:[%s1074 + $0x28] sm:$0xff]
        %v1081 = vld [vmem:[%s1074 + $0x30] sm:$0xff]
        %v1082 = vld [vmem:[%s1074 + $0x38] sm:$0xff]
        %v1083 = vld [vmem:[%s1074 + $0x40] sm:$0xff]
        %v1084 = vld [vmem:[%s1074 + $0x48] sm:$0xff]
        %v1085 = vld [vmem:[%s1074 + $0x50] sm:$0xff]
        %v1086 = vld [vmem:[%s1074 + $0x58] sm:$0xff]
        %v1087 = vld [vmem:[%s1074 + $0x60] sm:$0xff]
        %v1088 = vld [vmem:[%s1074 + $0x68] sm:$0xff]
        %v1089 = vld [vmem:[%s1074 + $0x70] sm:$0xff]
        %v1090 = vld [vmem:[%s1074 + $0x78] sm:$0xff]
        %1091 = vmatprep.subr.mxu0 0.0
        %1092 = vmatpush1.msra.mxu0 %v1075
        %1093 = vmatprep.subr.mxu0 0.0
        %1094 = vmatpush1.msra.mxu0 %v1076
        %1095 = vmatprep.subr.mxu0 0.0
        %1096 = vmatpush1.msra.mxu0 %v1077
        %1097 = vmatprep.subr.mxu0 0.0
        %1098 = vmatpush1.msra.mxu0 %v1078
        %1099 = vmatprep.subr.mxu0 0.0
        %1100 = vmatpush1.msra.mxu0 %v1079
        %1101 = vmatprep.subr.mxu0 0.0
        %1102 = vmatpush1.msra.mxu0 %v1080
        %1103 = vmatprep.subr.mxu0 0.0
        %1104 = vmatpush1.msra.mxu0 %v1081
        %1105 = vmatprep.subr.mxu0 0.0
        %1106 = vmatpush1.msra.mxu0 %v1082
        %1107 = vmatprep.subr.mxu0 0.0
        %1108 = vmatpush1.msra.mxu0 %v1083
        %1109 = vmatprep.subr.mxu0 0.0
        %1110 = vmatpush1.msra.mxu0 %v1084
        %1111 = vmatprep.subr.mxu0 0.0
        %1112 = vmatpush1.msra.mxu0 %v1085
        %1113 = vmatprep.subr.mxu0 0.0
        %1114 = vmatpush1.msra.mxu0 %v1086
        %1115 = vmatprep.subr.mxu0 0.0
        %1116 = vmatpush1.msra.mxu0 %v1087
        %1117 = vmatprep.subr.mxu0 0.0
        %1118 = vmatpush1.msra.mxu0 %v1088
        %1119 = vmatprep.subr.mxu0 0.0
        %1120 = vmatpush1.msra.mxu0 %v1089
        %1121 = vmatprep.subr.mxu0 0.0
        %1122 = vmatpush1.msra.mxu0 %v1090
        %1123 = vmatprep.subr.mxu0 0.0
        %1124 = vmatpush1.msra.mxu0 0.0
        %1125 = vmatprep.subr.mxu0 0.0
        %1126 = vmatpush1.msra.mxu0 0.0
        %1127 = vmatprep.subr.mxu0 0.0
        %1128 = vmatpush1.msra.mxu0 0.0
        %1129 = vmatprep.subr.mxu0 0.0
        %1130 = vmatpush1.msra.mxu0 0.0
        %1131 = vmatprep.subr.mxu0 0.0
        %1132 = vmatpush1.msra.mxu0 0.0
        %1133 = vmatprep.subr.mxu0 0.0
        %1134 = vmatpush1.msra.mxu0 0.0
        %1135 = vmatprep.subr.mxu0 0.0
        %1136 = vmatpush1.msra.mxu0 0.0
        %1137 = vmatprep.subr.mxu0 0.0
        %1138 = vmatpush1.msra.mxu0 0.0
        %1139 = vmatprep.subr.mxu0 0.0
        %1140 = vmatpush1.msra.mxu0 0.0
        %1141 = vmatprep.subr.mxu0 0.0
        %1142 = vmatpush1.msra.mxu0 0.0
        %1143 = vmatprep.subr.mxu0 0.0
        %1144 = vmatpush1.msra.mxu0 0.0
        %1145 = vmatprep.subr.mxu0 0.0
        %1146 = vmatpush1.msra.mxu0 0.0
        %1147 = vmatprep.subr.mxu0 0.0
        %1148 = vmatpush1.msra.mxu0 0.0
        %1149 = vmatprep.subr.mxu0 0.0
        %1150 = vmatpush1.msra.mxu0 0.0
        %1151 = vmatprep.subr.mxu0 0.0
        %1152 = vmatpush1.msra.mxu0 0.0
        %1153 = vmatprep.subr.mxu0 0.0
        %1154 = vmatpush1.msra.mxu0 0.0
        %1155 = vmatprep.mubr.f32.mxu0 0.0
        %1156 = vmatmul.mubr.f32.gmra.mrb[0].mxu0 %v1056
        %v1157 = vpop.f32.mrb[0].mxu0
        %v1158 = vadd.f32 0.0, %v1157
        %v1159 = vpop.f32.mrb[0].mxu0
        %1160 = vmatprep.mubr.f32.mxu0 0.0
        %1161 = vmatmul.mubr.f32.gmra.mrb[0].mxu0 %v1061
        %v1162 = vpop.f32.mrb[0].mxu0
        %v1163 = vadd.f32 0.0, %v1162
        %v1164 = vpop.f32.mrb[0].mxu0
        %1165 = vmatprep.mubr.f32.mxu0 0.0
        %1166 = vmatmul.mubr.f32.gmra.mrb[0].mxu0 %v1066
        %v1167 = vpop.f32.mrb[0].mxu0
        %v1168 = vadd.f32 0.0, %v1167
        %v1169 = vpop.f32.mrb[0].mxu0
        %1170 = vmatprep.mubr.f32.mxu0 0.0
        %1171 = vmatmul.mubr.f32.gmra.mrb[0].mxu0 %v1071
        %v1172 = vpop.f32.mrb[0].mxu0
        %v1173 = vadd.f32 0.0, %v1172
        %v1174 = vpop.f32.mrb[0].mxu0
        %1175 = vdwg.mxu0
        %v1176 = vadd.f32 %v954, %v1158
        %v1177 = vadd.f32 %v959, %v1163
        %v1178 = vadd.f32 %v964, %v1168
        %v1179 = vadd.f32 %v969, %v1173
        %s1180 = scalar_lea.vmem %s4, 96
        %v1181 = vld [vmem:[%s1180] sm:$0xff]
        %v1182 = vld [vmem:[%s1180 + $0x8] sm:$0xff]
        %v1183 = vld [vmem:[%s1180 + $0x10] sm:$0xff]
        %v1184 = vld [vmem:[%s1180 + $0x18] sm:$0xff]
        %v1186 = vsel %vm569, %v1181, 0
        %v1189 = vsel %vm569, %v1182, 0
        %v1192 = vsel %vm569, %v1183, 0
        %v1195 = vsel %vm569, %v1184, 0
        %1197 = vmatprep.subr.mxu0 0.0
        %1198 = vmatpush1.msra.mxu0 %v561
        %1199 = vmatprep.subr.mxu0 0.0
        %1200 = vmatpush1.msra.mxu0 %v562
        %1201 = vmatprep.subr.mxu0 0.0
        %1202 = vmatpush1.msra.mxu0 %v563
        %1203 = vmatprep.subr.mxu0 0.0
        %1204 = vmatpush1.msra.mxu0 %v564
        %1205 = vmatprep.subr.mxu0 0.0
        %1206 = vmatpush1.msra.mxu0 %v565
        %1207 = vmatprep.subr.mxu0 0.0
        %1208 = vmatpush1.msra.mxu0 %v566
        %1209 = vmatprep.subr.mxu0 0.0
        %1210 = vmatpush1.msra.mxu0 %v567
        %1211 = vmatprep.subr.mxu0 0.0
        %1212 = vmatpush1.msra.mxu0 %v568
        %1213 = vmatprep.subr.mxu0 0.0
        %1214 = vmatpush1.msra.mxu0 0.0
        %1215 = vmatprep.subr.mxu0 0.0
        %1216 = vmatpush1.msra.mxu0 0.0
        %1217 = vmatprep.subr.mxu0 0.0
        %1218 = vmatpush1.msra.mxu0 0.0
        %1219 = vmatprep.subr.mxu0 0.0
        %1220 = vmatpush1.msra.mxu0 0.0
        %1221 = vmatprep.subr.mxu0 0.0
        %1222 = vmatpush1.msra.mxu0 0.0
        %1223 = vmatprep.subr.mxu0 0.0
        %1224 = vmatpush1.msra.mxu0 0.0
        %1225 = vmatprep.subr.mxu0 0.0
        %1226 = vmatpush1.msra.mxu0 0.0
        %1227 = vmatprep.subr.mxu0 0.0
        %1228 = vmatpush1.msra.mxu0 0.0
        %1229 = vmatprep.subr.mxu0 0.0
        %1230 = vmatpush1.msra.mxu0 0.0
        %1231 = vmatprep.subr.mxu0 0.0
        %1232 = vmatpush1.msra.mxu0 0.0
        %1233 = vmatprep.subr.mxu0 0.0
        %1234 = vmatpush1.msra.mxu0 0.0
        %1235 = vmatprep.subr.mxu0 0.0
        %1236 = vmatpush1.msra.mxu0 0.0
        %1237 = vmatprep.subr.mxu0 0.0
        %1238 = vmatpush1.msra.mxu0 0.0
        %1239 = vmatprep.subr.mxu0 0.0
        %1240 = vmatpush1.msra.mxu0 0.0
        %1241 = vmatprep.subr.mxu0 0.0
        %1242 = vmatpush1.msra.mxu0 0.0
        %1243 = vmatprep.subr.mxu0 0.0
        %1244 = vmatpush1.msra.mxu0 0.0
        %1245 = vmatprep.subr.mxu0 0.0
        %1246 = vmatpush1.msra.mxu0 0.0
        %1247 = vmatprep.subr.mxu0 0.0
        %1248 = vmatpush1.msra.mxu0 0.0
        %1249 = vmatprep.subr.mxu0 0.0
        %1250 = vmatpush1.msra.mxu0 0.0
        %1251 = vmatprep.subr.mxu0 0.0
        %1252 = vmatpush1.msra.mxu0 0.0
        %1253 = vmatprep.subr.mxu0 0.0
        %1254 = vmatpush1.msra.mxu0 0.0
        %1255 = vmatprep.subr.mxu0 0.0
        %1256 = vmatpush1.msra.mxu0 0.0
        %1257 = vmatprep.subr.mxu0 0.0
        %1258 = vmatpush1.msra.mxu0 0.0
        %1259 = vmatprep.subr.mxu0 0.0
        %1260 = vmatpush1.msra.mxu0 0.0
        %1261 = vmatprep.mubr.f32.mxu0 0.0
        %1262 = vmatmul.mubr.f32.gmra.mrb[0].mxu0 %v1186
        %v1263 = vpop.f32.mrb[0].mxu0
        %v1264 = vadd.f32 0.0, %v1263
        %v1265 = vpop.f32.mrb[0].mxu0
        %1266 = vmatprep.mubr.f32.mxu0 0.0
        %1267 = vmatmul.mubr.f32.gmra.mrb[0].mxu0 %v1189
        %v1268 = vpop.f32.mrb[0].mxu0
        %v1269 = vadd.f32 0.0, %v1268
        %v1270 = vpop.f32.mrb[0].mxu0
        %1271 = vmatprep.mubr.f32.mxu0 0.0
        %1272 = vmatmul.mubr.f32.gmra.mrb[0].mxu0 %v1192
        %v1273 = vpop.f32.mrb[0].mxu0
        %v1274 = vadd.f32 0.0, %v1273
        %v1275 = vpop.f32.mrb[0].mxu0
        %1276 = vmatprep.mubr.f32.mxu0 0.0
        %1277 = vmatmul.mubr.f32.gmra.mrb[0].mxu0 %v1195
        %v1278 = vpop.f32.mrb[0].mxu0
        %v1279 = vadd.f32 0.0, %v1278
        %v1280 = vpop.f32.mrb[0].mxu0
        %1281 = vdwg.mxu0
        %s1282 = scalar_lea.vmem %s5, 384
        %v1283 = vld [vmem:[%s1282] sm:$0xff]
        %v1284 = vld [vmem:[%s1282 + $0x8] sm:$0xff]
        %v1285 = vld [vmem:[%s1282 + $0x10] sm:$0xff]
        %v1286 = vld [vmem:[%s1282 + $0x18] sm:$0xff]
        %v1287 = vld [vmem:[%s1282 + $0x20] sm:$0xff]
        %v1288 = vld [vmem:[%s1282 + $0x28] sm:$0xff]
        %v1289 = vld [vmem:[%s1282 + $0x30] sm:$0xff]
        %v1290 = vld [vmem:[%s1282 + $0x38] sm:$0xff]
        %v1291 = vld [vmem:[%s1282 + $0x40] sm:$0xff]
        %v1292 = vld [vmem:[%s1282 + $0x48] sm:$0xff]
        %v1293 = vld [vmem:[%s1282 + $0x50] sm:$0xff]
        %v1294 = vld [vmem:[%s1282 + $0x58] sm:$0xff]
        %v1295 = vld [vmem:[%s1282 + $0x60] sm:$0xff]
        %v1296 = vld [vmem:[%s1282 + $0x68] sm:$0xff]
        %v1297 = vld [vmem:[%s1282 + $0x70] sm:$0xff]
        %v1298 = vld [vmem:[%s1282 + $0x78] sm:$0xff]
        %1299 = vmatprep.subr.mxu0 0.0
        %1300 = vmatpush1.msra.mxu0 %v1283
        %1301 = vmatprep.subr.mxu0 0.0
        %1302 = vmatpush1.msra.mxu0 %v1284
        %1303 = vmatprep.subr.mxu0 0.0
        %1304 = vmatpush1.msra.mxu0 %v1285
        %1305 = vmatprep.subr.mxu0 0.0
        %1306 = vmatpush1.msra.mxu0 %v1286
        %1307 = vmatprep.subr.mxu0 0.0
        %1308 = vmatpush1.msra.mxu0 %v1287
        %1309 = vmatprep.subr.mxu0 0.0
        %1310 = vmatpush1.msra.mxu0 %v1288
        %1311 = vmatprep.subr.mxu0 0.0
        %1312 = vmatpush1.msra.mxu0 %v1289
        %1313 = vmatprep.subr.mxu0 0.0
        %1314 = vmatpush1.msra.mxu0 %v1290
        %1315 = vmatprep.subr.mxu0 0.0
        %1316 = vmatpush1.msra.mxu0 %v1291
        %1317 = vmatprep.subr.mxu0 0.0
        %1318 = vmatpush1.msra.mxu0 %v1292
        %1319 = vmatprep.subr.mxu0 0.0
        %1320 = vmatpush1.msra.mxu0 %v1293
        %1321 = vmatprep.subr.mxu0 0.0
        %1322 = vmatpush1.msra.mxu0 %v1294
        %1323 = vmatprep.subr.mxu0 0.0
        %1324 = vmatpush1.msra.mxu0 %v1295
        %1325 = vmatprep.subr.mxu0 0.0
        %1326 = vmatpush1.msra.mxu0 %v1296
        %1327 = vmatprep.subr.mxu0 0.0
        %1328 = vmatpush1.msra.mxu0 %v1297
        %1329 = vmatprep.subr.mxu0 0.0
        %1330 = vmatpush1.msra.mxu0 %v1298
        %1331 = vmatprep.subr.mxu0 0.0
        %1332 = vmatpush1.msra.mxu0 0.0
        %1333 = vmatprep.subr.mxu0 0.0
        %1334 = vmatpush1.msra.mxu0 0.0
        %1335 = vmatprep.subr.mxu0 0.0
        %1336 = vmatpush1.msra.mxu0 0.0
        %1337 = vmatprep.subr.mxu0 0.0
        %1338 = vmatpush1.msra.mxu0 0.0
        %1339 = vmatprep.subr.mxu0 0.0
        %1340 = vmatpush1.msra.mxu0 0.0
        %1341 = vmatprep.subr.mxu0 0.0
        %1342 = vmatpush1.msra.mxu0 0.0
        %1343 = vmatprep.subr.mxu0 0.0
        %1344 = vmatpush1.msra.mxu0 0.0
        %1345 = vmatprep.subr.mxu0 0.0
        %1346 = vmatpush1.msra.mxu0 0.0
        %1347 = vmatprep.subr.mxu0 0.0
        %1348 = vmatpush1.msra.mxu0 0.0
        %1349 = vmatprep.subr.mxu0 0.0
        %1350 = vmatpush1.msra.mxu0 0.0
        %1351 = vmatprep.subr.mxu0 0.0
        %1352 = vmatpush1.msra.mxu0 0.0
        %1353 = vmatprep.subr.mxu0 0.0
        %1354 = vmatpush1.msra.mxu0 0.0
        %1355 = vmatprep.subr.mxu0 0.0
        %1356 = vmatpush1.msra.mxu0 0.0
        %1357 = vmatprep.subr.mxu0 0.0
        %1358 = vmatpush1.msra.mxu0 0.0
        %1359 = vmatprep.subr.mxu0 0.0
        %1360 = vmatpush1.msra.mxu0 0.0
        %1361 = vmatprep.subr.mxu0 0.0
        %1362 = vmatpush1.msra.mxu0 0.0
        %1363 = vmatprep.mubr.f32.mxu0 0.0
        %1364 = vmatmul.mubr.f32.gmra.mrb[0].mxu0 %v1264
        %v1365 = vpop.f32.mrb[0].mxu0
        %v1366 = vadd.f32 0.0, %v1365
        %v1367 = vpop.f32.mrb[0].mxu0
        %1368 = vmatprep.mubr.f32.mxu0 0.0
        %1369 = vmatmul.mubr.f32.gmra.mrb[0].mxu0 %v1269
        %v1370 = vpop.f32.mrb[0].mxu0
        %v1371 = vadd.f32 0.0, %v1370
        %v1372 = vpop.f32.mrb[0].mxu0
        %1373 = vmatprep.mubr.f32.mxu0 0.0
        %1374 = vmatmul.mubr.f32.gmra.mrb[0].mxu0 %v1274
        %v1375 = vpop.f32.mrb[0].mxu0
        %v1376 = vadd.f32 0.0, %v1375
        %v1377 = vpop.f32.mrb[0].mxu0
        %1378 = vmatprep.mubr.f32.mxu0 0.0
        %1379 = vmatmul.mubr.f32.gmra.mrb[0].mxu0 %v1279
        %v1380 = vpop.f32.mrb[0].mxu0
        %v1381 = vadd.f32 0.0, %v1380
        %v1382 = vpop.f32.mrb[0].mxu0
        %1383 = vdwg.mxu0
        %v1384 = vadd.f32 %v1176, %v1366
        %v1385 = vadd.f32 %v1177, %v1371
        %v1386 = vadd.f32 %v1178, %v1376
        %v1387 = vadd.f32 %v1179, %v1381
        %s1388 = scalar_lea.vmem %s4, 128
        %v1389 = vld [vmem:[%s1388] sm:$0xff]
        %v1390 = vld [vmem:[%s1388 + $0x8] sm:$0xff]
        %v1391 = vld [vmem:[%s1388 + $0x10] sm:$0xff]
        %v1392 = vld [vmem:[%s1388 + $0x18] sm:$0xff]
        %v1394 = vsel %vm569, %v1389, 0
        %v1397 = vsel %vm569, %v1390, 0
        %v1400 = vsel %vm569, %v1391, 0
        %v1403 = vsel %vm569, %v1392, 0
        %1405 = vmatprep.subr.mxu0 0.0
        %1406 = vmatpush1.msra.mxu0 %v561
        %1407 = vmatprep.subr.mxu0 0.0
        %1408 = vmatpush1.msra.mxu0 %v562
        %1409 = vmatprep.subr.mxu0 0.0
        %1410 = vmatpush1.msra.mxu0 %v563
        %1411 = vmatprep.subr.mxu0 0.0
        %1412 = vmatpush1.msra.mxu0 %v564
        %1413 = vmatprep.subr.mxu0 0.0
        %1414 = vmatpush1.msra.mxu0 %v565
        %1415 = vmatprep.subr.mxu0 0.0
        %1416 = vmatpush1.msra.mxu0 %v566
        %1417 = vmatprep.subr.mxu0 0.0
        %1418 = vmatpush1.msra.mxu0 %v567
        %1419 = vmatprep.subr.mxu0 0.0
        %1420 = vmatpush1.msra.mxu0 %v568
        %1421 = vmatprep.subr.mxu0 0.0
        %1422 = vmatpush1.msra.mxu0 0.0
        %1423 = vmatprep.subr.mxu0 0.0
        %1424 = vmatpush1.msra.mxu0 0.0
        %1425 = vmatprep.subr.mxu0 0.0
        %1426 = vmatpush1.msra.mxu0 0.0
        %1427 = vmatprep.subr.mxu0 0.0
        %1428 = vmatpush1.msra.mxu0 0.0
        %1429 = vmatprep.subr.mxu0 0.0
        %1430 = vmatpush1.msra.mxu0 0.0
        %1431 = vmatprep.subr.mxu0 0.0
        %1432 = vmatpush1.msra.mxu0 0.0
        %1433 = vmatprep.subr.mxu0 0.0
        %1434 = vmatpush1.msra.mxu0 0.0
        %1435 = vmatprep.subr.mxu0 0.0
        %1436 = vmatpush1.msra.mxu0 0.0
        %1437 = vmatprep.subr.mxu0 0.0
        %1438 = vmatpush1.msra.mxu0 0.0
        %1439 = vmatprep.subr.mxu0 0.0
        %1440 = vmatpush1.msra.mxu0 0.0
        %1441 = vmatprep.subr.mxu0 0.0
        %1442 = vmatpush1.msra.mxu0 0.0
        %1443 = vmatprep.subr.mxu0 0.0
        %1444 = vmatpush1.msra.mxu0 0.0
        %1445 = vmatprep.subr.mxu0 0.0
        %1446 = vmatpush1.msra.mxu0 0.0
        %1447 = vmatprep.subr.mxu0 0.0
        %1448 = vmatpush1.msra.mxu0 0.0
        %1449 = vmatprep.subr.mxu0 0.0
        %1450 = vmatpush1.msra.mxu0 0.0
        %1451 = vmatprep.subr.mxu0 0.0
        %1452 = vmatpush1.msra.mxu0 0.0
        %1453 = vmatprep.subr.mxu0 0.0
        %1454 = vmatpush1.msra.mxu0 0.0
        %1455 = vmatprep.subr.mxu0 0.0
        %1456 = vmatpush1.msra.mxu0 0.0
        %1457 = vmatprep.subr.mxu0 0.0
        %1458 = vmatpush1.msra.mxu0 0.0
        %1459 = vmatprep.subr.mxu0 0.0
        %1460 = vmatpush1.msra.mxu0 0.0
        %1461 = vmatprep.subr.mxu0 0.0
        %1462 = vmatpush1.msra.mxu0 0.0
        %1463 = vmatprep.subr.mxu0 0.0
        %1464 = vmatpush1.msra.mxu0 0.0
        %1465 = vmatprep.subr.mxu0 0.0
        %1466 = vmatpush1.msra.mxu0 0.0
        %1467 = vmatprep.subr.mxu0 0.0
        %1468 = vmatpush1.msra.mxu0 0.0
        %1469 = vmatprep.mubr.f32.mxu0 0.0
        %1470 = vmatmul.mubr.f32.gmra.mrb[0].mxu0 %v1394
        %v1471 = vpop.f32.mrb[0].mxu0
        %v1472 = vadd.f32 0.0, %v1471
        %v1473 = vpop.f32.mrb[0].mxu0
        %1474 = vmatprep.mubr.f32.mxu0 0.0
        %1475 = vmatmul.mubr.f32.gmra.mrb[0].mxu0 %v1397
        %v1476 = vpop.f32.mrb[0].mxu0
        %v1477 = vadd.f32 0.0, %v1476
        %v1478 = vpop.f32.mrb[0].mxu0
        %1479 = vmatprep.mubr.f32.mxu0 0.0
        %1480 = vmatmul.mubr.f32.gmra.mrb[0].mxu0 %v1400
        %v1481 = vpop.f32.mrb[0].mxu0
        %v1482 = vadd.f32 0.0, %v1481
        %v1483 = vpop.f32.mrb[0].mxu0
        %1484 = vmatprep.mubr.f32.mxu0 0.0
        %1485 = vmatmul.mubr.f32.gmra.mrb[0].mxu0 %v1403
        %v1486 = vpop.f32.mrb[0].mxu0
        %v1487 = vadd.f32 0.0, %v1486
        %v1488 = vpop.f32.mrb[0].mxu0
        %1489 = vdwg.mxu0
        %s1490 = scalar_lea.vmem %s5, 512
        %v1491 = vld [vmem:[%s1490] sm:$0xff]
        %v1492 = vld [vmem:[%s1490 + $0x8] sm:$0xff]
        %v1493 = vld [vmem:[%s1490 + $0x10] sm:$0xff]
        %v1494 = vld [vmem:[%s1490 + $0x18] sm:$0xff]
        %v1495 = vld [vmem:[%s1490 + $0x20] sm:$0xff]
        %v1496 = vld [vmem:[%s1490 + $0x28] sm:$0xff]
        %v1497 = vld [vmem:[%s1490 + $0x30] sm:$0xff]
        %v1498 = vld [vmem:[%s1490 + $0x38] sm:$0xff]
        %v1499 = vld [vmem:[%s1490 + $0x40] sm:$0xff]
        %v1500 = vld [vmem:[%s1490 + $0x48] sm:$0xff]
        %v1501 = vld [vmem:[%s1490 + $0x50] sm:$0xff]
        %v1502 = vld [vmem:[%s1490 + $0x58] sm:$0xff]
        %v1503 = vld [vmem:[%s1490 + $0x60] sm:$0xff]
        %v1504 = vld [vmem:[%s1490 + $0x68] sm:$0xff]
        %v1505 = vld [vmem:[%s1490 + $0x70] sm:$0xff]
        %v1506 = vld [vmem:[%s1490 + $0x78] sm:$0xff]
        %1507 = vmatprep.subr.mxu0 0.0
        %1508 = vmatpush1.msra.mxu0 %v1491
        %1509 = vmatprep.subr.mxu0 0.0
        %1510 = vmatpush1.msra.mxu0 %v1492
        %1511 = vmatprep.subr.mxu0 0.0
        %1512 = vmatpush1.msra.mxu0 %v1493
        %1513 = vmatprep.subr.mxu0 0.0
        %1514 = vmatpush1.msra.mxu0 %v1494
        %1515 = vmatprep.subr.mxu0 0.0
        %1516 = vmatpush1.msra.mxu0 %v1495
        %1517 = vmatprep.subr.mxu0 0.0
        %1518 = vmatpush1.msra.mxu0 %v1496
        %1519 = vmatprep.subr.mxu0 0.0
        %1520 = vmatpush1.msra.mxu0 %v1497
        %1521 = vmatprep.subr.mxu0 0.0
        %1522 = vmatpush1.msra.mxu0 %v1498
        %1523 = vmatprep.subr.mxu0 0.0
        %1524 = vmatpush1.msra.mxu0 %v1499
        %1525 = vmatprep.subr.mxu0 0.0
        %1526 = vmatpush1.msra.mxu0 %v1500
        %1527 = vmatprep.subr.mxu0 0.0
        %1528 = vmatpush1.msra.mxu0 %v1501
        %1529 = vmatprep.subr.mxu0 0.0
        %1530 = vmatpush1.msra.mxu0 %v1502
        %1531 = vmatprep.subr.mxu0 0.0
        %1532 = vmatpush1.msra.mxu0 %v1503
        %1533 = vmatprep.subr.mxu0 0.0
        %1534 = vmatpush1.msra.mxu0 %v1504
        %1535 = vmatprep.subr.mxu0 0.0
        %1536 = vmatpush1.msra.mxu0 %v1505
        %1537 = vmatprep.subr.mxu0 0.0
        %1538 = vmatpush1.msra.mxu0 %v1506
        %1539 = vmatprep.subr.mxu0 0.0
        %1540 = vmatpush1.msra.mxu0 0.0
        %1541 = vmatprep.subr.mxu0 0.0
        %1542 = vmatpush1.msra.mxu0 0.0
        %1543 = vmatprep.subr.mxu0 0.0
        %1544 = vmatpush1.msra.mxu0 0.0
        %1545 = vmatprep.subr.mxu0 0.0
        %1546 = vmatpush1.msra.mxu0 0.0
        %1547 = vmatprep.subr.mxu0 0.0
        %1548 = vmatpush1.msra.mxu0 0.0
        %1549 = vmatprep.subr.mxu0 0.0
        %1550 = vmatpush1.msra.mxu0 0.0
        %1551 = vmatprep.subr.mxu0 0.0
        %1552 = vmatpush1.msra.mxu0 0.0
        %1553 = vmatprep.subr.mxu0 0.0
        %1554 = vmatpush1.msra.mxu0 0.0
        %1555 = vmatprep.subr.mxu0 0.0
        %1556 = vmatpush1.msra.mxu0 0.0
        %1557 = vmatprep.subr.mxu0 0.0
        %1558 = vmatpush1.msra.mxu0 0.0
        %1559 = vmatprep.subr.mxu0 0.0
        %1560 = vmatpush1.msra.mxu0 0.0
        %1561 = vmatprep.subr.mxu0 0.0
        %1562 = vmatpush1.msra.mxu0 0.0
        %1563 = vmatprep.subr.mxu0 0.0
        %1564 = vmatpush1.msra.mxu0 0.0
        %1565 = vmatprep.subr.mxu0 0.0
        %1566 = vmatpush1.msra.mxu0 0.0
        %1567 = vmatprep.subr.mxu0 0.0
        %1568 = vmatpush1.msra.mxu0 0.0
        %1569 = vmatprep.subr.mxu0 0.0
        %1570 = vmatpush1.msra.mxu0 0.0
        %1571 = vmatprep.mubr.f32.mxu0 0.0
        %1572 = vmatmul.mubr.f32.gmra.mrb[0].mxu0 %v1472
        %v1573 = vpop.f32.mrb[0].mxu0
        %v1574 = vadd.f32 0.0, %v1573
        %v1575 = vpop.f32.mrb[0].mxu0
        %1576 = vmatprep.mubr.f32.mxu0 0.0
        %1577 = vmatmul.mubr.f32.gmra.mrb[0].mxu0 %v1477
        %v1578 = vpop.f32.mrb[0].mxu0
        %v1579 = vadd.f32 0.0, %v1578
        %v1580 = vpop.f32.mrb[0].mxu0
        %1581 = vmatprep.mubr.f32.mxu0 0.0
        %1582 = vmatmul.mubr.f32.gmra.mrb[0].mxu0 %v1482
        %v1583 = vpop.f32.mrb[0].mxu0
        %v1584 = vadd.f32 0.0, %v1583
        %v1585 = vpop.f32.mrb[0].mxu0
        %1586 = vmatprep.mubr.f32.mxu0 0.0
        %1587 = vmatmul.mubr.f32.gmra.mrb[0].mxu0 %v1487
        %v1588 = vpop.f32.mrb[0].mxu0
        %v1589 = vadd.f32 0.0, %v1588
        %v1590 = vpop.f32.mrb[0].mxu0
        %1591 = vdwg.mxu0
        %v1592 = vadd.f32 %v1384, %v1574
        %v1593 = vadd.f32 %v1385, %v1579
        %v1594 = vadd.f32 %v1386, %v1584
        %v1595 = vadd.f32 %v1387, %v1589
        %s1596 = scalar_lea.vmem %s4, 160
        %v1597 = vld [vmem:[%s1596] sm:$0xff]
        %v1598 = vld [vmem:[%s1596 + $0x8] sm:$0xff]
        %v1599 = vld [vmem:[%s1596 + $0x10] sm:$0xff]
        %v1600 = vld [vmem:[%s1596 + $0x18] sm:$0xff]
        %v1602 = vsel %vm569, %v1597, 0
        %v1605 = vsel %vm569, %v1598, 0
        %v1608 = vsel %vm569, %v1599, 0
        %v1611 = vsel %vm569, %v1600, 0
        %1613 = vmatprep.subr.mxu0 0.0
        %1614 = vmatpush1.msra.mxu0 %v561
        %1615 = vmatprep.subr.mxu0 0.0
        %1616 = vmatpush1.msra.mxu0 %v562
        %1617 = vmatprep.subr.mxu0 0.0
        %1618 = vmatpush1.msra.mxu0 %v563
        %1619 = vmatprep.subr.mxu0 0.0
        %1620 = vmatpush1.msra.mxu0 %v564
        %1621 = vmatprep.subr.mxu0 0.0
        %1622 = vmatpush1.msra.mxu0 %v565
        %1623 = vmatprep.subr.mxu0 0.0
        %1624 = vmatpush1.msra.mxu0 %v566
        %1625 = vmatprep.subr.mxu0 0.0
        %1626 = vmatpush1.msra.mxu0 %v567
        %1627 = vmatprep.subr.mxu0 0.0
        %1628 = vmatpush1.msra.mxu0 %v568
        %1629 = vmatprep.subr.mxu0 0.0
        %1630 = vmatpush1.msra.mxu0 0.0
        %1631 = vmatprep.subr.mxu0 0.0
        %1632 = vmatpush1.msra.mxu0 0.0
        %1633 = vmatprep.subr.mxu0 0.0
        %1634 = vmatpush1.msra.mxu0 0.0
        %1635 = vmatprep.subr.mxu0 0.0
        %1636 = vmatpush1.msra.mxu0 0.0
        %1637 = vmatprep.subr.mxu0 0.0
        %1638 = vmatpush1.msra.mxu0 0.0
        %1639 = vmatprep.subr.mxu0 0.0
        %1640 = vmatpush1.msra.mxu0 0.0
        %1641 = vmatprep.subr.mxu0 0.0
        %1642 = vmatpush1.msra.mxu0 0.0
        %1643 = vmatprep.subr.mxu0 0.0
        %1644 = vmatpush1.msra.mxu0 0.0
        %1645 = vmatprep.subr.mxu0 0.0
        %1646 = vmatpush1.msra.mxu0 0.0
        %1647 = vmatprep.subr.mxu0 0.0
        %1648 = vmatpush1.msra.mxu0 0.0
        %1649 = vmatprep.subr.mxu0 0.0
        %1650 = vmatpush1.msra.mxu0 0.0
        %1651 = vmatprep.subr.mxu0 0.0
        %1652 = vmatpush1.msra.mxu0 0.0
        %1653 = vmatprep.subr.mxu0 0.0
        %1654 = vmatpush1.msra.mxu0 0.0
        %1655 = vmatprep.subr.mxu0 0.0
        %1656 = vmatpush1.msra.mxu0 0.0
        %1657 = vmatprep.subr.mxu0 0.0
        %1658 = vmatpush1.msra.mxu0 0.0
        %1659 = vmatprep.subr.mxu0 0.0
        %1660 = vmatpush1.msra.mxu0 0.0
        %1661 = vmatprep.subr.mxu0 0.0
        %1662 = vmatpush1.msra.mxu0 0.0
        %1663 = vmatprep.subr.mxu0 0.0
        %1664 = vmatpush1.msra.mxu0 0.0
        %1665 = vmatprep.subr.mxu0 0.0
        %1666 = vmatpush1.msra.mxu0 0.0
        %1667 = vmatprep.subr.mxu0 0.0
        %1668 = vmatpush1.msra.mxu0 0.0
        %1669 = vmatprep.subr.mxu0 0.0
        %1670 = vmatpush1.msra.mxu0 0.0
        %1671 = vmatprep.subr.mxu0 0.0
        %1672 = vmatpush1.msra.mxu0 0.0
        %1673 = vmatprep.subr.mxu0 0.0
        %1674 = vmatpush1.msra.mxu0 0.0
        %1675 = vmatprep.subr.mxu0 0.0
        %1676 = vmatpush1.msra.mxu0 0.0
        %1677 = vmatprep.mubr.f32.mxu0 0.0
        %1678 = vmatmul.mubr.f32.gmra.mrb[0].mxu0 %v1602
        %v1679 = vpop.f32.mrb[0].mxu0
        %v1680 = vadd.f32 0.0, %v1679
        %v1681 = vpop.f32.mrb[0].mxu0
        %1682 = vmatprep.mubr.f32.mxu0 0.0
        %1683 = vmatmul.mubr.f32.gmra.mrb[0].mxu0 %v1605
        %v1684 = vpop.f32.mrb[0].mxu0
        %v1685 = vadd.f32 0.0, %v1684
        %v1686 = vpop.f32.mrb[0].mxu0
        %1687 = vmatprep.mubr.f32.mxu0 0.0
        %1688 = vmatmul.mubr.f32.gmra.mrb[0].mxu0 %v1608
        %v1689 = vpop.f32.mrb[0].mxu0
        %v1690 = vadd.f32 0.0, %v1689
        %v1691 = vpop.f32.mrb[0].mxu0
        %1692 = vmatprep.mubr.f32.mxu0 0.0
        %1693 = vmatmul.mubr.f32.gmra.mrb[0].mxu0 %v1611
        %v1694 = vpop.f32.mrb[0].mxu0
        %v1695 = vadd.f32 0.0, %v1694
        %v1696 = vpop.f32.mrb[0].mxu0
        %1697 = vdwg.mxu0
        %s1698 = scalar_lea.vmem %s5, 640
        %v1699 = vld [vmem:[%s1698] sm:$0xff]
        %v1700 = vld [vmem:[%s1698 + $0x8] sm:$0xff]
        %v1701 = vld [vmem:[%s1698 + $0x10] sm:$0xff]
        %v1702 = vld [vmem:[%s1698 + $0x18] sm:$0xff]
        %v1703 = vld [vmem:[%s1698 + $0x20] sm:$0xff]
        %v1704 = vld [vmem:[%s1698 + $0x28] sm:$0xff]
        %v1705 = vld [vmem:[%s1698 + $0x30] sm:$0xff]
        %v1706 = vld [vmem:[%s1698 + $0x38] sm:$0xff]
        %v1707 = vld [vmem:[%s1698 + $0x40] sm:$0xff]
        %v1708 = vld [vmem:[%s1698 + $0x48] sm:$0xff]
        %v1709 = vld [vmem:[%s1698 + $0x50] sm:$0xff]
        %v1710 = vld [vmem:[%s1698 + $0x58] sm:$0xff]
        %v1711 = vld [vmem:[%s1698 + $0x60] sm:$0xff]
        %v1712 = vld [vmem:[%s1698 + $0x68] sm:$0xff]
        %v1713 = vld [vmem:[%s1698 + $0x70] sm:$0xff]
        %v1714 = vld [vmem:[%s1698 + $0x78] sm:$0xff]
        %1715 = vmatprep.subr.mxu0 0.0
        %1716 = vmatpush1.msra.mxu0 %v1699
        %1717 = vmatprep.subr.mxu0 0.0
        %1718 = vmatpush1.msra.mxu0 %v1700
        %1719 = vmatprep.subr.mxu0 0.0
        %1720 = vmatpush1.msra.mxu0 %v1701
        %1721 = vmatprep.subr.mxu0 0.0
        %1722 = vmatpush1.msra.mxu0 %v1702
        %1723 = vmatprep.subr.mxu0 0.0
        %1724 = vmatpush1.msra.mxu0 %v1703
        %1725 = vmatprep.subr.mxu0 0.0
        %1726 = vmatpush1.msra.mxu0 %v1704
        %1727 = vmatprep.subr.mxu0 0.0
        %1728 = vmatpush1.msra.mxu0 %v1705
        %1729 = vmatprep.subr.mxu0 0.0
        %1730 = vmatpush1.msra.mxu0 %v1706
        %1731 = vmatprep.subr.mxu0 0.0
        %1732 = vmatpush1.msra.mxu0 %v1707
        %1733 = vmatprep.subr.mxu0 0.0
        %1734 = vmatpush1.msra.mxu0 %v1708
        %1735 = vmatprep.subr.mxu0 0.0
        %1736 = vmatpush1.msra.mxu0 %v1709
        %1737 = vmatprep.subr.mxu0 0.0
        %1738 = vmatpush1.msra.mxu0 %v1710
        %1739 = vmatprep.subr.mxu0 0.0
        %1740 = vmatpush1.msra.mxu0 %v1711
        %1741 = vmatprep.subr.mxu0 0.0
        %1742 = vmatpush1.msra.mxu0 %v1712
        %1743 = vmatprep.subr.mxu0 0.0
        %1744 = vmatpush1.msra.mxu0 %v1713
        %1745 = vmatprep.subr.mxu0 0.0
        %1746 = vmatpush1.msra.mxu0 %v1714
        %1747 = vmatprep.subr.mxu0 0.0
        %1748 = vmatpush1.msra.mxu0 0.0
        %1749 = vmatprep.subr.mxu0 0.0
        %1750 = vmatpush1.msra.mxu0 0.0
        %1751 = vmatprep.subr.mxu0 0.0
        %1752 = vmatpush1.msra.mxu0 0.0
        %1753 = vmatprep.subr.mxu0 0.0
        %1754 = vmatpush1.msra.mxu0 0.0
        %1755 = vmatprep.subr.mxu0 0.0
        %1756 = vmatpush1.msra.mxu0 0.0
        %1757 = vmatprep.subr.mxu0 0.0
        %1758 = vmatpush1.msra.mxu0 0.0
        %1759 = vmatprep.subr.mxu0 0.0
        %1760 = vmatpush1.msra.mxu0 0.0
        %1761 = vmatprep.subr.mxu0 0.0
        %1762 = vmatpush1.msra.mxu0 0.0
        %1763 = vmatprep.subr.mxu0 0.0
        %1764 = vmatpush1.msra.mxu0 0.0
        %1765 = vmatprep.subr.mxu0 0.0
        %1766 = vmatpush1.msra.mxu0 0.0
        %1767 = vmatprep.subr.mxu0 0.0
        %1768 = vmatpush1.msra.mxu0 0.0
        %1769 = vmatprep.subr.mxu0 0.0
        %1770 = vmatpush1.msra.mxu0 0.0
        %1771 = vmatprep.subr.mxu0 0.0
        %1772 = vmatpush1.msra.mxu0 0.0
        %1773 = vmatprep.subr.mxu0 0.0
        %1774 = vmatpush1.msra.mxu0 0.0
        %1775 = vmatprep.subr.mxu0 0.0
        %1776 = vmatpush1.msra.mxu0 0.0
        %1777 = vmatprep.subr.mxu0 0.0
        %1778 = vmatpush1.msra.mxu0 0.0
        %1779 = vmatprep.mubr.f32.mxu0 0.0
        %1780 = vmatmul.mubr.f32.gmra.mrb[0].mxu0 %v1680
        %v1781 = vpop.f32.mrb[0].mxu0
        %v1782 = vadd.f32 0.0, %v1781
        %v1783 = vpop.f32.mrb[0].mxu0
        %1784 = vmatprep.mubr.f32.mxu0 0.0
        %1785 = vmatmul.mubr.f32.gmra.mrb[0].mxu0 %v1685
        %v1786 = vpop.f32.mrb[0].mxu0
        %v1787 = vadd.f32 0.0, %v1786
        %v1788 = vpop.f32.mrb[0].mxu0
        %1789 = vmatprep.mubr.f32.mxu0 0.0
        %1790 = vmatmul.mubr.f32.gmra.mrb[0].mxu0 %v1690
        %v1791 = vpop.f32.mrb[0].mxu0
        %v1792 = vadd.f32 0.0, %v1791
        %v1793 = vpop.f32.mrb[0].mxu0
        %1794 = vmatprep.mubr.f32.mxu0 0.0
        %1795 = vmatmul.mubr.f32.gmra.mrb[0].mxu0 %v1695
        %v1796 = vpop.f32.mrb[0].mxu0
        %v1797 = vadd.f32 0.0, %v1796
        %v1798 = vpop.f32.mrb[0].mxu0
        %1799 = vdwg.mxu0
        %v1800 = vadd.f32 %v1592, %v1782
        %v1801 = vadd.f32 %v1593, %v1787
        %v1802 = vadd.f32 %v1594, %v1792
        %v1803 = vadd.f32 %v1595, %v1797
        %s1804 = scalar_lea.vmem %s4, 192
        %v1805 = vld [vmem:[%s1804] sm:$0xff]
        %v1806 = vld [vmem:[%s1804 + $0x8] sm:$0xff]
        %v1807 = vld [vmem:[%s1804 + $0x10] sm:$0xff]
        %v1808 = vld [vmem:[%s1804 + $0x18] sm:$0xff]
        %v1810 = vsel %vm569, %v1805, 0
        %v1813 = vsel %vm569, %v1806, 0
        %v1816 = vsel %vm569, %v1807, 0
        %v1819 = vsel %vm569, %v1808, 0
        %1821 = vmatprep.subr.mxu0 0.0
        %1822 = vmatpush1.msra.mxu0 %v561
        %1823 = vmatprep.subr.mxu0 0.0
        %1824 = vmatpush1.msra.mxu0 %v562
        %1825 = vmatprep.subr.mxu0 0.0
        %1826 = vmatpush1.msra.mxu0 %v563
        %1827 = vmatprep.subr.mxu0 0.0
        %1828 = vmatpush1.msra.mxu0 %v564
        %1829 = vmatprep.subr.mxu0 0.0
        %1830 = vmatpush1.msra.mxu0 %v565
        %1831 = vmatprep.subr.mxu0 0.0
        %1832 = vmatpush1.msra.mxu0 %v566
        %1833 = vmatprep.subr.mxu0 0.0
        %1834 = vmatpush1.msra.mxu0 %v567
        %1835 = vmatprep.subr.mxu0 0.0
        %1836 = vmatpush1.msra.mxu0 %v568
        %1837 = vmatprep.subr.mxu0 0.0
        %1838 = vmatpush1.msra.mxu0 0.0
        %1839 = vmatprep.subr.mxu0 0.0
        %1840 = vmatpush1.msra.mxu0 0.0
        %1841 = vmatprep.subr.mxu0 0.0
        %1842 = vmatpush1.msra.mxu0 0.0
        %1843 = vmatprep.subr.mxu0 0.0
        %1844 = vmatpush1.msra.mxu0 0.0
        %1845 = vmatprep.subr.mxu0 0.0
        %1846 = vmatpush1.msra.mxu0 0.0
        %1847 = vmatprep.subr.mxu0 0.0
        %1848 = vmatpush1.msra.mxu0 0.0
        %1849 = vmatprep.subr.mxu0 0.0
        %1850 = vmatpush1.msra.mxu0 0.0
        %1851 = vmatprep.subr.mxu0 0.0
        %1852 = vmatpush1.msra.mxu0 0.0
        %1853 = vmatprep.subr.mxu0 0.0
        %1854 = vmatpush1.msra.mxu0 0.0
        %1855 = vmatprep.subr.mxu0 0.0
        %1856 = vmatpush1.msra.mxu0 0.0
        %1857 = vmatprep.subr.mxu0 0.0
        %1858 = vmatpush1.msra.mxu0 0.0
        %1859 = vmatprep.subr.mxu0 0.0
        %1860 = vmatpush1.msra.mxu0 0.0
        %1861 = vmatprep.subr.mxu0 0.0
        %1862 = vmatpush1.msra.mxu0 0.0
        %1863 = vmatprep.subr.mxu0 0.0
        %1864 = vmatpush1.msra.mxu0 0.0
        %1865 = vmatprep.subr.mxu0 0.0
        %1866 = vmatpush1.msra.mxu0 0.0
        %1867 = vmatprep.subr.mxu0 0.0
        %1868 = vmatpush1.msra.mxu0 0.0
        %1869 = vmatprep.subr.mxu0 0.0
        %1870 = vmatpush1.msra.mxu0 0.0
        %1871 = vmatprep.subr.mxu0 0.0
        %1872 = vmatpush1.msra.mxu0 0.0
        %1873 = vmatprep.subr.mxu0 0.0
        %1874 = vmatpush1.msra.mxu0 0.0
        %1875 = vmatprep.subr.mxu0 0.0
        %1876 = vmatpush1.msra.mxu0 0.0
        %1877 = vmatprep.subr.mxu0 0.0
        %1878 = vmatpush1.msra.mxu0 0.0
        %1879 = vmatprep.subr.mxu0 0.0
        %1880 = vmatpush1.msra.mxu0 0.0
        %1881 = vmatprep.subr.mxu0 0.0
        %1882 = vmatpush1.msra.mxu0 0.0
        %1883 = vmatprep.subr.mxu0 0.0
        %1884 = vmatpush1.msra.mxu0 0.0
        %1885 = vmatprep.mubr.f32.mxu0 0.0
        %1886 = vmatmul.mubr.f32.gmra.mrb[0].mxu0 %v1810
        %v1887 = vpop.f32.mrb[0].mxu0
        %v1888 = vadd.f32 0.0, %v1887
        %v1889 = vpop.f32.mrb[0].mxu0
        %1890 = vmatprep.mubr.f32.mxu0 0.0
        %1891 = vmatmul.mubr.f32.gmra.mrb[0].mxu0 %v1813
        %v1892 = vpop.f32.mrb[0].mxu0
        %v1893 = vadd.f32 0.0, %v1892
        %v1894 = vpop.f32.mrb[0].mxu0
        %1895 = vmatprep.mubr.f32.mxu0 0.0
        %1896 = vmatmul.mubr.f32.gmra.mrb[0].mxu0 %v1816
        %v1897 = vpop.f32.mrb[0].mxu0
        %v1898 = vadd.f32 0.0, %v1897
        %v1899 = vpop.f32.mrb[0].mxu0
        %1900 = vmatprep.mubr.f32.mxu0 0.0
        %1901 = vmatmul.mubr.f32.gmra.mrb[0].mxu0 %v1819
        %v1902 = vpop.f32.mrb[0].mxu0
        %v1903 = vadd.f32 0.0, %v1902
        %v1904 = vpop.f32.mrb[0].mxu0
        %1905 = vdwg.mxu0
        %s1906 = scalar_lea.vmem %s5, 768
        %v1907 = vld [vmem:[%s1906] sm:$0xff]
        %v1908 = vld [vmem:[%s1906 + $0x8] sm:$0xff]
        %v1909 = vld [vmem:[%s1906 + $0x10] sm:$0xff]
        %v1910 = vld [vmem:[%s1906 + $0x18] sm:$0xff]
        %v1911 = vld [vmem:[%s1906 + $0x20] sm:$0xff]
        %v1912 = vld [vmem:[%s1906 + $0x28] sm:$0xff]
        %v1913 = vld [vmem:[%s1906 + $0x30] sm:$0xff]
        %v1914 = vld [vmem:[%s1906 + $0x38] sm:$0xff]
        %v1915 = vld [vmem:[%s1906 + $0x40] sm:$0xff]
        %v1916 = vld [vmem:[%s1906 + $0x48] sm:$0xff]
        %v1917 = vld [vmem:[%s1906 + $0x50] sm:$0xff]
        %v1918 = vld [vmem:[%s1906 + $0x58] sm:$0xff]
        %v1919 = vld [vmem:[%s1906 + $0x60] sm:$0xff]
        %v1920 = vld [vmem:[%s1906 + $0x68] sm:$0xff]
        %v1921 = vld [vmem:[%s1906 + $0x70] sm:$0xff]
        %v1922 = vld [vmem:[%s1906 + $0x78] sm:$0xff]
        %1923 = vmatprep.subr.mxu0 0.0
        %1924 = vmatpush1.msra.mxu0 %v1907
        %1925 = vmatprep.subr.mxu0 0.0
        %1926 = vmatpush1.msra.mxu0 %v1908
        %1927 = vmatprep.subr.mxu0 0.0
        %1928 = vmatpush1.msra.mxu0 %v1909
        %1929 = vmatprep.subr.mxu0 0.0
        %1930 = vmatpush1.msra.mxu0 %v1910
        %1931 = vmatprep.subr.mxu0 0.0
        %1932 = vmatpush1.msra.mxu0 %v1911
        %1933 = vmatprep.subr.mxu0 0.0
        %1934 = vmatpush1.msra.mxu0 %v1912
        %1935 = vmatprep.subr.mxu0 0.0
        %1936 = vmatpush1.msra.mxu0 %v1913
        %1937 = vmatprep.subr.mxu0 0.0
        %1938 = vmatpush1.msra.mxu0 %v1914
        %1939 = vmatprep.subr.mxu0 0.0
        %1940 = vmatpush1.msra.mxu0 %v1915
        %1941 = vmatprep.subr.mxu0 0.0
        %1942 = vmatpush1.msra.mxu0 %v1916
        %1943 = vmatprep.subr.mxu0 0.0
        %1944 = vmatpush1.msra.mxu0 %v1917
        %1945 = vmatprep.subr.mxu0 0.0
        %1946 = vmatpush1.msra.mxu0 %v1918
        %1947 = vmatprep.subr.mxu0 0.0
        %1948 = vmatpush1.msra.mxu0 %v1919
        %1949 = vmatprep.subr.mxu0 0.0
        %1950 = vmatpush1.msra.mxu0 %v1920
        %1951 = vmatprep.subr.mxu0 0.0
        %1952 = vmatpush1.msra.mxu0 %v1921
        %1953 = vmatprep.subr.mxu0 0.0
        %1954 = vmatpush1.msra.mxu0 %v1922
        %1955 = vmatprep.subr.mxu0 0.0
        %1956 = vmatpush1.msra.mxu0 0.0
        %1957 = vmatprep.subr.mxu0 0.0
        %1958 = vmatpush1.msra.mxu0 0.0
        %1959 = vmatprep.subr.mxu0 0.0
        %1960 = vmatpush1.msra.mxu0 0.0
        %1961 = vmatprep.subr.mxu0 0.0
        %1962 = vmatpush1.msra.mxu0 0.0
        %1963 = vmatprep.subr.mxu0 0.0
        %1964 = vmatpush1.msra.mxu0 0.0
        %1965 = vmatprep.subr.mxu0 0.0
        %1966 = vmatpush1.msra.mxu0 0.0
        %1967 = vmatprep.subr.mxu0 0.0
        %1968 = vmatpush1.msra.mxu0 0.0
        %1969 = vmatprep.subr.mxu0 0.0
        %1970 = vmatpush1.msra.mxu0 0.0
        %1971 = vmatprep.subr.mxu0 0.0
        %1972 = vmatpush1.msra.mxu0 0.0
        %1973 = vmatprep.subr.mxu0 0.0
        %1974 = vmatpush1.msra.mxu0 0.0
        %1975 = vmatprep.subr.mxu0 0.0
        %1976 = vmatpush1.msra.mxu0 0.0
        %1977 = vmatprep.subr.mxu0 0.0
        %1978 = vmatpush1.msra.mxu0 0.0
        %1979 = vmatprep.subr.mxu0 0.0
        %1980 = vmatpush1.msra.mxu0 0.0
        %1981 = vmatprep.subr.mxu0 0.0
        %1982 = vmatpush1.msra.mxu0 0.0
        %1983 = vmatprep.subr.mxu0 0.0
        %1984 = vmatpush1.msra.mxu0 0.0
        %1985 = vmatprep.subr.mxu0 0.0
        %1986 = vmatpush1.msra.mxu0 0.0
        %1987 = vmatprep.mubr.f32.mxu0 0.0
        %1988 = vmatmul.mubr.f32.gmra.mrb[0].mxu0 %v1888
        %v1989 = vpop.f32.mrb[0].mxu0
        %v1990 = vadd.f32 0.0, %v1989
        %v1991 = vpop.f32.mrb[0].mxu0
        %1992 = vmatprep.mubr.f32.mxu0 0.0
        %1993 = vmatmul.mubr.f32.gmra.mrb[0].mxu0 %v1893
        %v1994 = vpop.f32.mrb[0].mxu0
        %v1995 = vadd.f32 0.0, %v1994
        %v1996 = vpop.f32.mrb[0].mxu0
        %1997 = vmatprep.mubr.f32.mxu0 0.0
        %1998 = vmatmul.mubr.f32.gmra.mrb[0].mxu0 %v1898
        %v1999 = vpop.f32.mrb[0].mxu0
        %v2000 = vadd.f32 0.0, %v1999
        %v2001 = vpop.f32.mrb[0].mxu0
        %2002 = vmatprep.mubr.f32.mxu0 0.0
        %2003 = vmatmul.mubr.f32.gmra.mrb[0].mxu0 %v1903
        %v2004 = vpop.f32.mrb[0].mxu0
        %v2005 = vadd.f32 0.0, %v2004
        %v2006 = vpop.f32.mrb[0].mxu0
        %2007 = vdwg.mxu0
        %v2008 = vadd.f32 %v1800, %v1990
        %v2009 = vadd.f32 %v1801, %v1995
        %v2010 = vadd.f32 %v1802, %v2000
        %v2011 = vadd.f32 %v1803, %v2005
        %s2012 = scalar_lea.vmem %s4, 224
        %v2013 = vld [vmem:[%s2012] sm:$0xff]
        %v2014 = vld [vmem:[%s2012 + $0x8] sm:$0xff]
        %v2015 = vld [vmem:[%s2012 + $0x10] sm:$0xff]
        %v2016 = vld [vmem:[%s2012 + $0x18] sm:$0xff]
        %v2018 = vsel %vm569, %v2013, 0
        %v2021 = vsel %vm569, %v2014, 0
        %v2024 = vsel %vm569, %v2015, 0
        %v2027 = vsel %vm569, %v2016, 0
        %2029 = vmatprep.subr.mxu0 0.0
        %2030 = vmatpush1.msra.mxu0 %v561
        %2031 = vmatprep.subr.mxu0 0.0
        %2032 = vmatpush1.msra.mxu0 %v562
        %2033 = vmatprep.subr.mxu0 0.0
        %2034 = vmatpush1.msra.mxu0 %v563
        %2035 = vmatprep.subr.mxu0 0.0
        %2036 = vmatpush1.msra.mxu0 %v564
        %2037 = vmatprep.subr.mxu0 0.0
        %2038 = vmatpush1.msra.mxu0 %v565
        %2039 = vmatprep.subr.mxu0 0.0
        %2040 = vmatpush1.msra.mxu0 %v566
        %2041 = vmatprep.subr.mxu0 0.0
        %2042 = vmatpush1.msra.mxu0 %v567
        %2043 = vmatprep.subr.mxu0 0.0
        %2044 = vmatpush1.msra.mxu0 %v568
        %2045 = vmatprep.subr.mxu0 0.0
        %2046 = vmatpush1.msra.mxu0 0.0
        %2047 = vmatprep.subr.mxu0 0.0
        %2048 = vmatpush1.msra.mxu0 0.0
        %2049 = vmatprep.subr.mxu0 0.0
        %2050 = vmatpush1.msra.mxu0 0.0
        %2051 = vmatprep.subr.mxu0 0.0
        %2052 = vmatpush1.msra.mxu0 0.0
        %2053 = vmatprep.subr.mxu0 0.0
        %2054 = vmatpush1.msra.mxu0 0.0
        %2055 = vmatprep.subr.mxu0 0.0
        %2056 = vmatpush1.msra.mxu0 0.0
        %2057 = vmatprep.subr.mxu0 0.0
        %2058 = vmatpush1.msra.mxu0 0.0
        %2059 = vmatprep.subr.mxu0 0.0
        %2060 = vmatpush1.msra.mxu0 0.0
        %2061 = vmatprep.subr.mxu0 0.0
        %2062 = vmatpush1.msra.mxu0 0.0
        %2063 = vmatprep.subr.mxu0 0.0
        %2064 = vmatpush1.msra.mxu0 0.0
        %2065 = vmatprep.subr.mxu0 0.0
        %2066 = vmatpush1.msra.mxu0 0.0
        %2067 = vmatprep.subr.mxu0 0.0
        %2068 = vmatpush1.msra.mxu0 0.0
        %2069 = vmatprep.subr.mxu0 0.0
        %2070 = vmatpush1.msra.mxu0 0.0
        %2071 = vmatprep.subr.mxu0 0.0
        %2072 = vmatpush1.msra.mxu0 0.0
        %2073 = vmatprep.subr.mxu0 0.0
        %2074 = vmatpush1.msra.mxu0 0.0
        %2075 = vmatprep.subr.mxu0 0.0
        %2076 = vmatpush1.msra.mxu0 0.0
        %2077 = vmatprep.subr.mxu0 0.0
        %2078 = vmatpush1.msra.mxu0 0.0
        %2079 = vmatprep.subr.mxu0 0.0
        %2080 = vmatpush1.msra.mxu0 0.0
        %2081 = vmatprep.subr.mxu0 0.0
        %2082 = vmatpush1.msra.mxu0 0.0
        %2083 = vmatprep.subr.mxu0 0.0
        %2084 = vmatpush1.msra.mxu0 0.0
        %2085 = vmatprep.subr.mxu0 0.0
        %2086 = vmatpush1.msra.mxu0 0.0
        %2087 = vmatprep.subr.mxu0 0.0
        %2088 = vmatpush1.msra.mxu0 0.0
        %2089 = vmatprep.subr.mxu0 0.0
        %2090 = vmatpush1.msra.mxu0 0.0
        %2091 = vmatprep.subr.mxu0 0.0
        %2092 = vmatpush1.msra.mxu0 0.0
        %2093 = vmatprep.mubr.f32.mxu0 0.0
        %2094 = vmatmul.mubr.f32.gmra.mrb[0].mxu0 %v2018
        %v2095 = vpop.f32.mrb[0].mxu0
        %v2096 = vadd.f32 0.0, %v2095
        %v2097 = vpop.f32.mrb[0].mxu0
        %2098 = vmatprep.mubr.f32.mxu0 0.0
        %2099 = vmatmul.mubr.f32.gmra.mrb[0].mxu0 %v2021
        %v2100 = vpop.f32.mrb[0].mxu0
        %v2101 = vadd.f32 0.0, %v2100
        %v2102 = vpop.f32.mrb[0].mxu0
        %2103 = vmatprep.mubr.f32.mxu0 0.0
        %2104 = vmatmul.mubr.f32.gmra.mrb[0].mxu0 %v2024
        %v2105 = vpop.f32.mrb[0].mxu0
        %v2106 = vadd.f32 0.0, %v2105
        %v2107 = vpop.f32.mrb[0].mxu0
        %2108 = vmatprep.mubr.f32.mxu0 0.0
        %2109 = vmatmul.mubr.f32.gmra.mrb[0].mxu0 %v2027
        %v2110 = vpop.f32.mrb[0].mxu0
        %v2111 = vadd.f32 0.0, %v2110
        %v2112 = vpop.f32.mrb[0].mxu0
        %2113 = vdwg.mxu0
        %s2114 = scalar_lea.vmem %s5, 896
        %v2115 = vld [vmem:[%s2114] sm:$0xff]
        %v2116 = vld [vmem:[%s2114 + $0x8] sm:$0xff]
        %v2117 = vld [vmem:[%s2114 + $0x10] sm:$0xff]
        %v2118 = vld [vmem:[%s2114 + $0x18] sm:$0xff]
        %v2119 = vld [vmem:[%s2114 + $0x20] sm:$0xff]
        %v2120 = vld [vmem:[%s2114 + $0x28] sm:$0xff]
        %v2121 = vld [vmem:[%s2114 + $0x30] sm:$0xff]
        %v2122 = vld [vmem:[%s2114 + $0x38] sm:$0xff]
        %v2123 = vld [vmem:[%s2114 + $0x40] sm:$0xff]
        %v2124 = vld [vmem:[%s2114 + $0x48] sm:$0xff]
        %v2125 = vld [vmem:[%s2114 + $0x50] sm:$0xff]
        %v2126 = vld [vmem:[%s2114 + $0x58] sm:$0xff]
        %v2127 = vld [vmem:[%s2114 + $0x60] sm:$0xff]
        %v2128 = vld [vmem:[%s2114 + $0x68] sm:$0xff]
        %v2129 = vld [vmem:[%s2114 + $0x70] sm:$0xff]
        %v2130 = vld [vmem:[%s2114 + $0x78] sm:$0xff]
        %2131 = vmatprep.subr.mxu0 0.0
        %2132 = vmatpush1.msra.mxu0 %v2115
        %2133 = vmatprep.subr.mxu0 0.0
        %2134 = vmatpush1.msra.mxu0 %v2116
        %2135 = vmatprep.subr.mxu0 0.0
        %2136 = vmatpush1.msra.mxu0 %v2117
        %2137 = vmatprep.subr.mxu0 0.0
        %2138 = vmatpush1.msra.mxu0 %v2118
        %2139 = vmatprep.subr.mxu0 0.0
        %2140 = vmatpush1.msra.mxu0 %v2119
        %2141 = vmatprep.subr.mxu0 0.0
        %2142 = vmatpush1.msra.mxu0 %v2120
        %2143 = vmatprep.subr.mxu0 0.0
        %2144 = vmatpush1.msra.mxu0 %v2121
        %2145 = vmatprep.subr.mxu0 0.0
        %2146 = vmatpush1.msra.mxu0 %v2122
        %2147 = vmatprep.subr.mxu0 0.0
        %2148 = vmatpush1.msra.mxu0 %v2123
        %2149 = vmatprep.subr.mxu0 0.0
        %2150 = vmatpush1.msra.mxu0 %v2124
        %2151 = vmatprep.subr.mxu0 0.0
        %2152 = vmatpush1.msra.mxu0 %v2125
        %2153 = vmatprep.subr.mxu0 0.0
        %2154 = vmatpush1.msra.mxu0 %v2126
        %2155 = vmatprep.subr.mxu0 0.0
        %2156 = vmatpush1.msra.mxu0 %v2127
        %2157 = vmatprep.subr.mxu0 0.0
        %2158 = vmatpush1.msra.mxu0 %v2128
        %2159 = vmatprep.subr.mxu0 0.0
        %2160 = vmatpush1.msra.mxu0 %v2129
        %2161 = vmatprep.subr.mxu0 0.0
        %2162 = vmatpush1.msra.mxu0 %v2130
        %2163 = vmatprep.subr.mxu0 0.0
        %2164 = vmatpush1.msra.mxu0 0.0
        %2165 = vmatprep.subr.mxu0 0.0
        %2166 = vmatpush1.msra.mxu0 0.0
        %2167 = vmatprep.subr.mxu0 0.0
        %2168 = vmatpush1.msra.mxu0 0.0
        %2169 = vmatprep.subr.mxu0 0.0
        %2170 = vmatpush1.msra.mxu0 0.0
        %2171 = vmatprep.subr.mxu0 0.0
        %2172 = vmatpush1.msra.mxu0 0.0
        %2173 = vmatprep.subr.mxu0 0.0
        %2174 = vmatpush1.msra.mxu0 0.0
        %2175 = vmatprep.subr.mxu0 0.0
        %2176 = vmatpush1.msra.mxu0 0.0
        %2177 = vmatprep.subr.mxu0 0.0
        %2178 = vmatpush1.msra.mxu0 0.0
        %2179 = vmatprep.subr.mxu0 0.0
        %2180 = vmatpush1.msra.mxu0 0.0
        %2181 = vmatprep.subr.mxu0 0.0
        %2182 = vmatpush1.msra.mxu0 0.0
        %2183 = vmatprep.subr.mxu0 0.0
        %2184 = vmatpush1.msra.mxu0 0.0
        %2185 = vmatprep.subr.mxu0 0.0
        %2186 = vmatpush1.msra.mxu0 0.0
        %2187 = vmatprep.subr.mxu0 0.0
        %2188 = vmatpush1.msra.mxu0 0.0
        %2189 = vmatprep.subr.mxu0 0.0
        %2190 = vmatpush1.msra.mxu0 0.0
        %2191 = vmatprep.subr.mxu0 0.0
        %2192 = vmatpush1.msra.mxu0 0.0
        %2193 = vmatprep.subr.mxu0 0.0
        %2194 = vmatpush1.msra.mxu0 0.0
        %2195 = vmatprep.mubr.f32.mxu0 0.0
        %2196 = vmatmul.mubr.f32.gmra.mrb[0].mxu0 %v2096
        %v2197 = vpop.f32.mrb[0].mxu0
        %v2198 = vadd.f32 0.0, %v2197
        %v2199 = vpop.f32.mrb[0].mxu0
        %2200 = vmatprep.mubr.f32.mxu0 0.0
        %2201 = vmatmul.mubr.f32.gmra.mrb[0].mxu0 %v2101
        %v2202 = vpop.f32.mrb[0].mxu0
        %v2203 = vadd.f32 0.0, %v2202
        %v2204 = vpop.f32.mrb[0].mxu0
        %2205 = vmatprep.mubr.f32.mxu0 0.0
        %2206 = vmatmul.mubr.f32.gmra.mrb[0].mxu0 %v2106
        %v2207 = vpop.f32.mrb[0].mxu0
        %v2208 = vadd.f32 0.0, %v2207
        %v2209 = vpop.f32.mrb[0].mxu0
        %2210 = vmatprep.mubr.f32.mxu0 0.0
        %2211 = vmatmul.mubr.f32.gmra.mrb[0].mxu0 %v2111
        %v2212 = vpop.f32.mrb[0].mxu0
        %v2213 = vadd.f32 0.0, %v2212
        %v2214 = vpop.f32.mrb[0].mxu0
        %2215 = vdwg.mxu0
        %v2216 = vadd.f32 %v2008, %v2198
        %v2217 = vadd.f32 %v2009, %v2203
        %v2218 = vadd.f32 %v2010, %v2208
        %v2219 = vadd.f32 %v2011, %v2213
        %v2220 = vld [vmem:[%s6] sm:$0x1]
        %v2222 = vlaneseq
        %v2223 = vshrl.u32 %v2222, 7
        %v2224 = vsub.s32 0, %v2223
        %v2225 = vrot.slane %v2220, %v2224
        %v2227 = vadd.f32 %v2216, %v2225
        %v2228 = vadd.f32 %v2217, %v2225
        %v2229 = vadd.f32 %v2218, %v2225
        %v2230 = vadd.f32 %v2219, %v2225
        %vm2231 = vcmp.gt.f32.partialorder %v2227, 0.0
        %vm2232 = vcmp.gt.f32.partialorder %v2228, 0.0
        %vm2233 = vcmp.gt.f32.partialorder %v2229, 0.0
        %vm2234 = vcmp.gt.f32.partialorder %v2230, 0.0
        %v2235 = vstv %s375
        %v2236 = vmul.f32 %v2235, %v2227
        %v2237 = vmul.f32 %v2235, %v2228
        %v2238 = vmul.f32 %v2235, %v2229
        %v2239 = vmul.f32 %v2235, %v2230
        %v2240 = vsel %vm2231, %v2227, %v2236
        %v2241 = vsel %vm2232, %v2228, %v2237
        %v2242 = vsel %vm2233, %v2229, %v2238
        %v2243 = vsel %vm2234, %v2230, %v2239
        %2244 = vst [vmem:[#allocation3] sm:$0xff] %v2240
        %2245 = vst [vmem:[#allocation3 + $0x8] sm:$0xff] %v2241
        %2246 = vst [vmem:[#allocation3 + $0x10] sm:$0xff] %v2242
        %2247 = vst [vmem:[#allocation3 + $0x18] sm:$0xff] %v2243
        %v2248 = vld [vmem:[%s7] sm:$0xff]
        %v2249 = vld [vmem:[%s7 + $0x8] sm:$0xff]
        %v2250 = vld [vmem:[#allocation3] sm:$0xff]
        %v2251 = vld [vmem:[#allocation3 + $0x8] sm:$0xff]
        %v2252 = vld [vmem:[#allocation3 + $0x10] sm:$0xff]
        %v2253 = vld [vmem:[#allocation3 + $0x18] sm:$0xff]
        %vm2254 = vcmask 261120
        %v2256 = vsel %vm2254, %v2248, 0
        %v2259 = vsel %vm2254, %v2249, 0
        %2261 = vmatprep.subr.mxu0 0.0
        %2262 = vmatpush1.msra.mxu0 %v2250
        %2263 = vmatprep.subr.mxu0 0.0
        %2264 = vmatpush1.msra.mxu0 %v2251
        %2265 = vmatprep.subr.mxu0 0.0
        %2266 = vmatpush1.msra.mxu0 %v2252
        %2267 = vmatprep.subr.mxu0 0.0
        %2268 = vmatpush1.msra.mxu0 %v2253
        %2269 = vmatprep.subr.mxu0 0.0
        %2270 = vmatpush1.msra.mxu0 0.0
        %2271 = vmatprep.subr.mxu0 0.0
        %2272 = vmatpush1.msra.mxu0 0.0
        %2273 = vmatprep.subr.mxu0 0.0
        %2274 = vmatpush1.msra.mxu0 0.0
        %2275 = vmatprep.subr.mxu0 0.0
        %2276 = vmatpush1.msra.mxu0 0.0
        %2277 = vmatprep.subr.mxu0 0.0
        %2278 = vmatpush1.msra.mxu0 0.0
        %2279 = vmatprep.subr.mxu0 0.0
        %2280 = vmatpush1.msra.mxu0 0.0
        %2281 = vmatprep.subr.mxu0 0.0
        %2282 = vmatpush1.msra.mxu0 0.0
        %2283 = vmatprep.subr.mxu0 0.0
        %2284 = vmatpush1.msra.mxu0 0.0
        %2285 = vmatprep.subr.mxu0 0.0
        %2286 = vmatpush1.msra.mxu0 0.0
        %2287 = vmatprep.subr.mxu0 0.0
        %2288 = vmatpush1.msra.mxu0 0.0
        %2289 = vmatprep.subr.mxu0 0.0
        %2290 = vmatpush1.msra.mxu0 0.0
        %2291 = vmatprep.subr.mxu0 0.0
        %2292 = vmatpush1.msra.mxu0 0.0
        %2293 = vmatprep.subr.mxu0 0.0
        %2294 = vmatpush1.msra.mxu0 0.0
        %2295 = vmatprep.subr.mxu0 0.0
        %2296 = vmatpush1.msra.mxu0 0.0
        %2297 = vmatprep.subr.mxu0 0.0
        %2298 = vmatpush1.msra.mxu0 0.0
        %2299 = vmatprep.subr.mxu0 0.0
        %2300 = vmatpush1.msra.mxu0 0.0
        %2301 = vmatprep.subr.mxu0 0.0
        %2302 = vmatpush1.msra.mxu0 0.0
        %2303 = vmatprep.subr.mxu0 0.0
        %2304 = vmatpush1.msra.mxu0 0.0
        %2305 = vmatprep.subr.mxu0 0.0
        %2306 = vmatpush1.msra.mxu0 0.0
        %2307 = vmatprep.subr.mxu0 0.0
        %2308 = vmatpush1.msra.mxu0 0.0
        %2309 = vmatprep.subr.mxu0 0.0
        %2310 = vmatpush1.msra.mxu0 0.0
        %2311 = vmatprep.subr.mxu0 0.0
        %2312 = vmatpush1.msra.mxu0 0.0
        %2313 = vmatprep.subr.mxu0 0.0
        %2314 = vmatpush1.msra.mxu0 0.0
        %2315 = vmatprep.subr.mxu0 0.0
        %2316 = vmatpush1.msra.mxu0 0.0
        %2317 = vmatprep.subr.mxu0 0.0
        %2318 = vmatpush1.msra.mxu0 0.0
        %2319 = vmatprep.subr.mxu0 0.0
        %2320 = vmatpush1.msra.mxu0 0.0
        %2321 = vmatprep.subr.mxu0 0.0
        %2322 = vmatpush1.msra.mxu0 0.0
        %2323 = vmatprep.subr.mxu0 0.0
        %2324 = vmatpush1.msra.mxu0 0.0
        %2325 = vmatprep.mubr.f32.mxu0 0.0
        %2326 = vmatmul.mubr.f32.gmra.mrb[0].mxu0 %v2256
        %v2327 = vpop.f32.mrb[0].mxu0
        %v2328 = vadd.f32 0.0, %v2327
        %v2329 = vpop.f32.mrb[0].mxu0
        %2330 = vmatprep.mubr.f32.mxu0 0.0
        %2331 = vmatmul.mubr.f32.gmra.mrb[0].mxu0 %v2259
        %v2332 = vpop.f32.mrb[0].mxu0
        %v2333 = vadd.f32 0.0, %v2332
        %v2334 = vpop.f32.mrb[0].mxu0
        %2335 = vdwg.mxu0
        %v2336 = vld [vmem:[%s8] sm:$0xff]
        %v2337 = vld [vmem:[%s8 + $0x8] sm:$0xff]
        %v2338 = vld [vmem:[%s8 + $0x10] sm:$0xff]
        %v2339 = vld [vmem:[%s8 + $0x18] sm:$0xff]
        %v2340 = vld [vmem:[%s8 + $0x20] sm:$0xff]
        %v2341 = vld [vmem:[%s8 + $0x28] sm:$0xff]
        %v2342 = vld [vmem:[%s8 + $0x30] sm:$0xff]
        %v2343 = vld [vmem:[%s8 + $0x38] sm:$0xff]
        %v2344 = vld [vmem:[%s8 + $0x40] sm:$0xff]
        %v2345 = vld [vmem:[%s8 + $0x48] sm:$0xff]
        %v2346 = vld [vmem:[%s8 + $0x50] sm:$0xff]
        %v2347 = vld [vmem:[%s8 + $0x58] sm:$0xff]
        %v2348 = vld [vmem:[%s8 + $0x60] sm:$0xff]
        %v2349 = vld [vmem:[%s8 + $0x68] sm:$0xff]
        %v2350 = vld [vmem:[%s8 + $0x70] sm:$0xff]
        %v2351 = vld [vmem:[%s8 + $0x78] sm:$0xff]
        %v2352 = vld [vmem:[%s8 + $0x80] sm:$0xff]
        %v2353 = vld [vmem:[%s8 + $0x88] sm:$0xff]
        %v2354 = vld [vmem:[%s8 + $0x90] sm:$0xff]
        %v2355 = vld [vmem:[%s8 + $0x98] sm:$0xff]
        %v2356 = vld [vmem:[%s8 + $0xa0] sm:$0xff]
        %v2357 = vld [vmem:[%s8 + $0xa8] sm:$0xff]
        %v2358 = vld [vmem:[%s8 + $0xb0] sm:$0xff]
        %v2359 = vld [vmem:[%s8 + $0xb8] sm:$0xff]
        %v2360 = vld [vmem:[%s8 + $0xc0] sm:$0xff]
        %v2361 = vld [vmem:[%s8 + $0xc8] sm:$0xff]
        %v2362 = vld [vmem:[%s8 + $0xd0] sm:$0xff]
        %v2363 = vld [vmem:[%s8 + $0xd8] sm:$0xff]
        %v2364 = vld [vmem:[%s8 + $0xe0] sm:$0xff]
        %v2365 = vld [vmem:[%s8 + $0xe8] sm:$0xff]
        %v2366 = vld [vmem:[%s8 + $0xf0] sm:$0xff]
        %v2367 = vld [vmem:[%s8 + $0xf8] sm:$0xff]
        %s2368 = scalar_lea.vmem %s7, 16
        %v2369 = vld [vmem:[%s2368] sm:$0xff]
        %v2370 = vld [vmem:[%s2368 + $0x8] sm:$0xff]
        %v2372 = vsel %vm2254, %v2369, 0
        %v2375 = vsel %vm2254, %v2370, 0
        %2377 = vmatprep.subr.mxu0 0.0
        %2378 = vmatpush1.msra.mxu0 %v2250
        %2379 = vmatprep.subr.mxu0 0.0
        %2380 = vmatpush1.msra.mxu0 %v2251
        %2381 = vmatprep.subr.mxu0 0.0
        %2382 = vmatpush1.msra.mxu0 %v2252
        %2383 = vmatprep.subr.mxu0 0.0
        %2384 = vmatpush1.msra.mxu0 %v2253
        %2385 = vmatprep.subr.mxu0 0.0
        %2386 = vmatpush1.msra.mxu0 0.0
        %2387 = vmatprep.subr.mxu0 0.0
        %2388 = vmatpush1.msra.mxu0 0.0
        %2389 = vmatprep.subr.mxu0 0.0
        %2390 = vmatpush1.msra.mxu0 0.0
        %2391 = vmatprep.subr.mxu0 0.0
        %2392 = vmatpush1.msra.mxu0 0.0
        %2393 = vmatprep.subr.mxu0 0.0
        %2394 = vmatpush1.msra.mxu0 0.0
        %2395 = vmatprep.subr.mxu0 0.0
        %2396 = vmatpush1.msra.mxu0 0.0
        %2397 = vmatprep.subr.mxu0 0.0
        %2398 = vmatpush1.msra.mxu0 0.0
        %2399 = vmatprep.subr.mxu0 0.0
        %2400 = vmatpush1.msra.mxu0 0.0
        %2401 = vmatprep.subr.mxu0 0.0
        %2402 = vmatpush1.msra.mxu0 0.0
        %2403 = vmatprep.subr.mxu0 0.0
        %2404 = vmatpush1.msra.mxu0 0.0
        %2405 = vmatprep.subr.mxu0 0.0
        %2406 = vmatpush1.msra.mxu0 0.0
        %2407 = vmatprep.subr.mxu0 0.0
        %2408 = vmatpush1.msra.mxu0 0.0
        %2409 = vmatprep.subr.mxu0 0.0
        %2410 = vmatpush1.msra.mxu0 0.0
        %2411 = vmatprep.subr.mxu0 0.0
        %2412 = vmatpush1.msra.mxu0 0.0
        %2413 = vmatprep.subr.mxu0 0.0
        %2414 = vmatpush1.msra.mxu0 0.0
        %2415 = vmatprep.subr.mxu0 0.0
        %2416 = vmatpush1.msra.mxu0 0.0
        %2417 = vmatprep.subr.mxu0 0.0
        %2418 = vmatpush1.msra.mxu0 0.0
        %2419 = vmatprep.subr.mxu0 0.0
        %2420 = vmatpush1.msra.mxu0 0.0
        %2421 = vmatprep.subr.mxu0 0.0
        %2422 = vmatpush1.msra.mxu0 0.0
        %2423 = vmatprep.subr.mxu0 0.0
        %2424 = vmatpush1.msra.mxu0 0.0
        %2425 = vmatprep.subr.mxu0 0.0
        %2426 = vmatpush1.msra.mxu0 0.0
        %2427 = vmatprep.subr.mxu0 0.0
        %2428 = vmatpush1.msra.mxu0 0.0
        %2429 = vmatprep.subr.mxu0 0.0
        %2430 = vmatpush1.msra.mxu0 0.0
        %2431 = vmatprep.subr.mxu0 0.0
        %2432 = vmatpush1.msra.mxu0 0.0
        %2433 = vmatprep.subr.mxu0 0.0
        %2434 = vmatpush1.msra.mxu0 0.0
        %2435 = vmatprep.subr.mxu0 0.0
        %2436 = vmatpush1.msra.mxu0 0.0
        %2437 = vmatprep.subr.mxu0 0.0
        %2438 = vmatpush1.msra.mxu0 0.0
        %2439 = vmatprep.subr.mxu0 0.0
        %2440 = vmatpush1.msra.mxu0 0.0
        %2441 = vmatprep.mubr.f32.mxu0 0.0
        %2442 = vmatmul.mubr.f32.gmra.mrb[0].mxu0 %v2372
        %v2443 = vpop.f32.mrb[0].mxu0
        %v2444 = vadd.f32 0.0, %v2443
        %v2445 = vpop.f32.mrb[0].mxu0
        %2446 = vmatprep.mubr.f32.mxu0 0.0
        %2447 = vmatmul.mubr.f32.gmra.mrb[0].mxu0 %v2375
        %v2448 = vpop.f32.mrb[0].mxu0
        %v2449 = vadd.f32 0.0, %v2448
        %v2450 = vpop.f32.mrb[0].mxu0
        %2451 = vdwg.mxu0
        %s2452 = scalar_lea.vmem %s8, 256
        %v2453 = vld [vmem:[%s2452] sm:$0xff]
        %v2454 = vld [vmem:[%s2452 + $0x8] sm:$0xff]
        %v2455 = vld [vmem:[%s2452 + $0x10] sm:$0xff]
        %v2456 = vld [vmem:[%s2452 + $0x18] sm:$0xff]
        %v2457 = vld [vmem:[%s2452 + $0x20] sm:$0xff]
        %v2458 = vld [vmem:[%s2452 + $0x28] sm:$0xff]
        %v2459 = vld [vmem:[%s2452 + $0x30] sm:$0xff]
        %v2460 = vld [vmem:[%s2452 + $0x38] sm:$0xff]
        %v2461 = vld [vmem:[%s2452 + $0x40] sm:$0xff]
        %v2462 = vld [vmem:[%s2452 + $0x48] sm:$0xff]
        %v2463 = vld [vmem:[%s2452 + $0x50] sm:$0xff]
        %v2464 = vld [vmem:[%s2452 + $0x58] sm:$0xff]
        %v2465 = vld [vmem:[%s2452 + $0x60] sm:$0xff]
        %v2466 = vld [vmem:[%s2452 + $0x68] sm:$0xff]
        %v2467 = vld [vmem:[%s2452 + $0x70] sm:$0xff]
        %v2468 = vld [vmem:[%s2452 + $0x78] sm:$0xff]
        %v2469 = vld [vmem:[%s2452 + $0x80] sm:$0xff]
        %v2470 = vld [vmem:[%s2452 + $0x88] sm:$0xff]
        %v2471 = vld [vmem:[%s2452 + $0x90] sm:$0xff]
        %v2472 = vld [vmem:[%s2452 + $0x98] sm:$0xff]
        %v2473 = vld [vmem:[%s2452 + $0xa0] sm:$0xff]
        %v2474 = vld [vmem:[%s2452 + $0xa8] sm:$0xff]
        %v2475 = vld [vmem:[%s2452 + $0xb0] sm:$0xff]
        %v2476 = vld [vmem:[%s2452 + $0xb8] sm:$0xff]
        %v2477 = vld [vmem:[%s2452 + $0xc0] sm:$0xff]
        %v2478 = vld [vmem:[%s2452 + $0xc8] sm:$0xff]
        %v2479 = vld [vmem:[%s2452 + $0xd0] sm:$0xff]
        %v2480 = vld [vmem:[%s2452 + $0xd8] sm:$0xff]
        %v2481 = vld [vmem:[%s2452 + $0xe0] sm:$0xff]
        %v2482 = vld [vmem:[%s2452 + $0xe8] sm:$0xff]
        %v2483 = vld [vmem:[%s2452 + $0xf0] sm:$0xff]
        %v2484 = vld [vmem:[%s2452 + $0xf8] sm:$0xff]
        %2485 = vmatprep.subr.mxu0 %v2454
        %2486 = vmatpush1.msra.mxu0 %v2453
        %2487 = vmatprep.subr.mxu0 %v2456
        %2488 = vmatpush1.msra.mxu0 %v2455
        %2489 = vmatprep.subr.mxu0 %v2458
        %2490 = vmatpush1.msra.mxu0 %v2457
        %2491 = vmatprep.subr.mxu0 %v2460
        %2492 = vmatpush1.msra.mxu0 %v2459
        %2493 = vmatprep.subr.mxu0 %v2462
        %2494 = vmatpush1.msra.mxu0 %v2461
        %2495 = vmatprep.subr.mxu0 %v2464
        %2496 = vmatpush1.msra.mxu0 %v2463
        %2497 = vmatprep.subr.mxu0 %v2466
        %2498 = vmatpush1.msra.mxu0 %v2465
        %2499 = vmatprep.subr.mxu0 %v2468
        %2500 = vmatpush1.msra.mxu0 %v2467
        %2501 = vmatprep.subr.mxu0 %v2470
        %2502 = vmatpush1.msra.mxu0 %v2469
        %2503 = vmatprep.subr.mxu0 %v2472
        %2504 = vmatpush1.msra.mxu0 %v2471
        %2505 = vmatprep.subr.mxu0 %v2474
        %2506 = vmatpush1.msra.mxu0 %v2473
        %2507 = vmatprep.subr.mxu0 %v2476
        %2508 = vmatpush1.msra.mxu0 %v2475
        %2509 = vmatprep.subr.mxu0 %v2478
        %2510 = vmatpush1.msra.mxu0 %v2477
        %2511 = vmatprep.subr.mxu0 %v2480
        %2512 = vmatpush1.msra.mxu0 %v2479
        %2513 = vmatprep.subr.mxu0 %v2482
        %2514 = vmatpush1.msra.mxu0 %v2481
        %2515 = vmatprep.subr.mxu0 %v2484
        %2516 = vmatpush1.msra.mxu0 %v2483
        %2517 = vmatprep.subr.mxu0 0.0
        %2518 = vmatpush1.msra.mxu0 0.0
        %2519 = vmatprep.subr.mxu0 0.0
        %2520 = vmatpush1.msra.mxu0 0.0
        %2521 = vmatprep.subr.mxu0 0.0
        %2522 = vmatpush1.msra.mxu0 0.0
        %2523 = vmatprep.subr.mxu0 0.0
        %2524 = vmatpush1.msra.mxu0 0.0
        %2525 = vmatprep.subr.mxu0 0.0
        %2526 = vmatpush1.msra.mxu0 0.0
        %2527 = vmatprep.subr.mxu0 0.0
        %2528 = vmatpush1.msra.mxu0 0.0
        %2529 = vmatprep.subr.mxu0 0.0
        %2530 = vmatpush1.msra.mxu0 0.0
        %2531 = vmatprep.subr.mxu0 0.0
        %2532 = vmatpush1.msra.mxu0 0.0
        %2533 = vmatprep.subr.mxu0 0.0
        %2534 = vmatpush1.msra.mxu0 0.0
        %2535 = vmatprep.subr.mxu0 0.0
        %2536 = vmatpush1.msra.mxu0 0.0
        %2537 = vmatprep.subr.mxu0 0.0
        %2538 = vmatpush1.msra.mxu0 0.0
        %2539 = vmatprep.subr.mxu0 0.0
        %2540 = vmatpush1.msra.mxu0 0.0
        %2541 = vmatprep.subr.mxu0 0.0
        %2542 = vmatpush1.msra.mxu0 0.0
        %2543 = vmatprep.subr.mxu0 0.0
        %2544 = vmatpush1.msra.mxu0 0.0
        %2545 = vmatprep.subr.mxu0 0.0
        %2546 = vmatpush1.msra.mxu0 0.0
        %2547 = vmatprep.subr.mxu0 0.0
        %2548 = vmatpush1.msra.mxu0 0.0
        %2549 = vmatprep.mubr.f32.mxu0 0.0
        %2550 = vmatmul.mubr.f32.gmra.mrb[0].mxu0 %v2444
        %v2551 = vpop.f32.mrb[0].mxu0
        %v2552 = vadd.f32 0.0, %v2551
        %v2553 = vpop.f32.mrb[0].mxu0
        %v2554 = vadd.f32 0.0, %v2553
        %2555 = vmatprep.mubr.f32.mxu0 0.0
        %2556 = vmatmul.mubr.f32.gmra.mrb[0].mxu0 %v2449
        %v2557 = vpop.f32.mrb[0].mxu0
        %v2558 = vadd.f32 0.0, %v2557
        %v2559 = vpop.f32.mrb[0].mxu0
        %v2560 = vadd.f32 0.0, %v2559
        %2561 = vdwg.mxu0
        %2562 = vmatprep.subr.mxu0 %v2337
        %2563 = vmatpush1.msra.mxu0 %v2336
        %2564 = vmatprep.subr.mxu0 %v2339
        %2565 = vmatpush1.msra.mxu0 %v2338
        %2566 = vmatprep.subr.mxu0 %v2341
        %2567 = vmatpush1.msra.mxu0 %v2340
        %2568 = vmatprep.subr.mxu0 %v2343
        %2569 = vmatpush1.msra.mxu0 %v2342
        %2570 = vmatprep.subr.mxu0 %v2345
        %2571 = vmatpush1.msra.mxu0 %v2344
        %2572 = vmatprep.subr.mxu0 %v2347
        %2573 = vmatpush1.msra.mxu0 %v2346
        %2574 = vmatprep.subr.mxu0 %v2349
        %2575 = vmatpush1.msra.mxu0 %v2348
        %2576 = vmatprep.subr.mxu0 %v2351
        %2577 = vmatpush1.msra.mxu0 %v2350
        %2578 = vmatprep.subr.mxu0 %v2353
        %2579 = vmatpush1.msra.mxu0 %v2352
        %2580 = vmatprep.subr.mxu0 %v2355
        %2581 = vmatpush1.msra.mxu0 %v2354
        %2582 = vmatprep.subr.mxu0 %v2357
        %2583 = vmatpush1.msra.mxu0 %v2356
        %2584 = vmatprep.subr.mxu0 %v2359
        %2585 = vmatpush1.msra.mxu0 %v2358
        %2586 = vmatprep.subr.mxu0 %v2361
        %2587 = vmatpush1.msra.mxu0 %v2360
        %2588 = vmatprep.subr.mxu0 %v2363
        %2589 = vmatpush1.msra.mxu0 %v2362
        %2590 = vmatprep.subr.mxu0 %v2365
        %2591 = vmatpush1.msra.mxu0 %v2364
        %2592 = vmatprep.subr.mxu0 %v2367
        %2593 = vmatpush1.msra.mxu0 %v2366
        %2594 = vmatprep.subr.mxu0 0.0
        %2595 = vmatpush1.msra.mxu0 0.0
        %2596 = vmatprep.subr.mxu0 0.0
        %2597 = vmatpush1.msra.mxu0 0.0
        %2598 = vmatprep.subr.mxu0 0.0
        %2599 = vmatpush1.msra.mxu0 0.0
        %2600 = vmatprep.subr.mxu0 0.0
        %2601 = vmatpush1.msra.mxu0 0.0
        %2602 = vmatprep.subr.mxu0 0.0
        %2603 = vmatpush1.msra.mxu0 0.0
        %2604 = vmatprep.subr.mxu0 0.0
        %2605 = vmatpush1.msra.mxu0 0.0
        %2606 = vmatprep.subr.mxu0 0.0
        %2607 = vmatpush1.msra.mxu0 0.0
        %2608 = vmatprep.subr.mxu0 0.0
        %2609 = vmatpush1.msra.mxu0 0.0
        %2610 = vmatprep.subr.mxu0 0.0
        %2611 = vmatpush1.msra.mxu0 0.0
        %2612 = vmatprep.subr.mxu0 0.0
        %2613 = vmatpush1.msra.mxu0 0.0
        %2614 = vmatprep.subr.mxu0 0.0
        %2615 = vmatpush1.msra.mxu0 0.0
        %2616 = vmatprep.subr.mxu0 0.0
        %2617 = vmatpush1.msra.mxu0 0.0
        %2618 = vmatprep.subr.mxu0 0.0
        %2619 = vmatpush1.msra.mxu0 0.0
        %2620 = vmatprep.subr.mxu0 0.0
        %2621 = vmatpush1.msra.mxu0 0.0
        %2622 = vmatprep.subr.mxu0 0.0
        %2623 = vmatpush1.msra.mxu0 0.0
        %2624 = vmatprep.subr.mxu0 0.0
        %2625 = vmatpush1.msra.mxu0 0.0
        %2626 = vmatprep.mubr.f32.mxu0 0.0
        %2627 = vmatmul.mubr.f32.gmra.mrb[0].mxu0 %v2328
        %v2628 = vpop.f32.mrb[0].mxu0
        %v2629 = vadd.f32 %v2552, %v2628
        %v2630 = vpop.f32.mrb[0].mxu0
        %v2631 = vadd.f32 %v2554, %v2630
        %2632 = vmatprep.mubr.f32.mxu0 0.0
        %2633 = vmatmul.mubr.f32.gmra.mrb[0].mxu0 %v2333
        %v2634 = vpop.f32.mrb[0].mxu0
        %v2635 = vadd.f32 %v2558, %v2634
        %v2636 = vpop.f32.mrb[0].mxu0
        %v2637 = vadd.f32 %v2560, %v2636
        %2638 = vdwg.mxu0
        %s2639 = scalar_lea.vmem %s7, 32
        %v2640 = vld [vmem:[%s2639] sm:$0xff]
        %v2641 = vld [vmem:[%s2639 + $0x8] sm:$0xff]
        %v2643 = vsel %vm2254, %v2640, 0
        %v2646 = vsel %vm2254, %v2641, 0
        %2648 = vmatprep.subr.mxu0 0.0
        %2649 = vmatpush1.msra.mxu0 %v2250
        %2650 = vmatprep.subr.mxu0 0.0
        %2651 = vmatpush1.msra.mxu0 %v2251
        %2652 = vmatprep.subr.mxu0 0.0
        %2653 = vmatpush1.msra.mxu0 %v2252
        %2654 = vmatprep.subr.mxu0 0.0
        %2655 = vmatpush1.msra.mxu0 %v2253
        %2656 = vmatprep.subr.mxu0 0.0
        %2657 = vmatpush1.msra.mxu0 0.0
        %2658 = vmatprep.subr.mxu0 0.0
        %2659 = vmatpush1.msra.mxu0 0.0
        %2660 = vmatprep.subr.mxu0 0.0
        %2661 = vmatpush1.msra.mxu0 0.0
        %2662 = vmatprep.subr.mxu0 0.0
        %2663 = vmatpush1.msra.mxu0 0.0
        %2664 = vmatprep.subr.mxu0 0.0
        %2665 = vmatpush1.msra.mxu0 0.0
        %2666 = vmatprep.subr.mxu0 0.0
        %2667 = vmatpush1.msra.mxu0 0.0
        %2668 = vmatprep.subr.mxu0 0.0
        %2669 = vmatpush1.msra.mxu0 0.0
        %2670 = vmatprep.subr.mxu0 0.0
        %2671 = vmatpush1.msra.mxu0 0.0
        %2672 = vmatprep.subr.mxu0 0.0
        %2673 = vmatpush1.msra.mxu0 0.0
        %2674 = vmatprep.subr.mxu0 0.0
        %2675 = vmatpush1.msra.mxu0 0.0
        %2676 = vmatprep.subr.mxu0 0.0
        %2677 = vmatpush1.msra.mxu0 0.0
        %2678 = vmatprep.subr.mxu0 0.0
        %2679 = vmatpush1.msra.mxu0 0.0
        %2680 = vmatprep.subr.mxu0 0.0
        %2681 = vmatpush1.msra.mxu0 0.0
        %2682 = vmatprep.subr.mxu0 0.0
        %2683 = vmatpush1.msra.mxu0 0.0
        %2684 = vmatprep.subr.mxu0 0.0
        %2685 = vmatpush1.msra.mxu0 0.0
        %2686 = vmatprep.subr.mxu0 0.0
        %2687 = vmatpush1.msra.mxu0 0.0
        %2688 = vmatprep.subr.mxu0 0.0
        %2689 = vmatpush1.msra.mxu0 0.0
        %2690 = vmatprep.subr.mxu0 0.0
        %2691 = vmatpush1.msra.mxu0 0.0
        %2692 = vmatprep.subr.mxu0 0.0
        %2693 = vmatpush1.msra.mxu0 0.0
        %2694 = vmatprep.subr.mxu0 0.0
        %2695 = vmatpush1.msra.mxu0 0.0
        %2696 = vmatprep.subr.mxu0 0.0
        %2697 = vmatpush1.msra.mxu0 0.0
        %2698 = vmatprep.subr.mxu0 0.0
        %2699 = vmatpush1.msra.mxu0 0.0
        %2700 = vmatprep.subr.mxu0 0.0
        %2701 = vmatpush1.msra.mxu0 0.0
        %2702 = vmatprep.subr.mxu0 0.0
        %2703 = vmatpush1.msra.mxu0 0.0
        %2704 = vmatprep.subr.mxu0 0.0
        %2705 = vmatpush1.msra.mxu0 0.0
        %2706 = vmatprep.subr.mxu0 0.0
        %2707 = vmatpush1.msra.mxu0 0.0
        %2708 = vmatprep.subr.mxu0 0.0
        %2709 = vmatpush1.msra.mxu0 0.0
        %2710 = vmatprep.subr.mxu0 0.0
        %2711 = vmatpush1.msra.mxu0 0.0
        %2712 = vmatprep.mubr.f32.mxu0 0.0
        %2713 = vmatmul.mubr.f32.gmra.mrb[0].mxu0 %v2643
        %v2714 = vpop.f32.mrb[0].mxu0
        %v2715 = vadd.f32 0.0, %v2714
        %v2716 = vpop.f32.mrb[0].mxu0
        %2717 = vmatprep.mubr.f32.mxu0 0.0
        %2718 = vmatmul.mubr.f32.gmra.mrb[0].mxu0 %v2646
        %v2719 = vpop.f32.mrb[0].mxu0
        %v2720 = vadd.f32 0.0, %v2719
        %v2721 = vpop.f32.mrb[0].mxu0
        %2722 = vdwg.mxu0
        %s2723 = scalar_lea.vmem %s8, 512
        %v2724 = vld [vmem:[%s2723] sm:$0xff]
        %v2725 = vld [vmem:[%s2723 + $0x8] sm:$0xff]
        %v2726 = vld [vmem:[%s2723 + $0x10] sm:$0xff]
        %v2727 = vld [vmem:[%s2723 + $0x18] sm:$0xff]
        %v2728 = vld [vmem:[%s2723 + $0x20] sm:$0xff]
        %v2729 = vld [vmem:[%s2723 + $0x28] sm:$0xff]
        %v2730 = vld [vmem:[%s2723 + $0x30] sm:$0xff]
        %v2731 = vld [vmem:[%s2723 + $0x38] sm:$0xff]
        %v2732 = vld [vmem:[%s2723 + $0x40] sm:$0xff]
        %v2733 = vld [vmem:[%s2723 + $0x48] sm:$0xff]
        %v2734 = vld [vmem:[%s2723 + $0x50] sm:$0xff]
        %v2735 = vld [vmem:[%s2723 + $0x58] sm:$0xff]
        %v2736 = vld [vmem:[%s2723 + $0x60] sm:$0xff]
        %v2737 = vld [vmem:[%s2723 + $0x68] sm:$0xff]
        %v2738 = vld [vmem:[%s2723 + $0x70] sm:$0xff]
        %v2739 = vld [vmem:[%s2723 + $0x78] sm:$0xff]
        %v2740 = vld [vmem:[%s2723 + $0x80] sm:$0xff]
        %v2741 = vld [vmem:[%s2723 + $0x88] sm:$0xff]
        %v2742 = vld [vmem:[%s2723 + $0x90] sm:$0xff]
        %v2743 = vld [vmem:[%s2723 + $0x98] sm:$0xff]
        %v2744 = vld [vmem:[%s2723 + $0xa0] sm:$0xff]
        %v2745 = vld [vmem:[%s2723 + $0xa8] sm:$0xff]
        %v2746 = vld [vmem:[%s2723 + $0xb0] sm:$0xff]
        %v2747 = vld [vmem:[%s2723 + $0xb8] sm:$0xff]
        %v2748 = vld [vmem:[%s2723 + $0xc0] sm:$0xff]
        %v2749 = vld [vmem:[%s2723 + $0xc8] sm:$0xff]
        %v2750 = vld [vmem:[%s2723 + $0xd0] sm:$0xff]
        %v2751 = vld [vmem:[%s2723 + $0xd8] sm:$0xff]
        %v2752 = vld [vmem:[%s2723 + $0xe0] sm:$0xff]
        %v2753 = vld [vmem:[%s2723 + $0xe8] sm:$0xff]
        %v2754 = vld [vmem:[%s2723 + $0xf0] sm:$0xff]
        %v2755 = vld [vmem:[%s2723 + $0xf8] sm:$0xff]
        %2756 = vmatprep.subr.mxu0 %v2725
        %2757 = vmatpush1.msra.mxu0 %v2724
        %2758 = vmatprep.subr.mxu0 %v2727
        %2759 = vmatpush1.msra.mxu0 %v2726
        %2760 = vmatprep.subr.mxu0 %v2729
        %2761 = vmatpush1.msra.mxu0 %v2728
        %2762 = vmatprep.subr.mxu0 %v2731
        %2763 = vmatpush1.msra.mxu0 %v2730
        %2764 = vmatprep.subr.mxu0 %v2733
        %2765 = vmatpush1.msra.mxu0 %v2732
        %2766 = vmatprep.subr.mxu0 %v2735
        %2767 = vmatpush1.msra.mxu0 %v2734
        %2768 = vmatprep.subr.mxu0 %v2737
        %2769 = vmatpush1.msra.mxu0 %v2736
        %2770 = vmatprep.subr.mxu0 %v2739
        %2771 = vmatpush1.msra.mxu0 %v2738
        %2772 = vmatprep.subr.mxu0 %v2741
        %2773 = vmatpush1.msra.mxu0 %v2740
        %2774 = vmatprep.subr.mxu0 %v2743
        %2775 = vmatpush1.msra.mxu0 %v2742
        %2776 = vmatprep.subr.mxu0 %v2745
        %2777 = vmatpush1.msra.mxu0 %v2744
        %2778 = vmatprep.subr.mxu0 %v2747
        %2779 = vmatpush1.msra.mxu0 %v2746
        %2780 = vmatprep.subr.mxu0 %v2749
        %2781 = vmatpush1.msra.mxu0 %v2748
        %2782 = vmatprep.subr.mxu0 %v2751
        %2783 = vmatpush1.msra.mxu0 %v2750
        %2784 = vmatprep.subr.mxu0 %v2753
        %2785 = vmatpush1.msra.mxu0 %v2752
        %2786 = vmatprep.subr.mxu0 %v2755
        %2787 = vmatpush1.msra.mxu0 %v2754
        %2788 = vmatprep.subr.mxu0 0.0
        %2789 = vmatpush1.msra.mxu0 0.0
        %2790 = vmatprep.subr.mxu0 0.0
        %2791 = vmatpush1.msra.mxu0 0.0
        %2792 = vmatprep.subr.mxu0 0.0
        %2793 = vmatpush1.msra.mxu0 0.0
        %2794 = vmatprep.subr.mxu0 0.0
        %2795 = vmatpush1.msra.mxu0 0.0
        %2796 = vmatprep.subr.mxu0 0.0
        %2797 = vmatpush1.msra.mxu0 0.0
        %2798 = vmatprep.subr.mxu0 0.0
        %2799 = vmatpush1.msra.mxu0 0.0
        %2800 = vmatprep.subr.mxu0 0.0
        %2801 = vmatpush1.msra.mxu0 0.0
        %2802 = vmatprep.subr.mxu0 0.0
        %2803 = vmatpush1.msra.mxu0 0.0
        %2804 = vmatprep.subr.mxu0 0.0
        %2805 = vmatpush1.msra.mxu0 0.0
        %2806 = vmatprep.subr.mxu0 0.0
        %2807 = vmatpush1.msra.mxu0 0.0
        %2808 = vmatprep.subr.mxu0 0.0
        %2809 = vmatpush1.msra.mxu0 0.0
        %2810 = vmatprep.subr.mxu0 0.0
        %2811 = vmatpush1.msra.mxu0 0.0
        %2812 = vmatprep.subr.mxu0 0.0
        %2813 = vmatpush1.msra.mxu0 0.0
        %2814 = vmatprep.subr.mxu0 0.0
        %2815 = vmatpush1.msra.mxu0 0.0
        %2816 = vmatprep.subr.mxu0 0.0
        %2817 = vmatpush1.msra.mxu0 0.0
        %2818 = vmatprep.subr.mxu0 0.0
        %2819 = vmatpush1.msra.mxu0 0.0
        %2820 = vmatprep.mubr.f32.mxu0 0.0
        %2821 = vmatmul.mubr.f32.gmra.mrb[0].mxu0 %v2715
        %v2822 = vpop.f32.mrb[0].mxu0
        %v2823 = vadd.f32 0.0, %v2822
        %v2824 = vpop.f32.mrb[0].mxu0
        %v2825 = vadd.f32 0.0, %v2824
        %2826 = vmatprep.mubr.f32.mxu0 0.0
        %2827 = vmatmul.mubr.f32.gmra.mrb[0].mxu0 %v2720
        %v2828 = vpop.f32.mrb[0].mxu0
        %v2829 = vadd.f32 0.0, %v2828
        %v2830 = vpop.f32.mrb[0].mxu0
        %v2831 = vadd.f32 0.0, %v2830
        %2832 = vdwg.mxu0
        %v2833 = vadd.f32 %v2629, %v2823
        %v2834 = vadd.f32 %v2631, %v2825
        %v2835 = vadd.f32 %v2635, %v2829
        %v2836 = vadd.f32 %v2637, %v2831
        %s2837 = scalar_lea.vmem %s7, 48
        %v2838 = vld [vmem:[%s2837] sm:$0xff]
        %v2839 = vld [vmem:[%s2837 + $0x8] sm:$0xff]
        %v2841 = vsel %vm2254, %v2838, 0
        %v2844 = vsel %vm2254, %v2839, 0
        %2846 = vmatprep.subr.mxu0 0.0
        %2847 = vmatpush1.msra.mxu0 %v2250
        %2848 = vmatprep.subr.mxu0 0.0
        %2849 = vmatpush1.msra.mxu0 %v2251
        %2850 = vmatprep.subr.mxu0 0.0
        %2851 = vmatpush1.msra.mxu0 %v2252
        %2852 = vmatprep.subr.mxu0 0.0
        %2853 = vmatpush1.msra.mxu0 %v2253
        %2854 = vmatprep.subr.mxu0 0.0
        %2855 = vmatpush1.msra.mxu0 0.0
        %2856 = vmatprep.subr.mxu0 0.0
        %2857 = vmatpush1.msra.mxu0 0.0
        %2858 = vmatprep.subr.mxu0 0.0
        %2859 = vmatpush1.msra.mxu0 0.0
        %2860 = vmatprep.subr.mxu0 0.0
        %2861 = vmatpush1.msra.mxu0 0.0
        %2862 = vmatprep.subr.mxu0 0.0
        %2863 = vmatpush1.msra.mxu0 0.0
        %2864 = vmatprep.subr.mxu0 0.0
        %2865 = vmatpush1.msra.mxu0 0.0
        %2866 = vmatprep.subr.mxu0 0.0
        %2867 = vmatpush1.msra.mxu0 0.0
        %2868 = vmatprep.subr.mxu0 0.0
        %2869 = vmatpush1.msra.mxu0 0.0
        %2870 = vmatprep.subr.mxu0 0.0
        %2871 = vmatpush1.msra.mxu0 0.0
        %2872 = vmatprep.subr.mxu0 0.0
        %2873 = vmatpush1.msra.mxu0 0.0
        %2874 = vmatprep.subr.mxu0 0.0
        %2875 = vmatpush1.msra.mxu0 0.0
        %2876 = vmatprep.subr.mxu0 0.0
        %2877 = vmatpush1.msra.mxu0 0.0
        %2878 = vmatprep.subr.mxu0 0.0
        %2879 = vmatpush1.msra.mxu0 0.0
        %2880 = vmatprep.subr.mxu0 0.0
        %2881 = vmatpush1.msra.mxu0 0.0
        %2882 = vmatprep.subr.mxu0 0.0
        %2883 = vmatpush1.msra.mxu0 0.0
        %2884 = vmatprep.subr.mxu0 0.0
        %2885 = vmatpush1.msra.mxu0 0.0
        %2886 = vmatprep.subr.mxu0 0.0
        %2887 = vmatpush1.msra.mxu0 0.0
        %2888 = vmatprep.subr.mxu0 0.0
        %2889 = vmatpush1.msra.mxu0 0.0
        %2890 = vmatprep.subr.mxu0 0.0
        %2891 = vmatpush1.msra.mxu0 0.0
        %2892 = vmatprep.subr.mxu0 0.0
        %2893 = vmatpush1.msra.mxu0 0.0
        %2894 = vmatprep.subr.mxu0 0.0
        %2895 = vmatpush1.msra.mxu0 0.0
        %2896 = vmatprep.subr.mxu0 0.0
        %2897 = vmatpush1.msra.mxu0 0.0
        %2898 = vmatprep.subr.mxu0 0.0
        %2899 = vmatpush1.msra.mxu0 0.0
        %2900 = vmatprep.subr.mxu0 0.0
        %2901 = vmatpush1.msra.mxu0 0.0
        %2902 = vmatprep.subr.mxu0 0.0
        %2903 = vmatpush1.msra.mxu0 0.0
        %2904 = vmatprep.subr.mxu0 0.0
        %2905 = vmatpush1.msra.mxu0 0.0
        %2906 = vmatprep.subr.mxu0 0.0
        %2907 = vmatpush1.msra.mxu0 0.0
        %2908 = vmatprep.subr.mxu0 0.0
        %2909 = vmatpush1.msra.mxu0 0.0
        %2910 = vmatprep.mubr.f32.mxu0 0.0
        %2911 = vmatmul.mubr.f32.gmra.mrb[0].mxu0 %v2841
        %v2912 = vpop.f32.mrb[0].mxu0
        %v2913 = vadd.f32 0.0, %v2912
        %v2914 = vpop.f32.mrb[0].mxu0
        %2915 = vmatprep.mubr.f32.mxu0 0.0
        %2916 = vmatmul.mubr.f32.gmra.mrb[0].mxu0 %v2844
        %v2917 = vpop.f32.mrb[0].mxu0
        %v2918 = vadd.f32 0.0, %v2917
        %v2919 = vpop.f32.mrb[0].mxu0
        %2920 = vdwg.mxu0
        %s2921 = scalar_lea.vmem %s8, 768
        %v2922 = vld [vmem:[%s2921] sm:$0xff]
        %v2923 = vld [vmem:[%s2921 + $0x8] sm:$0xff]
        %v2924 = vld [vmem:[%s2921 + $0x10] sm:$0xff]
        %v2925 = vld [vmem:[%s2921 + $0x18] sm:$0xff]
        %v2926 = vld [vmem:[%s2921 + $0x20] sm:$0xff]
        %v2927 = vld [vmem:[%s2921 + $0x28] sm:$0xff]
        %v2928 = vld [vmem:[%s2921 + $0x30] sm:$0xff]
        %v2929 = vld [vmem:[%s2921 + $0x38] sm:$0xff]
        %v2930 = vld [vmem:[%s2921 + $0x40] sm:$0xff]
        %v2931 = vld [vmem:[%s2921 + $0x48] sm:$0xff]
        %v2932 = vld [vmem:[%s2921 + $0x50] sm:$0xff]
        %v2933 = vld [vmem:[%s2921 + $0x58] sm:$0xff]
        %v2934 = vld [vmem:[%s2921 + $0x60] sm:$0xff]
        %v2935 = vld [vmem:[%s2921 + $0x68] sm:$0xff]
        %v2936 = vld [vmem:[%s2921 + $0x70] sm:$0xff]
        %v2937 = vld [vmem:[%s2921 + $0x78] sm:$0xff]
        %v2938 = vld [vmem:[%s2921 + $0x80] sm:$0xff]
        %v2939 = vld [vmem:[%s2921 + $0x88] sm:$0xff]
        %v2940 = vld [vmem:[%s2921 + $0x90] sm:$0xff]
        %v2941 = vld [vmem:[%s2921 + $0x98] sm:$0xff]
        %v2942 = vld [vmem:[%s2921 + $0xa0] sm:$0xff]
        %v2943 = vld [vmem:[%s2921 + $0xa8] sm:$0xff]
        %v2944 = vld [vmem:[%s2921 + $0xb0] sm:$0xff]
        %v2945 = vld [vmem:[%s2921 + $0xb8] sm:$0xff]
        %v2946 = vld [vmem:[%s2921 + $0xc0] sm:$0xff]
        %v2947 = vld [vmem:[%s2921 + $0xc8] sm:$0xff]
        %v2948 = vld [vmem:[%s2921 + $0xd0] sm:$0xff]
        %v2949 = vld [vmem:[%s2921 + $0xd8] sm:$0xff]
        %v2950 = vld [vmem:[%s2921 + $0xe0] sm:$0xff]
        %v2951 = vld [vmem:[%s2921 + $0xe8] sm:$0xff]
        %v2952 = vld [vmem:[%s2921 + $0xf0] sm:$0xff]
        %v2953 = vld [vmem:[%s2921 + $0xf8] sm:$0xff]
        %2954 = vmatprep.subr.mxu0 %v2923
        %2955 = vmatpush1.msra.mxu0 %v2922
        %2956 = vmatprep.subr.mxu0 %v2925
        %2957 = vmatpush1.msra.mxu0 %v2924
        %2958 = vmatprep.subr.mxu0 %v2927
        %2959 = vmatpush1.msra.mxu0 %v2926
        %2960 = vmatprep.subr.mxu0 %v2929
        %2961 = vmatpush1.msra.mxu0 %v2928
        %2962 = vmatprep.subr.mxu0 %v2931
        %2963 = vmatpush1.msra.mxu0 %v2930
        %2964 = vmatprep.subr.mxu0 %v2933
        %2965 = vmatpush1.msra.mxu0 %v2932
        %2966 = vmatprep.subr.mxu0 %v2935
        %2967 = vmatpush1.msra.mxu0 %v2934
        %2968 = vmatprep.subr.mxu0 %v2937
        %2969 = vmatpush1.msra.mxu0 %v2936
        %2970 = vmatprep.subr.mxu0 %v2939
        %2971 = vmatpush1.msra.mxu0 %v2938
        %2972 = vmatprep.subr.mxu0 %v2941
        %2973 = vmatpush1.msra.mxu0 %v2940
        %2974 = vmatprep.subr.mxu0 %v2943
        %2975 = vmatpush1.msra.mxu0 %v2942
        %2976 = vmatprep.subr.mxu0 %v2945
        %2977 = vmatpush1.msra.mxu0 %v2944
        %2978 = vmatprep.subr.mxu0 %v2947
        %2979 = vmatpush1.msra.mxu0 %v2946
        %2980 = vmatprep.subr.mxu0 %v2949
        %2981 = vmatpush1.msra.mxu0 %v2948
        %2982 = vmatprep.subr.mxu0 %v2951
        %2983 = vmatpush1.msra.mxu0 %v2950
        %2984 = vmatprep.subr.mxu0 %v2953
        %2985 = vmatpush1.msra.mxu0 %v2952
        %2986 = vmatprep.subr.mxu0 0.0
        %2987 = vmatpush1.msra.mxu0 0.0
        %2988 = vmatprep.subr.mxu0 0.0
        %2989 = vmatpush1.msra.mxu0 0.0
        %2990 = vmatprep.subr.mxu0 0.0
        %2991 = vmatpush1.msra.mxu0 0.0
        %2992 = vmatprep.subr.mxu0 0.0
        %2993 = vmatpush1.msra.mxu0 0.0
        %2994 = vmatprep.subr.mxu0 0.0
        %2995 = vmatpush1.msra.mxu0 0.0
        %2996 = vmatprep.subr.mxu0 0.0
        %2997 = vmatpush1.msra.mxu0 0.0
        %2998 = vmatprep.subr.mxu0 0.0
        %2999 = vmatpush1.msra.mxu0 0.0
        %3000 = vmatprep.subr.mxu0 0.0
        %3001 = vmatpush1.msra.mxu0 0.0
        %3002 = vmatprep.subr.mxu0 0.0
        %3003 = vmatpush1.msra.mxu0 0.0
        %3004 = vmatprep.subr.mxu0 0.0
        %3005 = vmatpush1.msra.mxu0 0.0
        %3006 = vmatprep.subr.mxu0 0.0
        %3007 = vmatpush1.msra.mxu0 0.0
        %3008 = vmatprep.subr.mxu0 0.0
        %3009 = vmatpush1.msra.mxu0 0.0
        %3010 = vmatprep.subr.mxu0 0.0
        %3011 = vmatpush1.msra.mxu0 0.0
        %3012 = vmatprep.subr.mxu0 0.0
        %3013 = vmatpush1.msra.mxu0 0.0
        %3014 = vmatprep.subr.mxu0 0.0
        %3015 = vmatpush1.msra.mxu0 0.0
        %3016 = vmatprep.subr.mxu0 0.0
        %3017 = vmatpush1.msra.mxu0 0.0
        %3018 = vmatprep.mubr.f32.mxu0 0.0
        %3019 = vmatmul.mubr.f32.gmra.mrb[0].mxu0 %v2913
        %v3020 = vpop.f32.mrb[0].mxu0
        %v3021 = vadd.f32 0.0, %v3020
        %v3022 = vpop.f32.mrb[0].mxu0
        %v3023 = vadd.f32 0.0, %v3022
        %3024 = vmatprep.mubr.f32.mxu0 0.0
        %3025 = vmatmul.mubr.f32.gmra.mrb[0].mxu0 %v2918
        %v3026 = vpop.f32.mrb[0].mxu0
        %v3027 = vadd.f32 0.0, %v3026
        %v3028 = vpop.f32.mrb[0].mxu0
        %v3029 = vadd.f32 0.0, %v3028
        %3030 = vdwg.mxu0
        %v3031 = vadd.f32 %v2833, %v3021
        %v3032 = vadd.f32 %v2834, %v3023
        %v3033 = vadd.f32 %v2835, %v3027
        %v3034 = vadd.f32 %v2836, %v3029
        %s3035 = scalar_lea.vmem %s7, 64
        %v3036 = vld [vmem:[%s3035] sm:$0xff]
        %v3037 = vld [vmem:[%s3035 + $0x8] sm:$0xff]
        %v3039 = vsel %vm2254, %v3036, 0
        %v3042 = vsel %vm2254, %v3037, 0
        %3044 = vmatprep.subr.mxu0 0.0
        %3045 = vmatpush1.msra.mxu0 %v2250
        %3046 = vmatprep.subr.mxu0 0.0
        %3047 = vmatpush1.msra.mxu0 %v2251
        %3048 = vmatprep.subr.mxu0 0.0
        %3049 = vmatpush1.msra.mxu0 %v2252
        %3050 = vmatprep.subr.mxu0 0.0
        %3051 = vmatpush1.msra.mxu0 %v2253
        %3052 = vmatprep.subr.mxu0 0.0
        %3053 = vmatpush1.msra.mxu0 0.0
        %3054 = vmatprep.subr.mxu0 0.0
        %3055 = vmatpush1.msra.mxu0 0.0
        %3056 = vmatprep.subr.mxu0 0.0
        %3057 = vmatpush1.msra.mxu0 0.0
        %3058 = vmatprep.subr.mxu0 0.0
        %3059 = vmatpush1.msra.mxu0 0.0
        %3060 = vmatprep.subr.mxu0 0.0
        %3061 = vmatpush1.msra.mxu0 0.0
        %3062 = vmatprep.subr.mxu0 0.0
        %3063 = vmatpush1.msra.mxu0 0.0
        %3064 = vmatprep.subr.mxu0 0.0
        %3065 = vmatpush1.msra.mxu0 0.0
        %3066 = vmatprep.subr.mxu0 0.0
        %3067 = vmatpush1.msra.mxu0 0.0
        %3068 = vmatprep.subr.mxu0 0.0
        %3069 = vmatpush1.msra.mxu0 0.0
        %3070 = vmatprep.subr.mxu0 0.0
        %3071 = vmatpush1.msra.mxu0 0.0
        %3072 = vmatprep.subr.mxu0 0.0
        %3073 = vmatpush1.msra.mxu0 0.0
        %3074 = vmatprep.subr.mxu0 0.0
        %3075 = vmatpush1.msra.mxu0 0.0
        %3076 = vmatprep.subr.mxu0 0.0
        %3077 = vmatpush1.msra.mxu0 0.0
        %3078 = vmatprep.subr.mxu0 0.0
        %3079 = vmatpush1.msra.mxu0 0.0
        %3080 = vmatprep.subr.mxu0 0.0
        %3081 = vmatpush1.msra.mxu0 0.0
        %3082 = vmatprep.subr.mxu0 0.0
        %3083 = vmatpush1.msra.mxu0 0.0
        %3084 = vmatprep.subr.mxu0 0.0
        %3085 = vmatpush1.msra.mxu0 0.0
        %3086 = vmatprep.subr.mxu0 0.0
        %3087 = vmatpush1.msra.mxu0 0.0
        %3088 = vmatprep.subr.mxu0 0.0
        %3089 = vmatpush1.msra.mxu0 0.0
        %3090 = vmatprep.subr.mxu0 0.0
        %3091 = vmatpush1.msra.mxu0 0.0
        %3092 = vmatprep.subr.mxu0 0.0
        %3093 = vmatpush1.msra.mxu0 0.0
        %3094 = vmatprep.subr.mxu0 0.0
        %3095 = vmatpush1.msra.mxu0 0.0
        %3096 = vmatprep.subr.mxu0 0.0
        %3097 = vmatpush1.msra.mxu0 0.0
        %3098 = vmatprep.subr.mxu0 0.0
        %3099 = vmatpush1.msra.mxu0 0.0
        %3100 = vmatprep.subr.mxu0 0.0
        %3101 = vmatpush1.msra.mxu0 0.0
        %3102 = vmatprep.subr.mxu0 0.0
        %3103 = vmatpush1.msra.mxu0 0.0
        %3104 = vmatprep.subr.mxu0 0.0
        %3105 = vmatpush1.msra.mxu0 0.0
        %3106 = vmatprep.subr.mxu0 0.0
        %3107 = vmatpush1.msra.mxu0 0.0
        %3108 = vmatprep.mubr.f32.mxu0 0.0
        %3109 = vmatmul.mubr.f32.gmra.mrb[0].mxu0 %v3039
        %v3110 = vpop.f32.mrb[0].mxu0
        %v3111 = vadd.f32 0.0, %v3110
        %v3112 = vpop.f32.mrb[0].mxu0
        %3113 = vmatprep.mubr.f32.mxu0 0.0
        %3114 = vmatmul.mubr.f32.gmra.mrb[0].mxu0 %v3042
        %v3115 = vpop.f32.mrb[0].mxu0
        %v3116 = vadd.f32 0.0, %v3115
        %v3117 = vpop.f32.mrb[0].mxu0
        %3118 = vdwg.mxu0
        %s3119 = scalar_lea.vmem %s8, 1024
        %v3120 = vld [vmem:[%s3119] sm:$0xff]
        %v3121 = vld [vmem:[%s3119 + $0x8] sm:$0xff]
        %v3122 = vld [vmem:[%s3119 + $0x10] sm:$0xff]
        %v3123 = vld [vmem:[%s3119 + $0x18] sm:$0xff]
        %v3124 = vld [vmem:[%s3119 + $0x20] sm:$0xff]
        %v3125 = vld [vmem:[%s3119 + $0x28] sm:$0xff]
        %v3126 = vld [vmem:[%s3119 + $0x30] sm:$0xff]
        %v3127 = vld [vmem:[%s3119 + $0x38] sm:$0xff]
        %v3128 = vld [vmem:[%s3119 + $0x40] sm:$0xff]
        %v3129 = vld [vmem:[%s3119 + $0x48] sm:$0xff]
        %v3130 = vld [vmem:[%s3119 + $0x50] sm:$0xff]
        %v3131 = vld [vmem:[%s3119 + $0x58] sm:$0xff]
        %v3132 = vld [vmem:[%s3119 + $0x60] sm:$0xff]
        %v3133 = vld [vmem:[%s3119 + $0x68] sm:$0xff]
        %v3134 = vld [vmem:[%s3119 + $0x70] sm:$0xff]
        %v3135 = vld [vmem:[%s3119 + $0x78] sm:$0xff]
        %v3136 = vld [vmem:[%s3119 + $0x80] sm:$0xff]
        %v3137 = vld [vmem:[%s3119 + $0x88] sm:$0xff]
        %v3138 = vld [vmem:[%s3119 + $0x90] sm:$0xff]
        %v3139 = vld [vmem:[%s3119 + $0x98] sm:$0xff]
        %v3140 = vld [vmem:[%s3119 + $0xa0] sm:$0xff]
        %v3141 = vld [vmem:[%s3119 + $0xa8] sm:$0xff]
        %v3142 = vld [vmem:[%s3119 + $0xb0] sm:$0xff]
        %v3143 = vld [vmem:[%s3119 + $0xb8] sm:$0xff]
        %v3144 = vld [vmem:[%s3119 + $0xc0] sm:$0xff]
        %v3145 = vld [vmem:[%s3119 + $0xc8] sm:$0xff]
        %v3146 = vld [vmem:[%s3119 + $0xd0] sm:$0xff]
        %v3147 = vld [vmem:[%s3119 + $0xd8] sm:$0xff]
        %v3148 = vld [vmem:[%s3119 + $0xe0] sm:$0xff]
        %v3149 = vld [vmem:[%s3119 + $0xe8] sm:$0xff]
        %v3150 = vld [vmem:[%s3119 + $0xf0] sm:$0xff]
        %v3151 = vld [vmem:[%s3119 + $0xf8] sm:$0xff]
        %3152 = vmatprep.subr.mxu0 %v3121
        %3153 = vmatpush1.msra.mxu0 %v3120
        %3154 = vmatprep.subr.mxu0 %v3123
        %3155 = vmatpush1.msra.mxu0 %v3122
        %3156 = vmatprep.subr.mxu0 %v3125
        %3157 = vmatpush1.msra.mxu0 %v3124
        %3158 = vmatprep.subr.mxu0 %v3127
        %3159 = vmatpush1.msra.mxu0 %v3126
        %3160 = vmatprep.subr.mxu0 %v3129
        %3161 = vmatpush1.msra.mxu0 %v3128
        %3162 = vmatprep.subr.mxu0 %v3131
        %3163 = vmatpush1.msra.mxu0 %v3130
        %3164 = vmatprep.subr.mxu0 %v3133
        %3165 = vmatpush1.msra.mxu0 %v3132
        %3166 = vmatprep.subr.mxu0 %v3135
        %3167 = vmatpush1.msra.mxu0 %v3134
        %3168 = vmatprep.subr.mxu0 %v3137
        %3169 = vmatpush1.msra.mxu0 %v3136
        %3170 = vmatprep.subr.mxu0 %v3139
        %3171 = vmatpush1.msra.mxu0 %v3138
        %3172 = vmatprep.subr.mxu0 %v3141
        %3173 = vmatpush1.msra.mxu0 %v3140
        %3174 = vmatprep.subr.mxu0 %v3143
        %3175 = vmatpush1.msra.mxu0 %v3142
        %3176 = vmatprep.subr.mxu0 %v3145
        %3177 = vmatpush1.msra.mxu0 %v3144
        %3178 = vmatprep.subr.mxu0 %v3147
        %3179 = vmatpush1.msra.mxu0 %v3146
        %3180 = vmatprep.subr.mxu0 %v3149
        %3181 = vmatpush1.msra.mxu0 %v3148
        %3182 = vmatprep.subr.mxu0 %v3151
        %3183 = vmatpush1.msra.mxu0 %v3150
        %3184 = vmatprep.subr.mxu0 0.0
        %3185 = vmatpush1.msra.mxu0 0.0
        %3186 = vmatprep.subr.mxu0 0.0
        %3187 = vmatpush1.msra.mxu0 0.0
        %3188 = vmatprep.subr.mxu0 0.0
        %3189 = vmatpush1.msra.mxu0 0.0
        %3190 = vmatprep.subr.mxu0 0.0
        %3191 = vmatpush1.msra.mxu0 0.0
        %3192 = vmatprep.subr.mxu0 0.0
        %3193 = vmatpush1.msra.mxu0 0.0
        %3194 = vmatprep.subr.mxu0 0.0
        %3195 = vmatpush1.msra.mxu0 0.0
        %3196 = vmatprep.subr.mxu0 0.0
        %3197 = vmatpush1.msra.mxu0 0.0
        %3198 = vmatprep.subr.mxu0 0.0
        %3199 = vmatpush1.msra.mxu0 0.0
        %3200 = vmatprep.subr.mxu0 0.0
        %3201 = vmatpush1.msra.mxu0 0.0
        %3202 = vmatprep.subr.mxu0 0.0
        %3203 = vmatpush1.msra.mxu0 0.0
        %3204 = vmatprep.subr.mxu0 0.0
        %3205 = vmatpush1.msra.mxu0 0.0
        %3206 = vmatprep.subr.mxu0 0.0
        %3207 = vmatpush1.msra.mxu0 0.0
        %3208 = vmatprep.subr.mxu0 0.0
        %3209 = vmatpush1.msra.mxu0 0.0
        %3210 = vmatprep.subr.mxu0 0.0
        %3211 = vmatpush1.msra.mxu0 0.0
        %3212 = vmatprep.subr.mxu0 0.0
        %3213 = vmatpush1.msra.mxu0 0.0
        %3214 = vmatprep.subr.mxu0 0.0
        %3215 = vmatpush1.msra.mxu0 0.0
        %3216 = vmatprep.mubr.f32.mxu0 0.0
        %3217 = vmatmul.mubr.f32.gmra.mrb[0].mxu0 %v3111
        %v3218 = vpop.f32.mrb[0].mxu0
        %v3219 = vadd.f32 0.0, %v3218
        %v3220 = vpop.f32.mrb[0].mxu0
        %v3221 = vadd.f32 0.0, %v3220
        %3222 = vmatprep.mubr.f32.mxu0 0.0
        %3223 = vmatmul.mubr.f32.gmra.mrb[0].mxu0 %v3116
        %v3224 = vpop.f32.mrb[0].mxu0
        %v3225 = vadd.f32 0.0, %v3224
        %v3226 = vpop.f32.mrb[0].mxu0
        %v3227 = vadd.f32 0.0, %v3226
        %3228 = vdwg.mxu0
        %v3229 = vadd.f32 %v3031, %v3219
        %v3230 = vadd.f32 %v3032, %v3221
        %v3231 = vadd.f32 %v3033, %v3225
        %v3232 = vadd.f32 %v3034, %v3227
        %s3233 = scalar_lea.vmem %s7, 80
        %v3234 = vld [vmem:[%s3233] sm:$0xff]
        %v3235 = vld [vmem:[%s3233 + $0x8] sm:$0xff]
        %v3237 = vsel %vm2254, %v3234, 0
        %v3240 = vsel %vm2254, %v3235, 0
        %3242 = vmatprep.subr.mxu0 0.0
        %3243 = vmatpush1.msra.mxu0 %v2250
        %3244 = vmatprep.subr.mxu0 0.0
        %3245 = vmatpush1.msra.mxu0 %v2251
        %3246 = vmatprep.subr.mxu0 0.0
        %3247 = vmatpush1.msra.mxu0 %v2252
        %3248 = vmatprep.subr.mxu0 0.0
        %3249 = vmatpush1.msra.mxu0 %v2253
        %3250 = vmatprep.subr.mxu0 0.0
        %3251 = vmatpush1.msra.mxu0 0.0
        %3252 = vmatprep.subr.mxu0 0.0
        %3253 = vmatpush1.msra.mxu0 0.0
        %3254 = vmatprep.subr.mxu0 0.0
        %3255 = vmatpush1.msra.mxu0 0.0
        %3256 = vmatprep.subr.mxu0 0.0
        %3257 = vmatpush1.msra.mxu0 0.0
        %3258 = vmatprep.subr.mxu0 0.0
        %3259 = vmatpush1.msra.mxu0 0.0
        %3260 = vmatprep.subr.mxu0 0.0
        %3261 = vmatpush1.msra.mxu0 0.0
        %3262 = vmatprep.subr.mxu0 0.0
        %3263 = vmatpush1.msra.mxu0 0.0
        %3264 = vmatprep.subr.mxu0 0.0
        %3265 = vmatpush1.msra.mxu0 0.0
        %3266 = vmatprep.subr.mxu0 0.0
        %3267 = vmatpush1.msra.mxu0 0.0
        %3268 = vmatprep.subr.mxu0 0.0
        %3269 = vmatpush1.msra.mxu0 0.0
        %3270 = vmatprep.subr.mxu0 0.0
        %3271 = vmatpush1.msra.mxu0 0.0
        %3272 = vmatprep.subr.mxu0 0.0
        %3273 = vmatpush1.msra.mxu0 0.0
        %3274 = vmatprep.subr.mxu0 0.0
        %3275 = vmatpush1.msra.mxu0 0.0
        %3276 = vmatprep.subr.mxu0 0.0
        %3277 = vmatpush1.msra.mxu0 0.0
        %3278 = vmatprep.subr.mxu0 0.0
        %3279 = vmatpush1.msra.mxu0 0.0
        %3280 = vmatprep.subr.mxu0 0.0
        %3281 = vmatpush1.msra.mxu0 0.0
        %3282 = vmatprep.subr.mxu0 0.0
        %3283 = vmatpush1.msra.mxu0 0.0
        %3284 = vmatprep.subr.mxu0 0.0
        %3285 = vmatpush1.msra.mxu0 0.0
        %3286 = vmatprep.subr.mxu0 0.0
        %3287 = vmatpush1.msra.mxu0 0.0
        %3288 = vmatprep.subr.mxu0 0.0
        %3289 = vmatpush1.msra.mxu0 0.0
        %3290 = vmatprep.subr.mxu0 0.0
        %3291 = vmatpush1.msra.mxu0 0.0
        %3292 = vmatprep.subr.mxu0 0.0
        %3293 = vmatpush1.msra.mxu0 0.0
        %3294 = vmatprep.subr.mxu0 0.0
        %3295 = vmatpush1.msra.mxu0 0.0
        %3296 = vmatprep.subr.mxu0 0.0
        %3297 = vmatpush1.msra.mxu0 0.0
        %3298 = vmatprep.subr.mxu0 0.0
        %3299 = vmatpush1.msra.mxu0 0.0
        %3300 = vmatprep.subr.mxu0 0.0
        %3301 = vmatpush1.msra.mxu0 0.0
        %3302 = vmatprep.subr.mxu0 0.0
        %3303 = vmatpush1.msra.mxu0 0.0
        %3304 = vmatprep.subr.mxu0 0.0
        %3305 = vmatpush1.msra.mxu0 0.0
        %3306 = vmatprep.mubr.f32.mxu0 0.0
        %3307 = vmatmul.mubr.f32.gmra.mrb[0].mxu0 %v3237
        %v3308 = vpop.f32.mrb[0].mxu0
        %v3309 = vadd.f32 0.0, %v3308
        %v3310 = vpop.f32.mrb[0].mxu0
        %3311 = vmatprep.mubr.f32.mxu0 0.0
        %3312 = vmatmul.mubr.f32.gmra.mrb[0].mxu0 %v3240
        %v3313 = vpop.f32.mrb[0].mxu0
        %v3314 = vadd.f32 0.0, %v3313
        %v3315 = vpop.f32.mrb[0].mxu0
        %3316 = vdwg.mxu0
        %s3317 = scalar_lea.vmem %s8, 1280
        %v3318 = vld [vmem:[%s3317] sm:$0xff]
        %v3319 = vld [vmem:[%s3317 + $0x8] sm:$0xff]
        %v3320 = vld [vmem:[%s3317 + $0x10] sm:$0xff]
        %v3321 = vld [vmem:[%s3317 + $0x18] sm:$0xff]
        %v3322 = vld [vmem:[%s3317 + $0x20] sm:$0xff]
        %v3323 = vld [vmem:[%s3317 + $0x28] sm:$0xff]
        %v3324 = vld [vmem:[%s3317 + $0x30] sm:$0xff]
        %v3325 = vld [vmem:[%s3317 + $0x38] sm:$0xff]
        %v3326 = vld [vmem:[%s3317 + $0x40] sm:$0xff]
        %v3327 = vld [vmem:[%s3317 + $0x48] sm:$0xff]
        %v3328 = vld [vmem:[%s3317 + $0x50] sm:$0xff]
        %v3329 = vld [vmem:[%s3317 + $0x58] sm:$0xff]
        %v3330 = vld [vmem:[%s3317 + $0x60] sm:$0xff]
        %v3331 = vld [vmem:[%s3317 + $0x68] sm:$0xff]
        %v3332 = vld [vmem:[%s3317 + $0x70] sm:$0xff]
        %v3333 = vld [vmem:[%s3317 + $0x78] sm:$0xff]
        %v3334 = vld [vmem:[%s3317 + $0x80] sm:$0xff]
        %v3335 = vld [vmem:[%s3317 + $0x88] sm:$0xff]
        %v3336 = vld [vmem:[%s3317 + $0x90] sm:$0xff]
        %v3337 = vld [vmem:[%s3317 + $0x98] sm:$0xff]
        %v3338 = vld [vmem:[%s3317 + $0xa0] sm:$0xff]
        %v3339 = vld [vmem:[%s3317 + $0xa8] sm:$0xff]
        %v3340 = vld [vmem:[%s3317 + $0xb0] sm:$0xff]
        %v3341 = vld [vmem:[%s3317 + $0xb8] sm:$0xff]
        %v3342 = vld [vmem:[%s3317 + $0xc0] sm:$0xff]
        %v3343 = vld [vmem:[%s3317 + $0xc8] sm:$0xff]
        %v3344 = vld [vmem:[%s3317 + $0xd0] sm:$0xff]
        %v3345 = vld [vmem:[%s3317 + $0xd8] sm:$0xff]
        %v3346 = vld [vmem:[%s3317 + $0xe0] sm:$0xff]
        %v3347 = vld [vmem:[%s3317 + $0xe8] sm:$0xff]
        %v3348 = vld [vmem:[%s3317 + $0xf0] sm:$0xff]
        %v3349 = vld [vmem:[%s3317 + $0xf8] sm:$0xff]
        %3350 = vmatprep.subr.mxu0 %v3319
        %3351 = vmatpush1.msra.mxu0 %v3318
        %3352 = vmatprep.subr.mxu0 %v3321
        %3353 = vmatpush1.msra.mxu0 %v3320
        %3354 = vmatprep.subr.mxu0 %v3323
        %3355 = vmatpush1.msra.mxu0 %v3322
        %3356 = vmatprep.subr.mxu0 %v3325
        %3357 = vmatpush1.msra.mxu0 %v3324
        %3358 = vmatprep.subr.mxu0 %v3327
        %3359 = vmatpush1.msra.mxu0 %v3326
        %3360 = vmatprep.subr.mxu0 %v3329
        %3361 = vmatpush1.msra.mxu0 %v3328
        %3362 = vmatprep.subr.mxu0 %v3331
        %3363 = vmatpush1.msra.mxu0 %v3330
        %3364 = vmatprep.subr.mxu0 %v3333
        %3365 = vmatpush1.msra.mxu0 %v3332
        %3366 = vmatprep.subr.mxu0 %v3335
        %3367 = vmatpush1.msra.mxu0 %v3334
        %3368 = vmatprep.subr.mxu0 %v3337
        %3369 = vmatpush1.msra.mxu0 %v3336
        %3370 = vmatprep.subr.mxu0 %v3339
        %3371 = vmatpush1.msra.mxu0 %v3338
        %3372 = vmatprep.subr.mxu0 %v3341
        %3373 = vmatpush1.msra.mxu0 %v3340
        %3374 = vmatprep.subr.mxu0 %v3343
        %3375 = vmatpush1.msra.mxu0 %v3342
        %3376 = vmatprep.subr.mxu0 %v3345
        %3377 = vmatpush1.msra.mxu0 %v3344
        %3378 = vmatprep.subr.mxu0 %v3347
        %3379 = vmatpush1.msra.mxu0 %v3346
        %3380 = vmatprep.subr.mxu0 %v3349
        %3381 = vmatpush1.msra.mxu0 %v3348
        %3382 = vmatprep.subr.mxu0 0.0
        %3383 = vmatpush1.msra.mxu0 0.0
        %3384 = vmatprep.subr.mxu0 0.0
        %3385 = vmatpush1.msra.mxu0 0.0
        %3386 = vmatprep.subr.mxu0 0.0
        %3387 = vmatpush1.msra.mxu0 0.0
        %3388 = vmatprep.subr.mxu0 0.0
        %3389 = vmatpush1.msra.mxu0 0.0
        %3390 = vmatprep.subr.mxu0 0.0
        %3391 = vmatpush1.msra.mxu0 0.0
        %3392 = vmatprep.subr.mxu0 0.0
        %3393 = vmatpush1.msra.mxu0 0.0
        %3394 = vmatprep.subr.mxu0 0.0
        %3395 = vmatpush1.msra.mxu0 0.0
        %3396 = vmatprep.subr.mxu0 0.0
        %3397 = vmatpush1.msra.mxu0 0.0
        %3398 = vmatprep.subr.mxu0 0.0
        %3399 = vmatpush1.msra.mxu0 0.0
        %3400 = vmatprep.subr.mxu0 0.0
        %3401 = vmatpush1.msra.mxu0 0.0
        %3402 = vmatprep.subr.mxu0 0.0
        %3403 = vmatpush1.msra.mxu0 0.0
        %3404 = vmatprep.subr.mxu0 0.0
        %3405 = vmatpush1.msra.mxu0 0.0
        %3406 = vmatprep.subr.mxu0 0.0
        %3407 = vmatpush1.msra.mxu0 0.0
        %3408 = vmatprep.subr.mxu0 0.0
        %3409 = vmatpush1.msra.mxu0 0.0
        %3410 = vmatprep.subr.mxu0 0.0
        %3411 = vmatpush1.msra.mxu0 0.0
        %3412 = vmatprep.subr.mxu0 0.0
        %3413 = vmatpush1.msra.mxu0 0.0
        %3414 = vmatprep.mubr.f32.mxu0 0.0
        %3415 = vmatmul.mubr.f32.gmra.mrb[0].mxu0 %v3309
        %v3416 = vpop.f32.mrb[0].mxu0
        %v3417 = vadd.f32 0.0, %v3416
        %v3418 = vpop.f32.mrb[0].mxu0
        %v3419 = vadd.f32 0.0, %v3418
        %3420 = vmatprep.mubr.f32.mxu0 0.0
        %3421 = vmatmul.mubr.f32.gmra.mrb[0].mxu0 %v3314
        %v3422 = vpop.f32.mrb[0].mxu0
        %v3423 = vadd.f32 0.0, %v3422
        %v3424 = vpop.f32.mrb[0].mxu0
        %v3425 = vadd.f32 0.0, %v3424
        %3426 = vdwg.mxu0
        %v3427 = vadd.f32 %v3229, %v3417
        %v3428 = vadd.f32 %v3230, %v3419
        %v3429 = vadd.f32 %v3231, %v3423
        %v3430 = vadd.f32 %v3232, %v3425
        %s3431 = scalar_lea.vmem %s7, 96
        %v3432 = vld [vmem:[%s3431] sm:$0xff]
        %v3433 = vld [vmem:[%s3431 + $0x8] sm:$0xff]
        %v3435 = vsel %vm2254, %v3432, 0
        %v3438 = vsel %vm2254, %v3433, 0
        %3440 = vmatprep.subr.mxu0 0.0
        %3441 = vmatpush1.msra.mxu0 %v2250
        %3442 = vmatprep.subr.mxu0 0.0
        %3443 = vmatpush1.msra.mxu0 %v2251
        %3444 = vmatprep.subr.mxu0 0.0
        %3445 = vmatpush1.msra.mxu0 %v2252
        %3446 = vmatprep.subr.mxu0 0.0
        %3447 = vmatpush1.msra.mxu0 %v2253
        %3448 = vmatprep.subr.mxu0 0.0
        %3449 = vmatpush1.msra.mxu0 0.0
        %3450 = vmatprep.subr.mxu0 0.0
        %3451 = vmatpush1.msra.mxu0 0.0
        %3452 = vmatprep.subr.mxu0 0.0
        %3453 = vmatpush1.msra.mxu0 0.0
        %3454 = vmatprep.subr.mxu0 0.0
        %3455 = vmatpush1.msra.mxu0 0.0
        %3456 = vmatprep.subr.mxu0 0.0
        %3457 = vmatpush1.msra.mxu0 0.0
        %3458 = vmatprep.subr.mxu0 0.0
        %3459 = vmatpush1.msra.mxu0 0.0
        %3460 = vmatprep.subr.mxu0 0.0
        %3461 = vmatpush1.msra.mxu0 0.0
        %3462 = vmatprep.subr.mxu0 0.0
        %3463 = vmatpush1.msra.mxu0 0.0
        %3464 = vmatprep.subr.mxu0 0.0
        %3465 = vmatpush1.msra.mxu0 0.0
        %3466 = vmatprep.subr.mxu0 0.0
        %3467 = vmatpush1.msra.mxu0 0.0
        %3468 = vmatprep.subr.mxu0 0.0
        %3469 = vmatpush1.msra.mxu0 0.0
        %3470 = vmatprep.subr.mxu0 0.0
        %3471 = vmatpush1.msra.mxu0 0.0
        %3472 = vmatprep.subr.mxu0 0.0
        %3473 = vmatpush1.msra.mxu0 0.0
        %3474 = vmatprep.subr.mxu0 0.0
        %3475 = vmatpush1.msra.mxu0 0.0
        %3476 = vmatprep.subr.mxu0 0.0
        %3477 = vmatpush1.msra.mxu0 0.0
        %3478 = vmatprep.subr.mxu0 0.0
        %3479 = vmatpush1.msra.mxu0 0.0
        %3480 = vmatprep.subr.mxu0 0.0
        %3481 = vmatpush1.msra.mxu0 0.0
        %3482 = vmatprep.subr.mxu0 0.0
        %3483 = vmatpush1.msra.mxu0 0.0
        %3484 = vmatprep.subr.mxu0 0.0
        %3485 = vmatpush1.msra.mxu0 0.0
        %3486 = vmatprep.subr.mxu0 0.0
        %3487 = vmatpush1.msra.mxu0 0.0
        %3488 = vmatprep.subr.mxu0 0.0
        %3489 = vmatpush1.msra.mxu0 0.0
        %3490 = vmatprep.subr.mxu0 0.0
        %3491 = vmatpush1.msra.mxu0 0.0
        %3492 = vmatprep.subr.mxu0 0.0
        %3493 = vmatpush1.msra.mxu0 0.0
        %3494 = vmatprep.subr.mxu0 0.0
        %3495 = vmatpush1.msra.mxu0 0.0
        %3496 = vmatprep.subr.mxu0 0.0
        %3497 = vmatpush1.msra.mxu0 0.0
        %3498 = vmatprep.subr.mxu0 0.0
        %3499 = vmatpush1.msra.mxu0 0.0
        %3500 = vmatprep.subr.mxu0 0.0
        %3501 = vmatpush1.msra.mxu0 0.0
        %3502 = vmatprep.subr.mxu0 0.0
        %3503 = vmatpush1.msra.mxu0 0.0
        %3504 = vmatprep.mubr.f32.mxu0 0.0
        %3505 = vmatmul.mubr.f32.gmra.mrb[0].mxu0 %v3435
        %v3506 = vpop.f32.mrb[0].mxu0
        %v3507 = vadd.f32 0.0, %v3506
        %v3508 = vpop.f32.mrb[0].mxu0
        %3509 = vmatprep.mubr.f32.mxu0 0.0
        %3510 = vmatmul.mubr.f32.gmra.mrb[0].mxu0 %v3438
        %v3511 = vpop.f32.mrb[0].mxu0
        %v3512 = vadd.f32 0.0, %v3511
        %v3513 = vpop.f32.mrb[0].mxu0
        %3514 = vdwg.mxu0
        %s3515 = scalar_lea.vmem %s8, 1536
        %v3516 = vld [vmem:[%s3515] sm:$0xff]
        %v3517 = vld [vmem:[%s3515 + $0x8] sm:$0xff]
        %v3518 = vld [vmem:[%s3515 + $0x10] sm:$0xff]
        %v3519 = vld [vmem:[%s3515 + $0x18] sm:$0xff]
        %v3520 = vld [vmem:[%s3515 + $0x20] sm:$0xff]
        %v3521 = vld [vmem:[%s3515 + $0x28] sm:$0xff]
        %v3522 = vld [vmem:[%s3515 + $0x30] sm:$0xff]
        %v3523 = vld [vmem:[%s3515 + $0x38] sm:$0xff]
        %v3524 = vld [vmem:[%s3515 + $0x40] sm:$0xff]
        %v3525 = vld [vmem:[%s3515 + $0x48] sm:$0xff]
        %v3526 = vld [vmem:[%s3515 + $0x50] sm:$0xff]
        %v3527 = vld [vmem:[%s3515 + $0x58] sm:$0xff]
        %v3528 = vld [vmem:[%s3515 + $0x60] sm:$0xff]
        %v3529 = vld [vmem:[%s3515 + $0x68] sm:$0xff]
        %v3530 = vld [vmem:[%s3515 + $0x70] sm:$0xff]
        %v3531 = vld [vmem:[%s3515 + $0x78] sm:$0xff]
        %v3532 = vld [vmem:[%s3515 + $0x80] sm:$0xff]
        %v3533 = vld [vmem:[%s3515 + $0x88] sm:$0xff]
        %v3534 = vld [vmem:[%s3515 + $0x90] sm:$0xff]
        %v3535 = vld [vmem:[%s3515 + $0x98] sm:$0xff]
        %v3536 = vld [vmem:[%s3515 + $0xa0] sm:$0xff]
        %v3537 = vld [vmem:[%s3515 + $0xa8] sm:$0xff]
        %v3538 = vld [vmem:[%s3515 + $0xb0] sm:$0xff]
        %v3539 = vld [vmem:[%s3515 + $0xb8] sm:$0xff]
        %v3540 = vld [vmem:[%s3515 + $0xc0] sm:$0xff]
        %v3541 = vld [vmem:[%s3515 + $0xc8] sm:$0xff]
        %v3542 = vld [vmem:[%s3515 + $0xd0] sm:$0xff]
        %v3543 = vld [vmem:[%s3515 + $0xd8] sm:$0xff]
        %v3544 = vld [vmem:[%s3515 + $0xe0] sm:$0xff]
        %v3545 = vld [vmem:[%s3515 + $0xe8] sm:$0xff]
        %v3546 = vld [vmem:[%s3515 + $0xf0] sm:$0xff]
        %v3547 = vld [vmem:[%s3515 + $0xf8] sm:$0xff]
        %3548 = vmatprep.subr.mxu0 %v3517
        %3549 = vmatpush1.msra.mxu0 %v3516
        %3550 = vmatprep.subr.mxu0 %v3519
        %3551 = vmatpush1.msra.mxu0 %v3518
        %3552 = vmatprep.subr.mxu0 %v3521
        %3553 = vmatpush1.msra.mxu0 %v3520
        %3554 = vmatprep.subr.mxu0 %v3523
        %3555 = vmatpush1.msra.mxu0 %v3522
        %3556 = vmatprep.subr.mxu0 %v3525
        %3557 = vmatpush1.msra.mxu0 %v3524
        %3558 = vmatprep.subr.mxu0 %v3527
        %3559 = vmatpush1.msra.mxu0 %v3526
        %3560 = vmatprep.subr.mxu0 %v3529
        %3561 = vmatpush1.msra.mxu0 %v3528
        %3562 = vmatprep.subr.mxu0 %v3531
        %3563 = vmatpush1.msra.mxu0 %v3530
        %3564 = vmatprep.subr.mxu0 %v3533
        %3565 = vmatpush1.msra.mxu0 %v3532
        %3566 = vmatprep.subr.mxu0 %v3535
        %3567 = vmatpush1.msra.mxu0 %v3534
        %3568 = vmatprep.subr.mxu0 %v3537
        %3569 = vmatpush1.msra.mxu0 %v3536
        %3570 = vmatprep.subr.mxu0 %v3539
        %3571 = vmatpush1.msra.mxu0 %v3538
        %3572 = vmatprep.subr.mxu0 %v3541
        %3573 = vmatpush1.msra.mxu0 %v3540
        %3574 = vmatprep.subr.mxu0 %v3543
        %3575 = vmatpush1.msra.mxu0 %v3542
        %3576 = vmatprep.subr.mxu0 %v3545
        %3577 = vmatpush1.msra.mxu0 %v3544
        %3578 = vmatprep.subr.mxu0 %v3547
        %3579 = vmatpush1.msra.mxu0 %v3546
        %3580 = vmatprep.subr.mxu0 0.0
        %3581 = vmatpush1.msra.mxu0 0.0
        %3582 = vmatprep.subr.mxu0 0.0
        %3583 = vmatpush1.msra.mxu0 0.0
        %3584 = vmatprep.subr.mxu0 0.0
        %3585 = vmatpush1.msra.mxu0 0.0
        %3586 = vmatprep.subr.mxu0 0.0
        %3587 = vmatpush1.msra.mxu0 0.0
        %3588 = vmatprep.subr.mxu0 0.0
        %3589 = vmatpush1.msra.mxu0 0.0
        %3590 = vmatprep.subr.mxu0 0.0
        %3591 = vmatpush1.msra.mxu0 0.0
        %3592 = vmatprep.subr.mxu0 0.0
        %3593 = vmatpush1.msra.mxu0 0.0
        %3594 = vmatprep.subr.mxu0 0.0
        %3595 = vmatpush1.msra.mxu0 0.0
        %3596 = vmatprep.subr.mxu0 0.0
        %3597 = vmatpush1.msra.mxu0 0.0
        %3598 = vmatprep.subr.mxu0 0.0
        %3599 = vmatpush1.msra.mxu0 0.0
        %3600 = vmatprep.subr.mxu0 0.0
        %3601 = vmatpush1.msra.mxu0 0.0
        %3602 = vmatprep.subr.mxu0 0.0
        %3603 = vmatpush1.msra.mxu0 0.0
        %3604 = vmatprep.subr.mxu0 0.0
        %3605 = vmatpush1.msra.mxu0 0.0
        %3606 = vmatprep.subr.mxu0 0.0
        %3607 = vmatpush1.msra.mxu0 0.0
        %3608 = vmatprep.subr.mxu0 0.0
        %3609 = vmatpush1.msra.mxu0 0.0
        %3610 = vmatprep.subr.mxu0 0.0
        %3611 = vmatpush1.msra.mxu0 0.0
        %3612 = vmatprep.mubr.f32.mxu0 0.0
        %3613 = vmatmul.mubr.f32.gmra.mrb[0].mxu0 %v3507
        %v3614 = vpop.f32.mrb[0].mxu0
        %v3615 = vadd.f32 0.0, %v3614
        %v3616 = vpop.f32.mrb[0].mxu0
        %v3617 = vadd.f32 0.0, %v3616
        %3618 = vmatprep.mubr.f32.mxu0 0.0
        %3619 = vmatmul.mubr.f32.gmra.mrb[0].mxu0 %v3512
        %v3620 = vpop.f32.mrb[0].mxu0
        %v3621 = vadd.f32 0.0, %v3620
        %v3622 = vpop.f32.mrb[0].mxu0
        %v3623 = vadd.f32 0.0, %v3622
        %3624 = vdwg.mxu0
        %v3625 = vadd.f32 %v3427, %v3615
        %v3626 = vadd.f32 %v3428, %v3617
        %v3627 = vadd.f32 %v3429, %v3621
        %v3628 = vadd.f32 %v3430, %v3623
        %s3629 = scalar_lea.vmem %s7, 112
        %v3630 = vld [vmem:[%s3629] sm:$0xff]
        %v3631 = vld [vmem:[%s3629 + $0x8] sm:$0xff]
        %v3633 = vsel %vm2254, %v3630, 0
        %v3636 = vsel %vm2254, %v3631, 0
        %3638 = vmatprep.subr.mxu0 0.0
        %3639 = vmatpush1.msra.mxu0 %v2250
        %3640 = vmatprep.subr.mxu0 0.0
        %3641 = vmatpush1.msra.mxu0 %v2251
        %3642 = vmatprep.subr.mxu0 0.0
        %3643 = vmatpush1.msra.mxu0 %v2252
        %3644 = vmatprep.subr.mxu0 0.0
        %3645 = vmatpush1.msra.mxu0 %v2253
        %3646 = vmatprep.subr.mxu0 0.0
        %3647 = vmatpush1.msra.mxu0 0.0
        %3648 = vmatprep.subr.mxu0 0.0
        %3649 = vmatpush1.msra.mxu0 0.0
        %3650 = vmatprep.subr.mxu0 0.0
        %3651 = vmatpush1.msra.mxu0 0.0
        %3652 = vmatprep.subr.mxu0 0.0
        %3653 = vmatpush1.msra.mxu0 0.0
        %3654 = vmatprep.subr.mxu0 0.0
        %3655 = vmatpush1.msra.mxu0 0.0
        %3656 = vmatprep.subr.mxu0 0.0
        %3657 = vmatpush1.msra.mxu0 0.0
        %3658 = vmatprep.subr.mxu0 0.0
        %3659 = vmatpush1.msra.mxu0 0.0
        %3660 = vmatprep.subr.mxu0 0.0
        %3661 = vmatpush1.msra.mxu0 0.0
        %3662 = vmatprep.subr.mxu0 0.0
        %3663 = vmatpush1.msra.mxu0 0.0
        %3664 = vmatprep.subr.mxu0 0.0
        %3665 = vmatpush1.msra.mxu0 0.0
        %3666 = vmatprep.subr.mxu0 0.0
        %3667 = vmatpush1.msra.mxu0 0.0
        %3668 = vmatprep.subr.mxu0 0.0
        %3669 = vmatpush1.msra.mxu0 0.0
        %3670 = vmatprep.subr.mxu0 0.0
        %3671 = vmatpush1.msra.mxu0 0.0
        %3672 = vmatprep.subr.mxu0 0.0
        %3673 = vmatpush1.msra.mxu0 0.0
        %3674 = vmatprep.subr.mxu0 0.0
        %3675 = vmatpush1.msra.mxu0 0.0
        %3676 = vmatprep.subr.mxu0 0.0
        %3677 = vmatpush1.msra.mxu0 0.0
        %3678 = vmatprep.subr.mxu0 0.0
        %3679 = vmatpush1.msra.mxu0 0.0
        %3680 = vmatprep.subr.mxu0 0.0
        %3681 = vmatpush1.msra.mxu0 0.0
        %3682 = vmatprep.subr.mxu0 0.0
        %3683 = vmatpush1.msra.mxu0 0.0
        %3684 = vmatprep.subr.mxu0 0.0
        %3685 = vmatpush1.msra.mxu0 0.0
        %3686 = vmatprep.subr.mxu0 0.0
        %3687 = vmatpush1.msra.mxu0 0.0
        %3688 = vmatprep.subr.mxu0 0.0
        %3689 = vmatpush1.msra.mxu0 0.0
        %3690 = vmatprep.subr.mxu0 0.0
        %3691 = vmatpush1.msra.mxu0 0.0
        %3692 = vmatprep.subr.mxu0 0.0
        %3693 = vmatpush1.msra.mxu0 0.0
        %3694 = vmatprep.subr.mxu0 0.0
        %3695 = vmatpush1.msra.mxu0 0.0
        %3696 = vmatprep.subr.mxu0 0.0
        %3697 = vmatpush1.msra.mxu0 0.0
        %3698 = vmatprep.subr.mxu0 0.0
        %3699 = vmatpush1.msra.mxu0 0.0
        %3700 = vmatprep.subr.mxu0 0.0
        %3701 = vmatpush1.msra.mxu0 0.0
        %3702 = vmatprep.mubr.f32.mxu0 0.0
        %3703 = vmatmul.mubr.f32.gmra.mrb[0].mxu0 %v3633
        %v3704 = vpop.f32.mrb[0].mxu0
        %v3705 = vadd.f32 0.0, %v3704
        %v3706 = vpop.f32.mrb[0].mxu0
        %3707 = vmatprep.mubr.f32.mxu0 0.0
        %3708 = vmatmul.mubr.f32.gmra.mrb[0].mxu0 %v3636
        %v3709 = vpop.f32.mrb[0].mxu0
        %v3710 = vadd.f32 0.0, %v3709
        %v3711 = vpop.f32.mrb[0].mxu0
        %3712 = vdwg.mxu0
        %s3713 = scalar_lea.vmem %s8, 1792
        %v3714 = vld [vmem:[%s3713] sm:$0xff]
        %v3715 = vld [vmem:[%s3713 + $0x8] sm:$0xff]
        %v3716 = vld [vmem:[%s3713 + $0x10] sm:$0xff]
        %v3717 = vld [vmem:[%s3713 + $0x18] sm:$0xff]
        %v3718 = vld [vmem:[%s3713 + $0x20] sm:$0xff]
        %v3719 = vld [vmem:[%s3713 + $0x28] sm:$0xff]
        %v3720 = vld [vmem:[%s3713 + $0x30] sm:$0xff]
        %v3721 = vld [vmem:[%s3713 + $0x38] sm:$0xff]
        %v3722 = vld [vmem:[%s3713 + $0x40] sm:$0xff]
        %v3723 = vld [vmem:[%s3713 + $0x48] sm:$0xff]
        %v3724 = vld [vmem:[%s3713 + $0x50] sm:$0xff]
        %v3725 = vld [vmem:[%s3713 + $0x58] sm:$0xff]
        %v3726 = vld [vmem:[%s3713 + $0x60] sm:$0xff]
        %v3727 = vld [vmem:[%s3713 + $0x68] sm:$0xff]
        %v3728 = vld [vmem:[%s3713 + $0x70] sm:$0xff]
        %v3729 = vld [vmem:[%s3713 + $0x78] sm:$0xff]
        %v3730 = vld [vmem:[%s3713 + $0x80] sm:$0xff]
        %v3731 = vld [vmem:[%s3713 + $0x88] sm:$0xff]
        %v3732 = vld [vmem:[%s3713 + $0x90] sm:$0xff]
        %v3733 = vld [vmem:[%s3713 + $0x98] sm:$0xff]
        %v3734 = vld [vmem:[%s3713 + $0xa0] sm:$0xff]
        %v3735 = vld [vmem:[%s3713 + $0xa8] sm:$0xff]
        %v3736 = vld [vmem:[%s3713 + $0xb0] sm:$0xff]
        %v3737 = vld [vmem:[%s3713 + $0xb8] sm:$0xff]
        %v3738 = vld [vmem:[%s3713 + $0xc0] sm:$0xff]
        %v3739 = vld [vmem:[%s3713 + $0xc8] sm:$0xff]
        %v3740 = vld [vmem:[%s3713 + $0xd0] sm:$0xff]
        %v3741 = vld [vmem:[%s3713 + $0xd8] sm:$0xff]
        %v3742 = vld [vmem:[%s3713 + $0xe0] sm:$0xff]
        %v3743 = vld [vmem:[%s3713 + $0xe8] sm:$0xff]
        %v3744 = vld [vmem:[%s3713 + $0xf0] sm:$0xff]
        %v3745 = vld [vmem:[%s3713 + $0xf8] sm:$0xff]
        %3746 = vmatprep.subr.mxu0 %v3715
        %3747 = vmatpush1.msra.mxu0 %v3714
        %3748 = vmatprep.subr.mxu0 %v3717
        %3749 = vmatpush1.msra.mxu0 %v3716
        %3750 = vmatprep.subr.mxu0 %v3719
        %3751 = vmatpush1.msra.mxu0 %v3718
        %3752 = vmatprep.subr.mxu0 %v3721
        %3753 = vmatpush1.msra.mxu0 %v3720
        %3754 = vmatprep.subr.mxu0 %v3723
        %3755 = vmatpush1.msra.mxu0 %v3722
        %3756 = vmatprep.subr.mxu0 %v3725
        %3757 = vmatpush1.msra.mxu0 %v3724
        %3758 = vmatprep.subr.mxu0 %v3727
        %3759 = vmatpush1.msra.mxu0 %v3726
        %3760 = vmatprep.subr.mxu0 %v3729
        %3761 = vmatpush1.msra.mxu0 %v3728
        %3762 = vmatprep.subr.mxu0 %v3731
        %3763 = vmatpush1.msra.mxu0 %v3730
        %3764 = vmatprep.subr.mxu0 %v3733
        %3765 = vmatpush1.msra.mxu0 %v3732
        %3766 = vmatprep.subr.mxu0 %v3735
        %3767 = vmatpush1.msra.mxu0 %v3734
        %3768 = vmatprep.subr.mxu0 %v3737
        %3769 = vmatpush1.msra.mxu0 %v3736
        %3770 = vmatprep.subr.mxu0 %v3739
        %3771 = vmatpush1.msra.mxu0 %v3738
        %3772 = vmatprep.subr.mxu0 %v3741
        %3773 = vmatpush1.msra.mxu0 %v3740
        %3774 = vmatprep.subr.mxu0 %v3743
        %3775 = vmatpush1.msra.mxu0 %v3742
        %3776 = vmatprep.subr.mxu0 %v3745
        %3777 = vmatpush1.msra.mxu0 %v3744
        %3778 = vmatprep.subr.mxu0 0.0
        %3779 = vmatpush1.msra.mxu0 0.0
        %3780 = vmatprep.subr.mxu0 0.0
        %3781 = vmatpush1.msra.mxu0 0.0
        %3782 = vmatprep.subr.mxu0 0.0
        %3783 = vmatpush1.msra.mxu0 0.0
        %3784 = vmatprep.subr.mxu0 0.0
        %3785 = vmatpush1.msra.mxu0 0.0
        %3786 = vmatprep.subr.mxu0 0.0
        %3787 = vmatpush1.msra.mxu0 0.0
        %3788 = vmatprep.subr.mxu0 0.0
        %3789 = vmatpush1.msra.mxu0 0.0
        %3790 = vmatprep.subr.mxu0 0.0
        %3791 = vmatpush1.msra.mxu0 0.0
        %3792 = vmatprep.subr.mxu0 0.0
        %3793 = vmatpush1.msra.mxu0 0.0
        %3794 = vmatprep.subr.mxu0 0.0
        %3795 = vmatpush1.msra.mxu0 0.0
        %3796 = vmatprep.subr.mxu0 0.0
        %3797 = vmatpush1.msra.mxu0 0.0
        %3798 = vmatprep.subr.mxu0 0.0
        %3799 = vmatpush1.msra.mxu0 0.0
        %3800 = vmatprep.subr.mxu0 0.0
        %3801 = vmatpush1.msra.mxu0 0.0
        %3802 = vmatprep.subr.mxu0 0.0
        %3803 = vmatpush1.msra.mxu0 0.0
        %3804 = vmatprep.subr.mxu0 0.0
        %3805 = vmatpush1.msra.mxu0 0.0
        %3806 = vmatprep.subr.mxu0 0.0
        %3807 = vmatpush1.msra.mxu0 0.0
        %3808 = vmatprep.subr.mxu0 0.0
        %3809 = vmatpush1.msra.mxu0 0.0
        %3810 = vmatprep.mubr.f32.mxu0 0.0
        %3811 = vmatmul.mubr.f32.gmra.mrb[0].mxu0 %v3705
        %v3812 = vpop.f32.mrb[0].mxu0
        %v3813 = vadd.f32 0.0, %v3812
        %v3814 = vpop.f32.mrb[0].mxu0
        %v3815 = vadd.f32 0.0, %v3814
        %3816 = vmatprep.mubr.f32.mxu0 0.0
        %3817 = vmatmul.mubr.f32.gmra.mrb[0].mxu0 %v3710
        %v3818 = vpop.f32.mrb[0].mxu0
        %v3819 = vadd.f32 0.0, %v3818
        %v3820 = vpop.f32.mrb[0].mxu0
        %v3821 = vadd.f32 0.0, %v3820
        %3822 = vdwg.mxu0
        %v3823 = vadd.f32 %v3625, %v3813
        %v3824 = vadd.f32 %v3626, %v3815
        %v3825 = vadd.f32 %v3627, %v3819
        %v3826 = vadd.f32 %v3628, %v3821
        %v3827 = vld [vmem:[%s9] sm:$0x3]
        %v3829 = vlaneseq
        %v3830 = vshrl.u32 %v3829, 7
        %v3831 = vsub.s32 0, %v3830
        %v3832 = vrot.slane %v3827, %v3831
        %v3833 = vlaneseq
        %v3834 = vshrl.u32 %v3833, 7
        %v3835 = vsub.s32 1, %v3834
        %v3836 = vrot.slane %v3827, %v3835
        %v3839 = vadd.f32 %v3823, %v3832
        %v3840 = vadd.f32 %v3824, %v3836
        %v3841 = vadd.f32 %v3825, %v3832
        %v3842 = vadd.f32 %v3826, %v3836
        %vm3843 = vcmp.gt.f32.partialorder %v3839, 0.0
        %vm3844 = vcmp.gt.f32.partialorder %v3840, 0.0
        %vm3845 = vcmp.gt.f32.partialorder %v3841, 0.0
        %vm3846 = vcmp.gt.f32.partialorder %v3842, 0.0
        %v3847 = vstv %s376
        %v3848 = vmul.f32 %v3847, %v3839
        %v3849 = vmul.f32 %v3847, %v3840
        %v3850 = vmul.f32 %v3847, %v3841
        %v3851 = vmul.f32 %v3847, %v3842
        %v3852 = vsel %vm3843, %v3839, %v3848
        %v3853 = vsel %vm3844, %v3840, %v3849
        %v3854 = vsel %vm3845, %v3841, %v3850
        %v3855 = vsel %vm3846, %v3842, %v3851
        %3856 = vst [vmem:[%s373] sm:$0xff] %v3852
        %3857 = vst [vmem:[%s373 + $0x8] sm:$0xff] %v3853
        %3858 = vst [vmem:[%s373 + $0x10] sm:$0xff] %v3854
        %3859 = vst [vmem:[%s373 + $0x18] sm:$0xff] %v3855
        %p3860 = scmp.lt.s32.totalorder %s22, 1
        %s3861 = scalar_select %p3860, %s22, 1
        %s3862 = smul.addr %s3861, 4
        %s3863 = smul.addr %s3862, 8
        %s3864 = scalar_lea.vmem %s10, %s3863
        // Predicated region
        $region65: #{encoder_forward.1} parent=59 // pred_check
          %p3865 = pneg %p255
        $region66: #{encoder_forward.1} parent=59 // pred_check_branch
          %3867 = sbr.rel (%p3865) target = $region68
        $region67: #{encoder_forward.1} parent=59 // pred_region
          _
        $region68: #{encoder_forward.1} parent=59 // pred_fallthru
          _
      $region60: #{encoder_forward.1} parent=5 // pred_fallthru
        _
      %p3868 = scmp.le.s32.totalorder 2, %s17
      // Predicated region
      $region69: #{encoder_forward.1} parent=5 // pred_check
        %p3869 = pneg %p3868
      $region70: #{encoder_forward.1} parent=5 // pred_check_branch
        %3871 = sbr.rel (%p3869) target = $region72
      $region71: #{encoder_forward.1} parent=5 // pred_region
        %s3872 = ssub.s32 %s17, 2
        // Predicated region
        $region73: #{encoder_forward.1} parent=71 // pred_check
          %p3873 = pneg %p261
        $region74: #{encoder_forward.1} parent=71 // pred_check_branch
          %3875 = sbr.rel (%p3873) target = $region76
        $region75: #{encoder_forward.1} parent=71 // pred_region
          %p3876 = scmp.lt.s32.totalorder %s23, 1
          %s3877 = scalar_select %p3876, %s23, 1
          %s3878 = smul.addr %s3877, 4
          %s3879 = smul.addr %s3878, 8
          %s3880 = scalar_lea.vmem %s10, %s3879
        $region76: #{encoder_forward.1} parent=71 // pred_fallthru
          _
      $region72: #{encoder_forward.1} parent=5 // pred_fallthru
        _
    $region6: #{encoder_forward.1} parent=1 // loop_footer
      %s21 = sadd.s32 1, %s17
    $region7: #{encoder_forward.1} parent=1 // loop_footer_branch
      %16 = sbr.rel target = $region3
    $region8: #{encoder_forward.1} parent=1 // loop_exit
      _
    %3881 = vsyncpa [#allocation5], 1
    %s3882 = scalar_lea.sflag [#allocation5], 1
    %3883 = vsyncpa %s3882, 1

</llo_original>
